<compile_context>
chip_gen: v6e
topology: v6e:2x2x1
jax: 0.10.0
libtpu: 0.0.40
codegen_flags: <defaults>
</compile_context>

<pallas_src>
import functools
from math import sqrt

import jax
import jax.numpy as jnp
from jax.experimental import pallas as pl
from jax.experimental.pallas import tpu as pltpu


def _round_up(v, m):
    return ((v + m - 1) // m) * m


def _conv_taps_kernel(x_ref, w_ref, b_ref, o_ref, acc_ref, *, taps, scale):
    """One (image, OC-tile) block.

    x_ref : (1, L, C)        flattened, spatially padded image (+ KW-1 tail rows)
    w_ref : (KH*KW, C, TN)   per-tap weight slabs (OC zero-padded to TN multiple)
    b_ref : (1, TN)          bias (zero-padded)
    o_ref : (1, M, TN)       M = H_out * Wp output rows (garbage cols sliced on host)
    acc_ref: (M, TN) f32     VMEM accumulator
    """
    m = acc_ref.shape[0]
    for t, d in enumerate(taps):
        # Static sublane-offset slice of the VMEM block -> (M, C) lhs, fed to
        # the MXU against the (C, TN) tap weight.  f32 accumulation.
        contrib = jnp.dot(x_ref[0, d:d + m, :], w_ref[t],
                          preferred_element_type=jnp.float32)
        if t == 0:
            acc_ref[...] = contrib
        else:
            acc_ref[...] += contrib
    # EqualLR scale + bias epilogue (VPU), lane-dense store.
    o_ref[0] = (acc_ref[...] * scale + b_ref[...]).astype(o_ref.dtype)


def equal_conv2d(x, weight, bias, *, padding, tn=128):
    """x: (N, C, H, W); weight: (OC, C, KH, KW); bias: (OC,). stride=1 conv.

    Returns (N, OC, H_out, W_out) with H_out = H + 2*pad - KH + 1 (same as
    nn.Conv2d with the given padding).
    """
    n, c, h, w = x.shape
    oc, c_in, kh, kw = weight.shape
    assert c == c_in
    fan_in = c_in * kh * kw
    scale = sqrt(2.0 / fan_in)                      # EqualLR scale (compile-time)

    hp, wp = h + 2 * padding, w + 2 * padding
    h_out, w_out = hp - kh + 1, wp - kw + 1
    m_img = h_out * wp                              # output rows per image (incl.
                                                    # 2*pad garbage cols per row)
    l_in = hp * wp + (kw - 1)                       # flat input rows per image
                                                    # (+ tail so taps never read OOB)

    # ---- host-side glue (read/written once; no duplication of the input) ----
    x_nhwc = jnp.transpose(x, (0, 2, 3, 1))                          # (N,H,W,C)
    xp = jnp.pad(x_nhwc, ((0, 0), (padding, padding), (padding, padding), (0, 0)))
    x_flat = jnp.pad(xp.reshape(n, hp * wp, c), ((0, 0), (0, kw - 1), (0, 0)))

    # Weight -> (KH*KW, C, OCp), OC zero-padded to a lane-dense multiple of tn.
    ocp = _round_up(oc, tn)
    w_taps = jnp.transpose(weight, (2, 3, 1, 0)).reshape(kh * kw, c, oc)
    w_taps = jnp.pad(w_taps, ((0, 0), (0, 0), (0, ocp - oc)))
    b_pad = jnp.pad(bias, (0, ocp - oc)).reshape(1, ocp)

    # Flat offset of each conv tap in the padded, flattened image.
    taps = tuple(ky * wp + kx for ky in range(kh) for kx in range(kw))

    n_oc_tiles = ocp // tn
    grid = (n, n_oc_tiles)

    flops = 2 * n * n_oc_tiles * len(taps) * m_img * c * tn
    bytes_accessed = 4 * (x_flat.size + w_taps.size + b_pad.size + n * m_img * ocp)

    # NOTE(perf): for production sizes, single-buffer the weight/bias specs
    # (pipeline_mode=pl.Buffered(1)), cast operands to bf16 on v6e/v7x, tile C
    # with an "arbitrary" K grid axis, and set vmem_limit_bytes for v7x's
    # 64 MiB VMEM.  Not needed (and kept f32) for these demo shapes.
    out_flat = pl.pallas_call(
        functools.partial(_conv_taps_kernel, taps=taps, scale=scale),
        out_shape=jax.ShapeDtypeStruct((n, m_img, ocp), x.dtype),
        grid_spec=pltpu.PrefetchScalarGridSpec(
            num_scalar_prefetch=0,
            grid=grid,
            in_specs=[
                pl.BlockSpec((1, l_in, c), lambda i, j: (i, 0, 0)),
                pl.BlockSpec((kh * kw, c, tn), lambda i, j: (0, 0, j)),
                pl.BlockSpec((1, tn), lambda i, j: (0, j)),
            ],
            out_specs=pl.BlockSpec((1, m_img, tn), lambda i, j: (i, 0, j)),
            scratch_shapes=[pltpu.VMEM((m_img, tn), jnp.float32)],
        ),
        compiler_params=pltpu.CompilerParams(
            dimension_semantics=("parallel", "parallel")),
        cost_estimate=pl.CostEstimate(
            flops=flops, transcendentals=0, bytes_accessed=bytes_accessed),
    )(x_flat, w_taps, b_pad)

    # (N, H_out*Wp, OCp) -> (N, H_out, Wp, OCp) -> drop garbage cols + padded
    # channels -> NCHW.
    out = out_flat.reshape(n, h_out, wp, ocp)[:, :, :w_out, :oc]
    return jnp.transpose(out, (0, 3, 1, 2))


if __name__ == "__main__":
    key = jax.random.PRNGKey(0)
    kx_key, kw_key = jax.random.split(key)

    # EqualConv2d(in_channels=4, out_channels=8, kernel_size=3, padding=1)
    N, C, H, W = 2, 4, 16, 16
    OC, KH, KW, PAD = 8, 3, 3, 1

    x = jax.random.normal(kx_key, (N, C, H, W), dtype=jnp.float32)
    weight = jax.random.normal(kw_key, (OC, C, KH, KW), dtype=jnp.float32)  # .normal_()
    bias = jnp.zeros((OC,), dtype=jnp.float32)                              # .zero_()

    out = jax.block_until_ready(equal_conv2d(x, weight, bias, padding=PAD))

    # Reference: XLA conv with the EqualLR-scaled weight.
    scale = sqrt(2.0 / (C * KH * KW))
    ref = jax.lax.conv_general_dilated(
        x, weight * scale, window_strides=(1, 1),
        padding=[(PAD, PAD), (PAD, PAD)],
        dimension_numbers=("NCHW", "OIHW", "NCHW")) + bias.reshape(1, OC, 1, 1)

    assert out.shape == (N, OC, H, W)
    assert jnp.allclose(out, ref, atol=1e-4, rtol=1e-4)

    print("KERNEL_OK")
</pallas_src>

<mosaic_0001>
module attributes {stable_mosaic.version = 11 : i64} {
  func.func @_conv_taps_kernel(%arg0: i32, %arg1: i32, %arg2: memref<1x326x4xf32, #tpu.memory_space<vmem>>, %arg3: memref<9x4x128xf32, #tpu.memory_space<vmem>>, %arg4: memref<1x128xf32, #tpu.memory_space<vmem>>, %arg5: memref<1x288x128xf32, #tpu.memory_space<vmem>>, %arg6: memref<288x128xf32, #tpu.memory_space<vmem>>) attributes {dimension_semantics = [#tpu.dimension_semantics<parallel>, #tpu.dimension_semantics<parallel>], iteration_bounds = array<i64: 2, 1>, scalar_prefetch = 0 : i64, scratch_operands = 1 : i64, tpu.core_type = #tpu.core_type<tc>, window_params = [{transform_indices = @transform_0, window_bounds = array<i64: 1, 326, 4>}, {transform_indices = @transform_1, window_bounds = array<i64: 9, 4, 128>}, {transform_indices = @transform_2, window_bounds = array<i64: 1, 128>}, {transform_indices = @transform_3, window_bounds = array<i64: 1, 288, 128>}]} {
    %c0 = arith.constant 0 : index
    %c0_0 = arith.constant 0 : index
    %c0_1 = arith.constant 0 : index
    %0 = vector.load %arg2[%c0, %c0_0, %c0_1] : memref<1x326x4xf32, #tpu.memory_space<vmem>>, vector<1x288x4xf32>
    %1 = vector.shape_cast %0 : vector<1x288x4xf32> to vector<288x4xf32>
    %c0_2 = arith.constant 0 : index
    %c0_3 = arith.constant 0 : index
    %c0_4 = arith.constant 0 : index
    %2 = vector.load %arg3[%c0_2, %c0_3, %c0_4] : memref<9x4x128xf32, #tpu.memory_space<vmem>>, vector<1x4x128xf32>
    %3 = vector.shape_cast %2 : vector<1x4x128xf32> to vector<4x128xf32>
    %cst = arith.constant dense<0.000000e+00> : vector<288x128xf32>
    %4 = tpu.matmul %1, %3, %cst {dimension_numbers = #tpu.dot_dimension_numbers<[1], [0], [0], [1], [0, 0, 1, 1], [], []>} : vector<288x4xf32>, vector<4x128xf32>, vector<288x128xf32> -> vector<288x128xf32>
    %c0_5 = arith.constant 0 : index
    %c0_6 = arith.constant 0 : index
    %5 = vector.load %arg6[%c0_5, %c0_6] : memref<288x128xf32, #tpu.memory_space<vmem>>, vector<288x128xf32>
    tpu.vector_store %arg6[%c0_5, %c0_6], %4 {strides = array<i32>} : memref<288x128xf32, #tpu.memory_space<vmem>>, vector<288x128xf32>,
    %c0_7 = arith.constant 0 : index
    %c1 = arith.constant 1 : index
    %c0_8 = arith.constant 0 : index
    %6 = vector.load %arg2[%c0_7, %c1, %c0_8] : memref<1x326x4xf32, #tpu.memory_space<vmem>>, vector<1x288x4xf32>
    %7 = vector.shape_cast %6 : vector<1x288x4xf32> to vector<288x4xf32>
    %c1_9 = arith.constant 1 : index
    %c0_10 = arith.constant 0 : index
    %c0_11 = arith.constant 0 : index
    %8 = vector.load %arg3[%c1_9, %c0_10, %c0_11] : memref<9x4x128xf32, #tpu.memory_space<vmem>>, vector<1x4x128xf32>
    %9 = vector.shape_cast %8 : vector<1x4x128xf32> to vector<4x128xf32>
    %cst_12 = arith.constant dense<0.000000e+00> : vector<288x128xf32>
    %10 = tpu.matmul %7, %9, %cst_12 {dimension_numbers = #tpu.dot_dimension_numbers<[1], [0], [0], [1], [0, 0, 1, 1], [], []>} : vector<288x4xf32>, vector<4x128xf32>, vector<288x128xf32> -> vector<288x128xf32>
    %c0_13 = arith.constant 0 : index
    %c0_14 = arith.constant 0 : index
    %11 = vector.load %arg6[%c0_13, %c0_14] : memref<288x128xf32, #tpu.memory_space<vmem>>, vector<288x128xf32>
    %12 = arith.addf %11, %10 : vector<288x128xf32>
    %c0_15 = arith.constant 0 : index
    %c0_16 = arith.constant 0 : index
    %13 = vector.load %arg6[%c0_15, %c0_16] : memref<288x128xf32, #tpu.memory_space<vmem>>, vector<288x128xf32>
    tpu.vector_store %arg6[%c0_15, %c0_16], %12 {strides = array<i32>} : memref<288x128xf32, #tpu.memory_space<vmem>>, vector<288x128xf32>,
    %c0_17 = arith.constant 0 : index
    %c2 = arith.constant 2 : index
    %c0_18 = arith.constant 0 : index
    %14 = vector.load %arg2[%c0_17, %c2, %c0_18] : memref<1x326x4xf32, #tpu.memory_space<vmem>>, vector<1x288x4xf32>
    %15 = vector.shape_cast %14 : vector<1x288x4xf32> to vector<288x4xf32>
    %c2_19 = arith.constant 2 : index
    %c0_20 = arith.constant 0 : index
    %c0_21 = arith.constant 0 : index
    %16 = vector.load %arg3[%c2_19, %c0_20, %c0_21] : memref<9x4x128xf32, #tpu.memory_space<vmem>>, vector<1x4x128xf32>
    %17 = vector.shape_cast %16 : vector<1x4x128xf32> to vector<4x128xf32>
    %cst_22 = arith.constant dense<0.000000e+00> : vector<288x128xf32>
    %18 = tpu.matmul %15, %17, %cst_22 {dimension_numbers = #tpu.dot_dimension_numbers<[1], [0], [0], [1], [0, 0, 1, 1], [], []>} : vector<288x4xf32>, vector<4x128xf32>, vector<288x128xf32> -> vector<288x128xf32>
    %c0_23 = arith.constant 0 : index
    %c0_24 = arith.constant 0 : index
    %19 = vector.load %arg6[%c0_23, %c0_24] : memref<288x128xf32, #tpu.memory_space<vmem>>, vector<288x128xf32>
    %20 = arith.addf %19, %18 : vector<288x128xf32>
    %c0_25 = arith.constant 0 : index
    %c0_26 = arith.constant 0 : index
    %21 = vector.load %arg6[%c0_25, %c0_26] : memref<288x128xf32, #tpu.memory_space<vmem>>, vector<288x128xf32>
    tpu.vector_store %arg6[%c0_25, %c0_26], %20 {strides = array<i32>} : memref<288x128xf32, #tpu.memory_space<vmem>>, vector<288x128xf32>,
    %c0_27 = arith.constant 0 : index
    %c18 = arith.constant 18 : index
    %c0_28 = arith.constant 0 : index
    %22 = vector.load %arg2[%c0_27, %c18, %c0_28] : memref<1x326x4xf32, #tpu.memory_space<vmem>>, vector<1x288x4xf32>
    %23 = vector.shape_cast %22 : vector<1x288x4xf32> to vector<288x4xf32>
    %c3 = arith.constant 3 : index
    %c0_29 = arith.constant 0 : index
    %c0_30 = arith.constant 0 : index
    %24 = vector.load %arg3[%c3, %c0_29, %c0_30] : memref<9x4x128xf32, #tpu.memory_space<vmem>>, vector<1x4x128xf32>
    %25 = vector.shape_cast %24 : vector<1x4x128xf32> to vector<4x128xf32>
    %cst_31 = arith.constant dense<0.000000e+00> : vector<288x128xf32>
    %26 = tpu.matmul %23, %25, %cst_31 {dimension_numbers = #tpu.dot_dimension_numbers<[1], [0], [0], [1], [0, 0, 1, 1], [], []>} : vector<288x4xf32>, vector<4x128xf32>, vector<288x128xf32> -> vector<288x128xf32>
    %c0_32 = arith.constant 0 : index
    %c0_33 = arith.constant 0 : index
    %27 = vector.load %arg6[%c0_32, %c0_33] : memref<288x128xf32, #tpu.memory_space<vmem>>, vector<288x128xf32>
    %28 = arith.addf %27, %26 : vector<288x128xf32>
    %c0_34 = arith.constant 0 : index
    %c0_35 = arith.constant 0 : index
    %29 = vector.load %arg6[%c0_34, %c0_35] : memref<288x128xf32, #tpu.memory_space<vmem>>, vector<288x128xf32>
    tpu.vector_store %arg6[%c0_34, %c0_35], %28 {strides = array<i32>} : memref<288x128xf32, #tpu.memory_space<vmem>>, vector<288x128xf32>,
    %c0_36 = arith.constant 0 : index
    %c19 = arith.constant 19 : index
    %c0_37 = arith.constant 0 : index
    %30 = vector.load %arg2[%c0_36, %c19, %c0_37] : memref<1x326x4xf32, #tpu.memory_space<vmem>>, vector<1x288x4xf32>
    %31 = vector.shape_cast %30 : vector<1x288x4xf32> to vector<288x4xf32>
    %c4 = arith.constant 4 : index
    %c0_38 = arith.constant 0 : index
    %c0_39 = arith.constant 0 : index
    %32 = vector.load %arg3[%c4, %c0_38, %c0_39] : memref<9x4x128xf32, #tpu.memory_space<vmem>>, vector<1x4x128xf32>
    %33 = vector.shape_cast %32 : vector<1x4x128xf32> to vector<4x128xf32>
    %cst_40 = arith.constant dense<0.000000e+00> : vector<288x128xf32>
    %34 = tpu.matmul %31, %33, %cst_40 {dimension_numbers = #tpu.dot_dimension_numbers<[1], [0], [0], [1], [0, 0, 1, 1], [], []>} : vector<288x4xf32>, vector<4x128xf32>, vector<288x128xf32> -> vector<288x128xf32>
    %c0_41 = arith.constant 0 : index
    %c0_42 = arith.constant 0 : index
    %35 = vector.load %arg6[%c0_41, %c0_42] : memref<288x128xf32, #tpu.memory_space<vmem>>, vector<288x128xf32>
    %36 = arith.addf %35, %34 : vector<288x128xf32>
    %c0_43 = arith.constant 0 : index
    %c0_44 = arith.constant 0 : index
    %37 = vector.load %arg6[%c0_43, %c0_44] : memref<288x128xf32, #tpu.memory_space<vmem>>, vector<288x128xf32>
    tpu.vector_store %arg6[%c0_43, %c0_44], %36 {strides = array<i32>} : memref<288x128xf32, #tpu.memory_space<vmem>>, vector<288x128xf32>,
    %c0_45 = arith.constant 0 : index
    %c20 = arith.constant 20 : index
    %c0_46 = arith.constant 0 : index
    %38 = vector.load %arg2[%c0_45, %c20, %c0_46] : memref<1x326x4xf32, #tpu.memory_space<vmem>>, vector<1x288x4xf32>
    %39 = vector.shape_cast %38 : vector<1x288x4xf32> to vector<288x4xf32>
    %c5 = arith.constant 5 : index
    %c0_47 = arith.constant 0 : index
    %c0_48 = arith.constant 0 : index
    %40 = vector.load %arg3[%c5, %c0_47, %c0_48] : memref<9x4x128xf32, #tpu.memory_space<vmem>>, vector<1x4x128xf32>
    %41 = vector.shape_cast %40 : vector<1x4x128xf32> to vector<4x128xf32>
    %cst_49 = arith.constant dense<0.000000e+00> : vector<288x128xf32>
    %42 = tpu.matmul %39, %41, %cst_49 {dimension_numbers = #tpu.dot_dimension_numbers<[1], [0], [0], [1], [0, 0, 1, 1], [], []>} : vector<288x4xf32>, vector<4x128xf32>, vector<288x128xf32> -> vector<288x128xf32>
    %c0_50 = arith.constant 0 : index
    %c0_51 = arith.constant 0 : index
    %43 = vector.load %arg6[%c0_50, %c0_51] : memref<288x128xf32, #tpu.memory_space<vmem>>, vector<288x128xf32>
    %44 = arith.addf %43, %42 : vector<288x128xf32>
    %c0_52 = arith.constant 0 : index
    %c0_53 = arith.constant 0 : index
    %45 = vector.load %arg6[%c0_52, %c0_53] : memref<288x128xf32, #tpu.memory_space<vmem>>, vector<288x128xf32>
    tpu.vector_store %arg6[%c0_52, %c0_53], %44 {strides = array<i32>} : memref<288x128xf32, #tpu.memory_space<vmem>>, vector<288x128xf32>,
    %c0_54 = arith.constant 0 : index
    %c36 = arith.constant 36 : index
    %c0_55 = arith.constant 0 : index
    %46 = vector.load %arg2[%c0_54, %c36, %c0_55] : memref<1x326x4xf32, #tpu.memory_space<vmem>>, vector<1x288x4xf32>
    %47 = vector.shape_cast %46 : vector<1x288x4xf32> to vector<288x4xf32>
    %c6 = arith.constant 6 : index
    %c0_56 = arith.constant 0 : index
    %c0_57 = arith.constant 0 : index
    %48 = vector.load %arg3[%c6, %c0_56, %c0_57] : memref<9x4x128xf32, #tpu.memory_space<vmem>>, vector<1x4x128xf32>
    %49 = vector.shape_cast %48 : vector<1x4x128xf32> to vector<4x128xf32>
    %cst_58 = arith.constant dense<0.000000e+00> : vector<288x128xf32>
    %50 = tpu.matmul %47, %49, %cst_58 {dimension_numbers = #tpu.dot_dimension_numbers<[1], [0], [0], [1], [0, 0, 1, 1], [], []>} : vector<288x4xf32>, vector<4x128xf32>, vector<288x128xf32> -> vector<288x128xf32>
    %c0_59 = arith.constant 0 : index
    %c0_60 = arith.constant 0 : index
    %51 = vector.load %arg6[%c0_59, %c0_60] : memref<288x128xf32, #tpu.memory_space<vmem>>, vector<288x128xf32>
    %52 = arith.addf %51, %50 : vector<288x128xf32>
    %c0_61 = arith.constant 0 : index
    %c0_62 = arith.constant 0 : index
    %53 = vector.load %arg6[%c0_61, %c0_62] : memref<288x128xf32, #tpu.memory_space<vmem>>, vector<288x128xf32>
    tpu.vector_store %arg6[%c0_61, %c0_62], %52 {strides = array<i32>} : memref<288x128xf32, #tpu.memory_space<vmem>>, vector<288x128xf32>,
    %c0_63 = arith.constant 0 : index
    %c37 = arith.constant 37 : index
    %c0_64 = arith.constant 0 : index
    %54 = vector.load %arg2[%c0_63, %c37, %c0_64] : memref<1x326x4xf32, #tpu.memory_space<vmem>>, vector<1x288x4xf32>
    %55 = vector.shape_cast %54 : vector<1x288x4xf32> to vector<288x4xf32>
    %c7 = arith.constant 7 : index
    %c0_65 = arith.constant 0 : index
    %c0_66 = arith.constant 0 : index
    %56 = vector.load %arg3[%c7, %c0_65, %c0_66] : memref<9x4x128xf32, #tpu.memory_space<vmem>>, vector<1x4x128xf32>
    %57 = vector.shape_cast %56 : vector<1x4x128xf32> to vector<4x128xf32>
    %cst_67 = arith.constant dense<0.000000e+00> : vector<288x128xf32>
    %58 = tpu.matmul %55, %57, %cst_67 {dimension_numbers = #tpu.dot_dimension_numbers<[1], [0], [0], [1], [0, 0, 1, 1], [], []>} : vector<288x4xf32>, vector<4x128xf32>, vector<288x128xf32> -> vector<288x128xf32>
    %c0_68 = arith.constant 0 : index
    %c0_69 = arith.constant 0 : index
    %59 = vector.load %arg6[%c0_68, %c0_69] : memref<288x128xf32, #tpu.memory_space<vmem>>, vector<288x128xf32>
    %60 = arith.addf %59, %58 : vector<288x128xf32>
    %c0_70 = arith.constant 0 : index
    %c0_71 = arith.constant 0 : index
    %61 = vector.load %arg6[%c0_70, %c0_71] : memref<288x128xf32, #tpu.memory_space<vmem>>, vector<288x128xf32>
    tpu.vector_store %arg6[%c0_70, %c0_71], %60 {strides = array<i32>} : memref<288x128xf32, #tpu.memory_space<vmem>>, vector<288x128xf32>,
    %c0_72 = arith.constant 0 : index
    %c38 = arith.constant 38 : index
    %c0_73 = arith.constant 0 : index
    %62 = vector.load %arg2[%c0_72, %c38, %c0_73] : memref<1x326x4xf32, #tpu.memory_space<vmem>>, vector<1x288x4xf32>
    %63 = vector.shape_cast %62 : vector<1x288x4xf32> to vector<288x4xf32>
    %c8 = arith.constant 8 : index
    %c0_74 = arith.constant 0 : index
    %c0_75 = arith.constant 0 : index
    %64 = vector.load %arg3[%c8, %c0_74, %c0_75] : memref<9x4x128xf32, #tpu.memory_space<vmem>>, vector<1x4x128xf32>
    %65 = vector.shape_cast %64 : vector<1x4x128xf32> to vector<4x128xf32>
    %cst_76 = arith.constant dense<0.000000e+00> : vector<288x128xf32>
    %66 = tpu.matmul %63, %65, %cst_76 {dimension_numbers = #tpu.dot_dimension_numbers<[1], [0], [0], [1], [0, 0, 1, 1], [], []>} : vector<288x4xf32>, vector<4x128xf32>, vector<288x128xf32> -> vector<288x128xf32>
    %c0_77 = arith.constant 0 : index
    %c0_78 = arith.constant 0 : index
    %67 = vector.load %arg6[%c0_77, %c0_78] : memref<288x128xf32, #tpu.memory_space<vmem>>, vector<288x128xf32>
    %68 = arith.addf %67, %66 : vector<288x128xf32>
    %c0_79 = arith.constant 0 : index
    %c0_80 = arith.constant 0 : index
    %69 = vector.load %arg6[%c0_79, %c0_80] : memref<288x128xf32, #tpu.memory_space<vmem>>, vector<288x128xf32>
    tpu.vector_store %arg6[%c0_79, %c0_80], %68 {strides = array<i32>} : memref<288x128xf32, #tpu.memory_space<vmem>>, vector<288x128xf32>,
    %c0_81 = arith.constant 0 : index
    %c0_82 = arith.constant 0 : index
    %70 = vector.load %arg6[%c0_81, %c0_82] : memref<288x128xf32, #tpu.memory_space<vmem>>, vector<288x128xf32>
    %cst_83 = arith.constant 0.235702261 : f32
    %71 = vector.broadcast %cst_83 : f32 to vector<288x128xf32>
    %72 = arith.mulf %70, %71 : vector<288x128xf32>
    %c0_84 = arith.constant 0 : index
    %c0_85 = arith.constant 0 : index
    %73 = vector.load %arg4[%c0_84, %c0_85] : memref<1x128xf32, #tpu.memory_space<vmem>>, vector<1x128xf32>
    %74 = vector.broadcast %73 : vector<1x128xf32> to vector<288x128xf32>
    %75 = arith.addf %72, %74 : vector<288x128xf32>
    %c0_86 = arith.constant 0 : index
    %c0_87 = arith.constant 0 : index
    %c0_88 = arith.constant 0 : index
    %76 = vector.load %arg5[%c0_86, %c0_87, %c0_88] : memref<1x288x128xf32, #tpu.memory_space<vmem>>, vector<1x288x128xf32>
    %77 = vector.shape_cast %76 : vector<1x288x128xf32> to vector<288x128xf32>
    %78 = vector.shape_cast %75 : vector<288x128xf32> to vector<1x288x128xf32>
    tpu.vector_store %arg5[%c0_86, %c0_87, %c0_88], %78 {strides = array<i32>} : memref<1x288x128xf32, #tpu.memory_space<vmem>>, vector<1x288x128xf32>,
    return
  }
  func.func @transform_0(%arg0: i32, %arg1: i32) -> (i32, i32, i32) {
    %c0_i32 = arith.constant 0 : i32
    %c0_i32_0 = arith.constant 0 : i32
    %c0_i32_1 = arith.constant 0 : i32
    return %arg0, %c0_i32, %c0_i32_0 : i32, i32, i32
  }
  func.func @transform_1(%arg0: i32, %arg1: i32) -> (i32, i32, i32) {
    %c0_i32 = arith.constant 0 : i32
    %c0_i32_0 = arith.constant 0 : i32
    %c0_i32_1 = arith.constant 0 : i32
    return %c0_i32, %c0_i32_0, %arg1 : i32, i32, i32
  }
  func.func @transform_2(%arg0: i32, %arg1: i32) -> (i32, i32) {
    %c0_i32 = arith.constant 0 : i32
    %c0_i32_0 = arith.constant 0 : i32
    return %c0_i32, %arg1 : i32, i32
  }
  func.func @transform_3(%arg0: i32, %arg1: i32) -> (i32, i32, i32) {
    %c0_i32 = arith.constant 0 : i32
    %c0_i32_0 = arith.constant 0 : i32
    return %arg0, %c0_i32, %arg1 : i32, i32, i32
  }
}

</mosaic_0001>

<llo_original>
// kernel: tpu_custom_call.1
$region0: #{tpu_custom_call.1}
  #allocation0 [shape = 'u32[]', space=smem, size = 0x4, offset = 0x4, fixed_abs, tag = 'smem constant byte address 0x4 - core index']
  #allocation1 [shape = 'u32[144,128]{1,0:T(1,128)}', space=vmem, size = 0x12000, scoped, tag = 'internal scratch']
  #allocation2 [shape = 'f32[288,128]{1,0:T(8,128)}', space=vmem, size = 0x24000, scoped, tag = 'scratch operand']
  %s0 = inlined_call_operand.vmem [shape: f32[2,326,4], index: 0, kind: input, shape index: {}]
  %s1 = inlined_call_operand.vmem [shape: f32[9,4,128], index: 1, kind: input, shape index: {}]
  %s2 = inlined_call_operand.vmem [shape: f32[1,128], index: 2, kind: input, shape index: {}]
  %s3 = inlined_call_operand.hbm [shape: f32[2,288,128], index: 3, kind: output, shape index: {}]
  %s4 = sld [smem:[#allocation0]]
  $region45: #{tpu_custom_call.1} parent=0
    _
  %s6 = ssub.s32 1, %s4
  %s7 = scalar_select 0, %s6, %s4
  $region1: #{tpu_custom_call.1} parent=0
    #allocation3 [shape = 'u8[294912]{0}', space=vmem, size = 0x48000, scoped, tag = 'output window, operand 0']
    #allocation4 [shape = 's32[2]{0}', space=sflag, size = 0x8, scoped, tag = 'scoped memory for tpu_custom_call.1']
    %8 = vsyncpa [#allocation4], 0
    %s9 = scalar_lea.sflag [#allocation4], 1
    %10 = vsyncpa %s9, 0
    loop: start=0, step=1, limit=4
    $region2: #{tpu_custom_call.1} parent=1 // loop_pre_header
      _
    $region3: #{tpu_custom_call.1} parent=1 // loop_header
      %s12 = sphi 0, %s16
      %p13 = scmp.ge.s32.totalorder %s12, 4
      %s19 = sphi 0, %s31
      %s20 = sphi 0, %s27
      %s21 = sphi 0, %s19
      %s22 = sphi 0, %s20
      %s23 = sphi 0, %s21
      %s24 = sphi 0, %s22
      %s34 = sphi 0, %s36
      %s37 = sphi 0, %s34
      %s38 = sphi 0, %s37
      %s54 = sphi 0, %s38
      %s60 = sphi 0, %s62
      %s63 = sphi 0, %s60
      %s64 = sphi 0, %s63
      %s80 = sphi 0, %s64
      %s86 = sphi 0, %s88
      %s89 = sphi 0, %s86
      %s90 = sphi 0, %s89
      %s106 = sphi 0, %s90
      %s114 = sphi 0, %s116
      %s117 = sphi 0, %s114
      %s118 = sphi 0, %s117
      %s134 = sphi 0, %s118
    $region4: #{tpu_custom_call.1} parent=1 // loop_header_branch
      %15 = sbr.rel (%p13) target = $region8
    $region5: #{tpu_custom_call.1} parent=1 // loop_body
      %s17 = ssub.s32 %s12, 1
      %s18 = ssub.s32 %s12, 2
      %s25 = sadd.s32 1, %s20
      %p26 = scmp.ge.s32.totalorder %s25, 1
      %s27 = scalar_select %p26, 0, %s25
      %s28 = sadd.s32 1, %s19
      %s29 = scalar_select %p26, %s28, %s19
      %p30 = scmp.ge.s32.totalorder %s29, 2
      %s31 = scalar_select %p30, 0, %s29
      %s32 = ssub.s32 %s19, %s31
      %p33 = scmp.eq.s32.totalorder %s32, 0
      %s35 = sadd.s32 %s34, 1
      %s36 = scalar_select %p33, %s34, %s35
      %p39 = pneg %p33
      %p40 = scmp.eq.s32.totalorder %s12, 1
      %p41 = por %p39, %p40
      %p42 = scmp.ne.s32.totalorder %s34, %s37
      %p43 = scmp.eq.s32.totalorder %s12, 0
      %p44 = por %p42, %p43
      %p45 = scmp.ne.s32.totalorder %s34, %s37
      %p46 = scmp.eq.s32.totalorder %s17, 1
      %p47 = por %p45, %p46
      %p48 = scmp.ne.s32.totalorder %s37, %s38
      %p49 = scmp.eq.s32.totalorder %s17, 0
      %p50 = por %p48, %p49
      %p51 = scmp.ne.s32.totalorder %s37, %s38
      %p52 = scmp.eq.s32.totalorder %s18, 1
      %p53 = por %p51, %p52
      %p55 = scmp.ne.s32.totalorder %s38, %s54
      %p56 = scmp.eq.s32.totalorder %s18, 0
      %p57 = por %p55, %p56
      %s58 = ssub.s32 %s20, %s27
      %p59 = scmp.eq.s32.totalorder %s58, 0
      %s61 = sadd.s32 %s60, 1
      %s62 = scalar_select %p59, %s60, %s61
      %p65 = pneg %p59
      %p66 = scmp.eq.s32.totalorder %s12, 1
      %p67 = por %p65, %p66
      %p68 = scmp.ne.s32.totalorder %s60, %s63
      %p69 = scmp.eq.s32.totalorder %s12, 0
      %p70 = por %p68, %p69
      %p71 = scmp.ne.s32.totalorder %s60, %s63
      %p72 = scmp.eq.s32.totalorder %s17, 1
      %p73 = por %p71, %p72
      %p74 = scmp.ne.s32.totalorder %s63, %s64
      %p75 = scmp.eq.s32.totalorder %s17, 0
      %p76 = por %p74, %p75
      %p77 = scmp.ne.s32.totalorder %s63, %s64
      %p78 = scmp.eq.s32.totalorder %s18, 1
      %p79 = por %p77, %p78
      %p81 = scmp.ne.s32.totalorder %s64, %s80
      %p82 = scmp.eq.s32.totalorder %s18, 0
      %p83 = por %p81, %p82
      %s84 = ssub.s32 %s20, %s27
      %p85 = scmp.eq.s32.totalorder %s84, 0
      %s87 = sadd.s32 %s86, 1
      %s88 = scalar_select %p85, %s86, %s87
      %p91 = pneg %p85
      %p92 = scmp.eq.s32.totalorder %s12, 1
      %p93 = por %p91, %p92
      %p94 = scmp.ne.s32.totalorder %s86, %s89
      %p95 = scmp.eq.s32.totalorder %s12, 0
      %p96 = por %p94, %p95
      %p97 = scmp.ne.s32.totalorder %s86, %s89
      %p98 = scmp.eq.s32.totalorder %s17, 1
      %p99 = por %p97, %p98
      %p100 = scmp.ne.s32.totalorder %s89, %s90
      %p101 = scmp.eq.s32.totalorder %s17, 0
      %p102 = por %p100, %p101
      %p103 = scmp.ne.s32.totalorder %s89, %s90
      %p104 = scmp.eq.s32.totalorder %s18, 1
      %p105 = por %p103, %p104
      %p107 = scmp.ne.s32.totalorder %s90, %s106
      %p108 = scmp.eq.s32.totalorder %s18, 0
      %p109 = por %p107, %p108
      %s110 = ssub.s32 %s19, %s31
      %s111 = ssub.s32 %s20, %s27
      %s112 = sor.u32 %s110, %s111
      %p113 = scmp.eq.s32.totalorder %s112, 0
      %s115 = sadd.s32 %s114, 1
      %s116 = scalar_select %p113, %s114, %s115
      %p119 = pneg %p113
      %p120 = scmp.eq.s32.totalorder %s12, 1
      %p121 = por %p119, %p120
      %p122 = scmp.ne.s32.totalorder %s114, %s117
      %p123 = scmp.eq.s32.totalorder %s12, 0
      %p124 = por %p122, %p123
      %p125 = scmp.ne.s32.totalorder %s114, %s117
      %p126 = scmp.eq.s32.totalorder %s17, 1
      %p127 = por %p125, %p126
      %p128 = scmp.ne.s32.totalorder %s117, %s118
      %p129 = scmp.eq.s32.totalorder %s17, 0
      %p130 = por %p128, %p129
      %p131 = scmp.ne.s32.totalorder %s117, %s118
      %p132 = scmp.eq.s32.totalorder %s18, 1
      %p133 = por %p131, %p132
      %p135 = scmp.ne.s32.totalorder %s118, %s134
      %p136 = scmp.eq.s32.totalorder %s18, 0
      %p137 = por %p135, %p136
      %p138 = scmp.le.s32.totalorder 1, %s12
      %p139 = scmp.lt.s32.totalorder %s12, 3
      %p140 = pnand %p138, %p139
      %p141 = pneg %p140
      // Predicated region
      $region9: #{tpu_custom_call.1} parent=5 // pred_check
        _
      $region10: #{tpu_custom_call.1} parent=5 // pred_check_branch
        %143 = sbr.rel (%p140) target = $region12
      $region11: #{tpu_custom_call.1} parent=5 // pred_region
        %s144 = ssub.s32 %s12, 1
        // Predicated region
        $region13: #{tpu_custom_call.1} parent=11 // pred_check
          %p145 = pneg %p76
        $region14: #{tpu_custom_call.1} parent=11 // pred_check_branch
          %147 = sbr.rel (%p145) target = $region16
        $region15: #{tpu_custom_call.1} parent=11 // pred_region
          %p148 = scmp.lt.s32.totalorder %s22, 0
          %s149 = scalar_select %p148, %s22, 0
          %s150 = smul.addr %s149, 4
          %s151 = scalar_lea.vmem %s1, %s150
        $region16: #{tpu_custom_call.1} parent=11 // pred_fallthru
          _
        // Predicated region
        $region17: #{tpu_custom_call.1} parent=11 // pred_check
          %p152 = pneg %p102
        $region18: #{tpu_custom_call.1} parent=11 // pred_check_branch
          %154 = sbr.rel (%p152) target = $region20
        $region19: #{tpu_custom_call.1} parent=11 // pred_region
          %p155 = scmp.lt.s32.totalorder %s22, 0
          %s156 = scalar_select %p155, %s22, 0
          %s157 = scalar_lea.vmem %s2, %s156
        $region20: #{tpu_custom_call.1} parent=11 // pred_fallthru
          _
      $region12: #{tpu_custom_call.1} parent=5 // pred_fallthru
        _
      %p158 = scmp.lt.s32.totalorder %s12, 2
      // Predicated region
      $region21: #{tpu_custom_call.1} parent=5 // pred_check
        %p159 = pneg %p158
      $region22: #{tpu_custom_call.1} parent=5 // pred_check_branch
        %161 = sbr.rel (%p159) target = $region24
      $region23: #{tpu_custom_call.1} parent=5 // pred_region
        // Predicated region
        $region25: #{tpu_custom_call.1} parent=23 // pred_check
          %p162 = pneg %p44
        $region26: #{tpu_custom_call.1} parent=23 // pred_check_branch
          %164 = sbr.rel (%p162) target = $region28
        $region27: #{tpu_custom_call.1} parent=23 // pred_region
          %p165 = scmp.lt.s32.totalorder %s19, 1
          %s166 = scalar_select %p165, %s19, 1
          %s167 = smul.addr %s166, 41
          %s168 = smul.addr %s167, 8
          %s169 = scalar_lea.vmem %s0, %s168
        $region28: #{tpu_custom_call.1} parent=23 // pred_fallthru
          _
      $region24: #{tpu_custom_call.1} parent=5 // pred_fallthru
        _
      %p170 = scmp.le.s32.totalorder 1, %s12
      %p171 = scmp.lt.s32.totalorder %s12, 3
      %p172 = pnand %p170, %p171
      %p173 = pneg %p172
      // Predicated region
      $region29: #{tpu_custom_call.1} parent=5 // pred_check
        _
      $region30: #{tpu_custom_call.1} parent=5 // pred_check_branch
        %175 = sbr.rel (%p172) target = $region32
      $region31: #{tpu_custom_call.1} parent=5 // pred_region
        %s176 = ssub.s32 %s12, 1
        %p177 = scmp.lt.s32.totalorder %s21, 1
        %s178 = scalar_select %p177, %s21, 1
        %s179 = smul.addr %s178, 41
        %s180 = smul.addr %s179, 8
        %s181 = scalar_lea.vmem %s0, %s180
        %p182 = pneg %p50
        %p183 = pneg %p47
        %p184 = scmp.lt.s32.totalorder %s22, 0
        %s185 = scalar_select %p184, %s22, 0
        %s186 = smul.addr %s185, 4
        %s187 = scalar_lea.vmem %s1, %s186
        %p188 = pneg %p76
        %p189 = pneg %p73
        %p190 = scmp.lt.s32.totalorder %s22, 0
        %s191 = scalar_select %p190, %s22, 0
        %s192 = scalar_lea.vmem %s2, %s191
        %p193 = pneg %p102
        %p194 = pneg %p99
        %p195 = pneg %p130
        %p196 = pneg %p127
        %s197 = sand.u32 %s117, 1
        %s198 = scalar_lea.sflag [#allocation4], %s197
        %s199 = sand.u32 %s117, 1
        %s200 = smul.addr %s199, 288
        %s201 = scalar_lea.vmem [#allocation3], %s200
        %p202 = scmp.lt.s32.totalorder %s21, 1
        %s203 = scalar_select %p202, %s21, 1
        %s204 = smul.addr %s203, 41
        %s205 = smul.addr %s204, 8
        %s206 = scalar_lea.vmem %s0, %s205
        %p207 = scmp.lt.s32.totalorder %s22, 0
        %s208 = scalar_select %p207, %s22, 0
        %s209 = smul.addr %s208, 4
        %s210 = scalar_lea.vmem %s1, %s209
        %p211 = scmp.lt.s32.totalorder %s22, 0
        %s212 = scalar_select %p211, %s22, 0
        %s213 = scalar_lea.vmem %s2, %s212
        %v214 = vld [vmem:[%s206] sm:$0xff]
        %v215 = vld [vmem:[%s206 + $0x8] sm:$0xff]
        %v216 = vld [vmem:[%s206 + $0x10] sm:$0xff]
        %v217 = vld [vmem:[%s206 + $0x18] sm:$0xff]
        %v218 = vld [vmem:[%s206 + $0x20] sm:$0xff]
        %v219 = vld [vmem:[%s206 + $0x28] sm:$0xff]
        %v220 = vld [vmem:[%s206 + $0x30] sm:$0xff]
        %v221 = vld [vmem:[%s206 + $0x38] sm:$0xff]
        %v222 = vld [vmem:[%s206 + $0x40] sm:$0xff]
        %v223 = vld [vmem:[%s206 + $0x48] sm:$0xff]
        %v224 = vld [vmem:[%s206 + $0x50] sm:$0xff]
        %v225 = vld [vmem:[%s206 + $0x58] sm:$0xff]
        %v226 = vld [vmem:[%s206 + $0x60] sm:$0xff]
        %v227 = vld [vmem:[%s206 + $0x68] sm:$0xff]
        %v228 = vld [vmem:[%s206 + $0x70] sm:$0xff]
        %v229 = vld [vmem:[%s206 + $0x78] sm:$0xff]
        %v230 = vld [vmem:[%s206 + $0x80] sm:$0xff]
        %v231 = vld [vmem:[%s206 + $0x88] sm:$0xff]
        %v232 = vld [vmem:[%s206 + $0x90] sm:$0xff]
        %v233 = vld [vmem:[%s206 + $0x98] sm:$0xff]
        %v234 = vld [vmem:[%s206 + $0xa0] sm:$0xff]
        %v235 = vld [vmem:[%s206 + $0xa8] sm:$0xff]
        %v236 = vld [vmem:[%s206 + $0xb0] sm:$0xff]
        %v237 = vld [vmem:[%s206 + $0xb8] sm:$0xff]
        %v238 = vld [vmem:[%s206 + $0xc0] sm:$0xff]
        %v239 = vld [vmem:[%s206 + $0xc8] sm:$0xff]
        %v240 = vld [vmem:[%s206 + $0xd0] sm:$0xff]
        %v241 = vld [vmem:[%s206 + $0xd8] sm:$0xff]
        %v242 = vld [vmem:[%s206 + $0xe0] sm:$0xff]
        %v243 = vld [vmem:[%s206 + $0xe8] sm:$0xff]
        %v244 = vld [vmem:[%s206 + $0xf0] sm:$0xff]
        %v245 = vld [vmem:[%s206 + $0xf8] sm:$0xff]
        %v246 = vld [vmem:[%s206 + $0x100] sm:$0xff]
        %v247 = vld [vmem:[%s206 + $0x108] sm:$0xff]
        %v248 = vld [vmem:[%s206 + $0x110] sm:$0xff]
        %v249 = vld [vmem:[%s206 + $0x118] sm:$0xff]
        %v250 = vld [vmem:[%s210] sm:$0xf]
        %vm251 = vcmask 31744
        %v253 = vsel %vm251, %v214, 0
        %v256 = vsel %vm251, %v215, 0
        %v259 = vsel %vm251, %v216, 0
        %v262 = vsel %vm251, %v217, 0
        %v265 = vsel %vm251, %v218, 0
        %v268 = vsel %vm251, %v219, 0
        %v271 = vsel %vm251, %v220, 0
        %v274 = vsel %vm251, %v221, 0
        %v277 = vsel %vm251, %v222, 0
        %v280 = vsel %vm251, %v223, 0
        %v283 = vsel %vm251, %v224, 0
        %v286 = vsel %vm251, %v225, 0
        %v289 = vsel %vm251, %v226, 0
        %v292 = vsel %vm251, %v227, 0
        %v295 = vsel %vm251, %v228, 0
        %v298 = vsel %vm251, %v229, 0
        %v301 = vsel %vm251, %v230, 0
        %v304 = vsel %vm251, %v231, 0
        %v307 = vsel %vm251, %v232, 0
        %v310 = vsel %vm251, %v233, 0
        %v313 = vsel %vm251, %v234, 0
        %v316 = vsel %vm251, %v235, 0
        %v319 = vsel %vm251, %v236, 0
        %v322 = vsel %vm251, %v237, 0
        %v325 = vsel %vm251, %v238, 0
        %v328 = vsel %vm251, %v239, 0
        %v331 = vsel %vm251, %v240, 0
        %v334 = vsel %vm251, %v241, 0
        %v337 = vsel %vm251, %v242, 0
        %v340 = vsel %vm251, %v243, 0
        %v343 = vsel %vm251, %v244, 0
        %v346 = vsel %vm251, %v245, 0
        %v349 = vsel %vm251, %v246, 0
        %v352 = vsel %vm251, %v247, 0
        %v355 = vsel %vm251, %v248, 0
        %v358 = vsel %vm251, %v249, 0
        %vm360 = vcmask 1043456
        %v362 = vsel %vm360, %v250, 0
        %364 = vmatprep.subr.mxu0 0.0
        %365 = vmatpush1.msra.mxu0 0.0
        %366 = vmatprep.subr.mxu0 0.0
        %367 = vmatpush1.msra.mxu0 0.0
        %368 = vmatprep.subr.mxu0 0.0
        %369 = vmatpush1.msra.mxu0 0.0
        %370 = vmatprep.subr.mxu0 0.0
        %371 = vmatpush1.msra.mxu0 0.0
        %372 = vmatprep.subr.mxu0 0.0
        %373 = vmatpush1.msra.mxu0 0.0
        %374 = vmatprep.subr.mxu0 0.0
        %375 = vmatpush1.msra.mxu0 0.0
        %376 = vmatprep.subr.mxu0 0.0
        %377 = vmatpush1.msra.mxu0 0.0
        %378 = vmatprep.subr.mxu0 0.0
        %379 = vmatpush1.msra.mxu0 0.0
        %380 = vmatprep.subr.mxu0 0.0
        %381 = vmatpush1.msra.mxu0 0.0
        %382 = vmatprep.subr.mxu0 0.0
        %383 = vmatpush1.msra.mxu0 0.0
        %384 = vmatprep.subr.mxu0 0.0
        %385 = vmatpush1.msra.mxu0 0.0
        %386 = vmatprep.subr.mxu0 0.0
        %387 = vmatpush1.msra.mxu0 0.0
        %388 = vmatprep.subr.mxu0 0.0
        %389 = vmatpush1.msra.mxu0 0.0
        %390 = vmatprep.subr.mxu0 0.0
        %391 = vmatpush1.msra.mxu0 0.0
        %392 = vmatprep.subr.mxu0 0.0
        %393 = vmatpush1.msra.mxu0 0.0
        %394 = vmatprep.subr.mxu0 0.0
        %395 = vmatpush1.msra.mxu0 %v362
        %396 = vmatprep.subr.mxu0 0.0
        %397 = vmatpush2.msra.mxu0 0.0
        %398 = vmatprep.subr.mxu0 0.0
        %399 = vmatpush2.msra.mxu0 0.0
        %400 = vmatprep.subr.mxu0 0.0
        %401 = vmatpush2.msra.mxu0 0.0
        %402 = vmatprep.subr.mxu0 0.0
        %403 = vmatpush2.msra.mxu0 0.0
        %404 = vmatprep.subr.mxu0 0.0
        %405 = vmatpush2.msra.mxu0 0.0
        %406 = vmatprep.subr.mxu0 0.0
        %407 = vmatpush2.msra.mxu0 0.0
        %408 = vmatprep.subr.mxu0 0.0
        %409 = vmatpush2.msra.mxu0 0.0
        %410 = vmatprep.subr.mxu0 0.0
        %411 = vmatpush2.msra.mxu0 0.0
        %412 = vmatprep.subr.mxu0 0.0
        %413 = vmatpush2.msra.mxu0 0.0
        %414 = vmatprep.subr.mxu0 0.0
        %415 = vmatpush2.msra.mxu0 0.0
        %416 = vmatprep.subr.mxu0 0.0
        %417 = vmatpush2.msra.mxu0 0.0
        %418 = vmatprep.subr.mxu0 0.0
        %419 = vmatpush2.msra.mxu0 0.0
        %420 = vmatprep.subr.mxu0 0.0
        %421 = vmatpush2.msra.mxu0 0.0
        %422 = vmatprep.subr.mxu0 0.0
        %423 = vmatpush2.msra.mxu0 0.0
        %424 = vmatprep.subr.mxu0 0.0
        %425 = vmatpush2.msra.mxu0 0.0
        %426 = vmatprep.subr.mxu0 0.0
        %427 = vmatpush2.msra.mxu0 0.0
        %428 = vmatprep.mubr.f32.mxu0 0.0
        %429 = vmatmul.mubr.f32.gmra.mxu0 %v253
        %v430 = vpop.f32.mrf.mxu0
        %v431 = vadd.f32 0.0, %v430
        %v432 = vpop.f32.mrf.mxu0
        %433 = vmatprep.mubr.f32.mxu0 0.0
        %434 = vmatmul.mubr.f32.gmra.mxu0 %v256
        %v435 = vpop.f32.mrf.mxu0
        %v436 = vadd.f32 0.0, %v435
        %v437 = vpop.f32.mrf.mxu0
        %438 = vmatprep.mubr.f32.mxu0 0.0
        %439 = vmatmul.mubr.f32.gmra.mxu0 %v259
        %v440 = vpop.f32.mrf.mxu0
        %v441 = vadd.f32 0.0, %v440
        %v442 = vpop.f32.mrf.mxu0
        %443 = vmatprep.mubr.f32.mxu0 0.0
        %444 = vmatmul.mubr.f32.gmra.mxu0 %v262
        %v445 = vpop.f32.mrf.mxu0
        %v446 = vadd.f32 0.0, %v445
        %v447 = vpop.f32.mrf.mxu0
        %448 = vmatprep.mubr.f32.mxu0 0.0
        %449 = vmatmul.mubr.f32.gmra.mxu0 %v265
        %v450 = vpop.f32.mrf.mxu0
        %v451 = vadd.f32 0.0, %v450
        %v452 = vpop.f32.mrf.mxu0
        %453 = vmatprep.mubr.f32.mxu0 0.0
        %454 = vmatmul.mubr.f32.gmra.mxu0 %v268
        %v455 = vpop.f32.mrf.mxu0
        %v456 = vadd.f32 0.0, %v455
        %v457 = vpop.f32.mrf.mxu0
        %458 = vmatprep.mubr.f32.mxu0 0.0
        %459 = vmatmul.mubr.f32.gmra.mxu0 %v271
        %v460 = vpop.f32.mrf.mxu0
        %v461 = vadd.f32 0.0, %v460
        %v462 = vpop.f32.mrf.mxu0
        %463 = vmatprep.mubr.f32.mxu0 0.0
        %464 = vmatmul.mubr.f32.gmra.mxu0 %v274
        %v465 = vpop.f32.mrf.mxu0
        %v466 = vadd.f32 0.0, %v465
        %v467 = vpop.f32.mrf.mxu0
        %468 = vmatprep.mubr.f32.mxu0 0.0
        %469 = vmatmul.mubr.f32.gmra.mxu0 %v277
        %v470 = vpop.f32.mrf.mxu0
        %v471 = vadd.f32 0.0, %v470
        %v472 = vpop.f32.mrf.mxu0
        %473 = vmatprep.mubr.f32.mxu0 0.0
        %474 = vmatmul.mubr.f32.gmra.mxu0 %v280
        %v475 = vpop.f32.mrf.mxu0
        %v476 = vadd.f32 0.0, %v475
        %v477 = vpop.f32.mrf.mxu0
        %478 = vmatprep.mubr.f32.mxu0 0.0
        %479 = vmatmul.mubr.f32.gmra.mxu0 %v283
        %v480 = vpop.f32.mrf.mxu0
        %v481 = vadd.f32 0.0, %v480
        %v482 = vpop.f32.mrf.mxu0
        %483 = vmatprep.mubr.f32.mxu0 0.0
        %484 = vmatmul.mubr.f32.gmra.mxu0 %v286
        %v485 = vpop.f32.mrf.mxu0
        %v486 = vadd.f32 0.0, %v485
        %v487 = vpop.f32.mrf.mxu0
        %488 = vmatprep.mubr.f32.mxu0 0.0
        %489 = vmatmul.mubr.f32.gmra.mxu0 %v289
        %v490 = vpop.f32.mrf.mxu0
        %v491 = vadd.f32 0.0, %v490
        %v492 = vpop.f32.mrf.mxu0
        %493 = vmatprep.mubr.f32.mxu0 0.0
        %494 = vmatmul.mubr.f32.gmra.mxu0 %v292
        %v495 = vpop.f32.mrf.mxu0
        %v496 = vadd.f32 0.0, %v495
        %v497 = vpop.f32.mrf.mxu0
        %498 = vmatprep.mubr.f32.mxu0 0.0
        %499 = vmatmul.mubr.f32.gmra.mxu0 %v295
        %v500 = vpop.f32.mrf.mxu0
        %v501 = vadd.f32 0.0, %v500
        %v502 = vpop.f32.mrf.mxu0
        %503 = vmatprep.mubr.f32.mxu0 0.0
        %504 = vmatmul.mubr.f32.gmra.mxu0 %v298
        %v505 = vpop.f32.mrf.mxu0
        %v506 = vadd.f32 0.0, %v505
        %v507 = vpop.f32.mrf.mxu0
        %508 = vmatprep.mubr.f32.mxu0 0.0
        %509 = vmatmul.mubr.f32.gmra.mxu0 %v301
        %v510 = vpop.f32.mrf.mxu0
        %v511 = vadd.f32 0.0, %v510
        %v512 = vpop.f32.mrf.mxu0
        %513 = vmatprep.mubr.f32.mxu0 0.0
        %514 = vmatmul.mubr.f32.gmra.mxu0 %v304
        %v515 = vpop.f32.mrf.mxu0
        %v516 = vadd.f32 0.0, %v515
        %v517 = vpop.f32.mrf.mxu0
        %518 = vmatprep.mubr.f32.mxu0 0.0
        %519 = vmatmul.mubr.f32.gmra.mxu0 %v307
        %v520 = vpop.f32.mrf.mxu0
        %v521 = vadd.f32 0.0, %v520
        %v522 = vpop.f32.mrf.mxu0
        %523 = vmatprep.mubr.f32.mxu0 0.0
        %524 = vmatmul.mubr.f32.gmra.mxu0 %v310
        %v525 = vpop.f32.mrf.mxu0
        %v526 = vadd.f32 0.0, %v525
        %v527 = vpop.f32.mrf.mxu0
        %528 = vmatprep.mubr.f32.mxu0 0.0
        %529 = vmatmul.mubr.f32.gmra.mxu0 %v313
        %v530 = vpop.f32.mrf.mxu0
        %v531 = vadd.f32 0.0, %v530
        %v532 = vpop.f32.mrf.mxu0
        %533 = vmatprep.mubr.f32.mxu0 0.0
        %534 = vmatmul.mubr.f32.gmra.mxu0 %v316
        %v535 = vpop.f32.mrf.mxu0
        %v536 = vadd.f32 0.0, %v535
        %v537 = vpop.f32.mrf.mxu0
        %538 = vmatprep.mubr.f32.mxu0 0.0
        %539 = vmatmul.mubr.f32.gmra.mxu0 %v319
        %v540 = vpop.f32.mrf.mxu0
        %v541 = vadd.f32 0.0, %v540
        %v542 = vpop.f32.mrf.mxu0
        %543 = vmatprep.mubr.f32.mxu0 0.0
        %544 = vmatmul.mubr.f32.gmra.mxu0 %v322
        %v545 = vpop.f32.mrf.mxu0
        %v546 = vadd.f32 0.0, %v545
        %v547 = vpop.f32.mrf.mxu0
        %548 = vmatprep.mubr.f32.mxu0 0.0
        %549 = vmatmul.mubr.f32.gmra.mxu0 %v325
        %v550 = vpop.f32.mrf.mxu0
        %v551 = vadd.f32 0.0, %v550
        %v552 = vpop.f32.mrf.mxu0
        %553 = vmatprep.mubr.f32.mxu0 0.0
        %554 = vmatmul.mubr.f32.gmra.mxu0 %v328
        %v555 = vpop.f32.mrf.mxu0
        %v556 = vadd.f32 0.0, %v555
        %v557 = vpop.f32.mrf.mxu0
        %558 = vmatprep.mubr.f32.mxu0 0.0
        %559 = vmatmul.mubr.f32.gmra.mxu0 %v331
        %v560 = vpop.f32.mrf.mxu0
        %v561 = vadd.f32 0.0, %v560
        %v562 = vpop.f32.mrf.mxu0
        %563 = vmatprep.mubr.f32.mxu0 0.0
        %564 = vmatmul.mubr.f32.gmra.mxu0 %v334
        %v565 = vpop.f32.mrf.mxu0
        %v566 = vadd.f32 0.0, %v565
        %v567 = vpop.f32.mrf.mxu0
        %568 = vmatprep.mubr.f32.mxu0 0.0
        %569 = vmatmul.mubr.f32.gmra.mxu0 %v337
        %v570 = vpop.f32.mrf.mxu0
        %v571 = vadd.f32 0.0, %v570
        %v572 = vpop.f32.mrf.mxu0
        %573 = vmatprep.mubr.f32.mxu0 0.0
        %574 = vmatmul.mubr.f32.gmra.mxu0 %v340
        %v575 = vpop.f32.mrf.mxu0
        %v576 = vadd.f32 0.0, %v575
        %v577 = vpop.f32.mrf.mxu0
        %578 = vmatprep.mubr.f32.mxu0 0.0
        %579 = vmatmul.mubr.f32.gmra.mxu0 %v343
        %v580 = vpop.f32.mrf.mxu0
        %v581 = vadd.f32 0.0, %v580
        %v582 = vpop.f32.mrf.mxu0
        %583 = vmatprep.mubr.f32.mxu0 0.0
        %584 = vmatmul.mubr.f32.gmra.mxu0 %v346
        %v585 = vpop.f32.mrf.mxu0
        %v586 = vadd.f32 0.0, %v585
        %v587 = vpop.f32.mrf.mxu0
        %588 = vmatprep.mubr.f32.mxu0 0.0
        %589 = vmatmul.mubr.f32.gmra.mxu0 %v349
        %v590 = vpop.f32.mrf.mxu0
        %v591 = vadd.f32 0.0, %v590
        %v592 = vpop.f32.mrf.mxu0
        %593 = vmatprep.mubr.f32.mxu0 0.0
        %594 = vmatmul.mubr.f32.gmra.mxu0 %v352
        %v595 = vpop.f32.mrf.mxu0
        %v596 = vadd.f32 0.0, %v595
        %v597 = vpop.f32.mrf.mxu0
        %598 = vmatprep.mubr.f32.mxu0 0.0
        %599 = vmatmul.mubr.f32.gmra.mxu0 %v355
        %v600 = vpop.f32.mrf.mxu0
        %v601 = vadd.f32 0.0, %v600
        %v602 = vpop.f32.mrf.mxu0
        %603 = vmatprep.mubr.f32.mxu0 0.0
        %604 = vmatmul.mubr.f32.gmra.mxu0 %v358
        %v605 = vpop.f32.mrf.mxu0
        %v606 = vadd.f32 0.0, %v605
        %v607 = vpop.f32.mrf.mxu0
        %608 = vdwg.mxu0
        %609 = vst [vmem:[#allocation2] sm:$0xff] %v431
        %610 = vst [vmem:[#allocation2 + $0x8] sm:$0xff] %v436
        %611 = vst [vmem:[#allocation2 + $0x10] sm:$0xff] %v441
        %612 = vst [vmem:[#allocation2 + $0x18] sm:$0xff] %v446
        %613 = vst [vmem:[#allocation2 + $0x20] sm:$0xff] %v451
        %614 = vst [vmem:[#allocation2 + $0x28] sm:$0xff] %v456
        %615 = vst [vmem:[#allocation2 + $0x30] sm:$0xff] %v461
        %616 = vst [vmem:[#allocation2 + $0x38] sm:$0xff] %v466
        %617 = vst [vmem:[#allocation2 + $0x40] sm:$0xff] %v471
        %618 = vst [vmem:[#allocation2 + $0x48] sm:$0xff] %v476
        %619 = vst [vmem:[#allocation2 + $0x50] sm:$0xff] %v481
        %620 = vst [vmem:[#allocation2 + $0x58] sm:$0xff] %v486
        %621 = vst [vmem:[#allocation2 + $0x60] sm:$0xff] %v491
        %622 = vst [vmem:[#allocation2 + $0x68] sm:$0xff] %v496
        %623 = vst [vmem:[#allocation2 + $0x70] sm:$0xff] %v501
        %624 = vst [vmem:[#allocation2 + $0x78] sm:$0xff] %v506
        %625 = vst [vmem:[#allocation2 + $0x80] sm:$0xff] %v511
        %626 = vst [vmem:[#allocation2 + $0x88] sm:$0xff] %v516
        %627 = vst [vmem:[#allocation2 + $0x90] sm:$0xff] %v521
        %628 = vst [vmem:[#allocation2 + $0x98] sm:$0xff] %v526
        %629 = vst [vmem:[#allocation2 + $0xa0] sm:$0xff] %v531
        %630 = vst [vmem:[#allocation2 + $0xa8] sm:$0xff] %v536
        %631 = vst [vmem:[#allocation2 + $0xb0] sm:$0xff] %v541
        %632 = vst [vmem:[#allocation2 + $0xb8] sm:$0xff] %v546
        %633 = vst [vmem:[#allocation2 + $0xc0] sm:$0xff] %v551
        %634 = vst [vmem:[#allocation2 + $0xc8] sm:$0xff] %v556
        %635 = vst [vmem:[#allocation2 + $0xd0] sm:$0xff] %v561
        %636 = vst [vmem:[#allocation2 + $0xd8] sm:$0xff] %v566
        %637 = vst [vmem:[#allocation2 + $0xe0] sm:$0xff] %v571
        %638 = vst [vmem:[#allocation2 + $0xe8] sm:$0xff] %v576
        %639 = vst [vmem:[#allocation2 + $0xf0] sm:$0xff] %v581
        %640 = vst [vmem:[#allocation2 + $0xf8] sm:$0xff] %v586
        %641 = vst [vmem:[#allocation2 + $0x100] sm:$0xff] %v591
        %642 = vst [vmem:[#allocation2 + $0x108] sm:$0xff] %v596
        %643 = vst [vmem:[#allocation2 + $0x110] sm:$0xff] %v601
        %644 = vst [vmem:[#allocation2 + $0x118] sm:$0xff] %v606
        %v645 = vld [vmem:[%s206 + $0x1] sm:$0xff]
        %v646 = vld [vmem:[%s206 + $0x9] sm:$0xff]
        %v647 = vld [vmem:[%s206 + $0x11] sm:$0xff]
        %v648 = vld [vmem:[%s206 + $0x19] sm:$0xff]
        %v649 = vld [vmem:[%s206 + $0x21] sm:$0xff]
        %v650 = vld [vmem:[%s206 + $0x29] sm:$0xff]
        %v651 = vld [vmem:[%s206 + $0x31] sm:$0xff]
        %v652 = vld [vmem:[%s206 + $0x39] sm:$0xff]
        %v653 = vld [vmem:[%s206 + $0x41] sm:$0xff]
        %v654 = vld [vmem:[%s206 + $0x49] sm:$0xff]
        %v655 = vld [vmem:[%s206 + $0x51] sm:$0xff]
        %v656 = vld [vmem:[%s206 + $0x59] sm:$0xff]
        %v657 = vld [vmem:[%s206 + $0x61] sm:$0xff]
        %v658 = vld [vmem:[%s206 + $0x69] sm:$0xff]
        %v659 = vld [vmem:[%s206 + $0x71] sm:$0xff]
        %v660 = vld [vmem:[%s206 + $0x79] sm:$0xff]
        %v661 = vld [vmem:[%s206 + $0x81] sm:$0xff]
        %v662 = vld [vmem:[%s206 + $0x89] sm:$0xff]
        %v663 = vld [vmem:[%s206 + $0x91] sm:$0xff]
        %v664 = vld [vmem:[%s206 + $0x99] sm:$0xff]
        %v665 = vld [vmem:[%s206 + $0xa1] sm:$0xff]
        %v666 = vld [vmem:[%s206 + $0xa9] sm:$0xff]
        %v667 = vld [vmem:[%s206 + $0xb1] sm:$0xff]
        %v668 = vld [vmem:[%s206 + $0xb9] sm:$0xff]
        %v669 = vld [vmem:[%s206 + $0xc1] sm:$0xff]
        %v670 = vld [vmem:[%s206 + $0xc9] sm:$0xff]
        %v671 = vld [vmem:[%s206 + $0xd1] sm:$0xff]
        %v672 = vld [vmem:[%s206 + $0xd9] sm:$0xff]
        %v673 = vld [vmem:[%s206 + $0xe1] sm:$0xff]
        %v674 = vld [vmem:[%s206 + $0xe9] sm:$0xff]
        %v675 = vld [vmem:[%s206 + $0xf1] sm:$0xff]
        %v676 = vld [vmem:[%s206 + $0xf9] sm:$0xff]
        %v677 = vld [vmem:[%s206 + $0x101] sm:$0xff]
        %v678 = vld [vmem:[%s206 + $0x109] sm:$0xff]
        %v679 = vld [vmem:[%s206 + $0x111] sm:$0xff]
        %v680 = vld [vmem:[%s206 + $0x119] sm:$0xff]
        %s681 = scalar_lea.vmem %s210, 4
        %v682 = vld [vmem:[%s681] sm:$0xf]
        %v684 = vsel %vm251, %v645, 0
        %v687 = vsel %vm251, %v646, 0
        %v690 = vsel %vm251, %v647, 0
        %v693 = vsel %vm251, %v648, 0
        %v696 = vsel %vm251, %v649, 0
        %v699 = vsel %vm251, %v650, 0
        %v702 = vsel %vm251, %v651, 0
        %v705 = vsel %vm251, %v652, 0
        %v708 = vsel %vm251, %v653, 0
        %v711 = vsel %vm251, %v654, 0
        %v714 = vsel %vm251, %v655, 0
        %v717 = vsel %vm251, %v656, 0
        %v720 = vsel %vm251, %v657, 0
        %v723 = vsel %vm251, %v658, 0
        %v726 = vsel %vm251, %v659, 0
        %v729 = vsel %vm251, %v660, 0
        %v732 = vsel %vm251, %v661, 0
        %v735 = vsel %vm251, %v662, 0
        %v738 = vsel %vm251, %v663, 0
        %v741 = vsel %vm251, %v664, 0
        %v744 = vsel %vm251, %v665, 0
        %v747 = vsel %vm251, %v666, 0
        %v750 = vsel %vm251, %v667, 0
        %v753 = vsel %vm251, %v668, 0
        %v756 = vsel %vm251, %v669, 0
        %v759 = vsel %vm251, %v670, 0
        %v762 = vsel %vm251, %v671, 0
        %v765 = vsel %vm251, %v672, 0
        %v768 = vsel %vm251, %v673, 0
        %v771 = vsel %vm251, %v674, 0
        %v774 = vsel %vm251, %v675, 0
        %v777 = vsel %vm251, %v676, 0
        %v780 = vsel %vm251, %v677, 0
        %v783 = vsel %vm251, %v678, 0
        %v786 = vsel %vm251, %v679, 0
        %v789 = vsel %vm251, %v680, 0
        %v792 = vsel %vm360, %v682, 0
        %794 = vmatprep.subr.mxu0 0.0
        %795 = vmatpush1.msra.mxu0 0.0
        %796 = vmatprep.subr.mxu0 0.0
        %797 = vmatpush1.msra.mxu0 0.0
        %798 = vmatprep.subr.mxu0 0.0
        %799 = vmatpush1.msra.mxu0 0.0
        %800 = vmatprep.subr.mxu0 0.0
        %801 = vmatpush1.msra.mxu0 0.0
        %802 = vmatprep.subr.mxu0 0.0
        %803 = vmatpush1.msra.mxu0 0.0
        %804 = vmatprep.subr.mxu0 0.0
        %805 = vmatpush1.msra.mxu0 0.0
        %806 = vmatprep.subr.mxu0 0.0
        %807 = vmatpush1.msra.mxu0 0.0
        %808 = vmatprep.subr.mxu0 0.0
        %809 = vmatpush1.msra.mxu0 0.0
        %810 = vmatprep.subr.mxu0 0.0
        %811 = vmatpush1.msra.mxu0 0.0
        %812 = vmatprep.subr.mxu0 0.0
        %813 = vmatpush1.msra.mxu0 0.0
        %814 = vmatprep.subr.mxu0 0.0
        %815 = vmatpush1.msra.mxu0 0.0
        %816 = vmatprep.subr.mxu0 0.0
        %817 = vmatpush1.msra.mxu0 0.0
        %818 = vmatprep.subr.mxu0 0.0
        %819 = vmatpush1.msra.mxu0 0.0
        %820 = vmatprep.subr.mxu0 0.0
        %821 = vmatpush1.msra.mxu0 0.0
        %822 = vmatprep.subr.mxu0 0.0
        %823 = vmatpush1.msra.mxu0 0.0
        %824 = vmatprep.subr.mxu0 0.0
        %825 = vmatpush1.msra.mxu0 %v792
        %826 = vmatprep.subr.mxu0 0.0
        %827 = vmatpush2.msra.mxu0 0.0
        %828 = vmatprep.subr.mxu0 0.0
        %829 = vmatpush2.msra.mxu0 0.0
        %830 = vmatprep.subr.mxu0 0.0
        %831 = vmatpush2.msra.mxu0 0.0
        %832 = vmatprep.subr.mxu0 0.0
        %833 = vmatpush2.msra.mxu0 0.0
        %834 = vmatprep.subr.mxu0 0.0
        %835 = vmatpush2.msra.mxu0 0.0
        %836 = vmatprep.subr.mxu0 0.0
        %837 = vmatpush2.msra.mxu0 0.0
        %838 = vmatprep.subr.mxu0 0.0
        %839 = vmatpush2.msra.mxu0 0.0
        %840 = vmatprep.subr.mxu0 0.0
        %841 = vmatpush2.msra.mxu0 0.0
        %842 = vmatprep.subr.mxu0 0.0
        %843 = vmatpush2.msra.mxu0 0.0
        %844 = vmatprep.subr.mxu0 0.0
        %845 = vmatpush2.msra.mxu0 0.0
        %846 = vmatprep.subr.mxu0 0.0
        %847 = vmatpush2.msra.mxu0 0.0
        %848 = vmatprep.subr.mxu0 0.0
        %849 = vmatpush2.msra.mxu0 0.0
        %850 = vmatprep.subr.mxu0 0.0
        %851 = vmatpush2.msra.mxu0 0.0
        %852 = vmatprep.subr.mxu0 0.0
        %853 = vmatpush2.msra.mxu0 0.0
        %854 = vmatprep.subr.mxu0 0.0
        %855 = vmatpush2.msra.mxu0 0.0
        %856 = vmatprep.subr.mxu0 0.0
        %857 = vmatpush2.msra.mxu0 0.0
        %858 = vmatprep.mubr.f32.mxu0 0.0
        %859 = vmatmul.mubr.f32.gmra.mxu0 %v684
        %v860 = vpop.f32.mrf.mxu0
        %v861 = vadd.f32 0.0, %v860
        %v862 = vpop.f32.mrf.mxu0
        %863 = vmatprep.mubr.f32.mxu0 0.0
        %864 = vmatmul.mubr.f32.gmra.mxu0 %v687
        %v865 = vpop.f32.mrf.mxu0
        %v866 = vadd.f32 0.0, %v865
        %v867 = vpop.f32.mrf.mxu0
        %868 = vmatprep.mubr.f32.mxu0 0.0
        %869 = vmatmul.mubr.f32.gmra.mxu0 %v690
        %v870 = vpop.f32.mrf.mxu0
        %v871 = vadd.f32 0.0, %v870
        %v872 = vpop.f32.mrf.mxu0
        %873 = vmatprep.mubr.f32.mxu0 0.0
        %874 = vmatmul.mubr.f32.gmra.mxu0 %v693
        %v875 = vpop.f32.mrf.mxu0
        %v876 = vadd.f32 0.0, %v875
        %v877 = vpop.f32.mrf.mxu0
        %878 = vmatprep.mubr.f32.mxu0 0.0
        %879 = vmatmul.mubr.f32.gmra.mxu0 %v696
        %v880 = vpop.f32.mrf.mxu0
        %v881 = vadd.f32 0.0, %v880
        %v882 = vpop.f32.mrf.mxu0
        %883 = vmatprep.mubr.f32.mxu0 0.0
        %884 = vmatmul.mubr.f32.gmra.mxu0 %v699
        %v885 = vpop.f32.mrf.mxu0
        %v886 = vadd.f32 0.0, %v885
        %v887 = vpop.f32.mrf.mxu0
        %888 = vmatprep.mubr.f32.mxu0 0.0
        %889 = vmatmul.mubr.f32.gmra.mxu0 %v702
        %v890 = vpop.f32.mrf.mxu0
        %v891 = vadd.f32 0.0, %v890
        %v892 = vpop.f32.mrf.mxu0
        %893 = vmatprep.mubr.f32.mxu0 0.0
        %894 = vmatmul.mubr.f32.gmra.mxu0 %v705
        %v895 = vpop.f32.mrf.mxu0
        %v896 = vadd.f32 0.0, %v895
        %v897 = vpop.f32.mrf.mxu0
        %898 = vmatprep.mubr.f32.mxu0 0.0
        %899 = vmatmul.mubr.f32.gmra.mxu0 %v708
        %v900 = vpop.f32.mrf.mxu0
        %v901 = vadd.f32 0.0, %v900
        %v902 = vpop.f32.mrf.mxu0
        %903 = vmatprep.mubr.f32.mxu0 0.0
        %904 = vmatmul.mubr.f32.gmra.mxu0 %v711
        %v905 = vpop.f32.mrf.mxu0
        %v906 = vadd.f32 0.0, %v905
        %v907 = vpop.f32.mrf.mxu0
        %908 = vmatprep.mubr.f32.mxu0 0.0
        %909 = vmatmul.mubr.f32.gmra.mxu0 %v714
        %v910 = vpop.f32.mrf.mxu0
        %v911 = vadd.f32 0.0, %v910
        %v912 = vpop.f32.mrf.mxu0
        %913 = vmatprep.mubr.f32.mxu0 0.0
        %914 = vmatmul.mubr.f32.gmra.mxu0 %v717
        %v915 = vpop.f32.mrf.mxu0
        %v916 = vadd.f32 0.0, %v915
        %v917 = vpop.f32.mrf.mxu0
        %918 = vmatprep.mubr.f32.mxu0 0.0
        %919 = vmatmul.mubr.f32.gmra.mxu0 %v720
        %v920 = vpop.f32.mrf.mxu0
        %v921 = vadd.f32 0.0, %v920
        %v922 = vpop.f32.mrf.mxu0
        %923 = vmatprep.mubr.f32.mxu0 0.0
        %924 = vmatmul.mubr.f32.gmra.mxu0 %v723
        %v925 = vpop.f32.mrf.mxu0
        %v926 = vadd.f32 0.0, %v925
        %v927 = vpop.f32.mrf.mxu0
        %928 = vmatprep.mubr.f32.mxu0 0.0
        %929 = vmatmul.mubr.f32.gmra.mxu0 %v726
        %v930 = vpop.f32.mrf.mxu0
        %v931 = vadd.f32 0.0, %v930
        %v932 = vpop.f32.mrf.mxu0
        %933 = vmatprep.mubr.f32.mxu0 0.0
        %934 = vmatmul.mubr.f32.gmra.mxu0 %v729
        %v935 = vpop.f32.mrf.mxu0
        %v936 = vadd.f32 0.0, %v935
        %v937 = vpop.f32.mrf.mxu0
        %938 = vmatprep.mubr.f32.mxu0 0.0
        %939 = vmatmul.mubr.f32.gmra.mxu0 %v732
        %v940 = vpop.f32.mrf.mxu0
        %v941 = vadd.f32 0.0, %v940
        %v942 = vpop.f32.mrf.mxu0
        %943 = vmatprep.mubr.f32.mxu0 0.0
        %944 = vmatmul.mubr.f32.gmra.mxu0 %v735
        %v945 = vpop.f32.mrf.mxu0
        %v946 = vadd.f32 0.0, %v945
        %v947 = vpop.f32.mrf.mxu0
        %948 = vmatprep.mubr.f32.mxu0 0.0
        %949 = vmatmul.mubr.f32.gmra.mxu0 %v738
        %v950 = vpop.f32.mrf.mxu0
        %v951 = vadd.f32 0.0, %v950
        %v952 = vpop.f32.mrf.mxu0
        %953 = vmatprep.mubr.f32.mxu0 0.0
        %954 = vmatmul.mubr.f32.gmra.mxu0 %v741
        %v955 = vpop.f32.mrf.mxu0
        %v956 = vadd.f32 0.0, %v955
        %v957 = vpop.f32.mrf.mxu0
        %958 = vmatprep.mubr.f32.mxu0 0.0
        %959 = vmatmul.mubr.f32.gmra.mxu0 %v744
        %v960 = vpop.f32.mrf.mxu0
        %v961 = vadd.f32 0.0, %v960
        %v962 = vpop.f32.mrf.mxu0
        %963 = vmatprep.mubr.f32.mxu0 0.0
        %964 = vmatmul.mubr.f32.gmra.mxu0 %v747
        %v965 = vpop.f32.mrf.mxu0
        %v966 = vadd.f32 0.0, %v965
        %v967 = vpop.f32.mrf.mxu0
        %968 = vmatprep.mubr.f32.mxu0 0.0
        %969 = vmatmul.mubr.f32.gmra.mxu0 %v750
        %v970 = vpop.f32.mrf.mxu0
        %v971 = vadd.f32 0.0, %v970
        %v972 = vpop.f32.mrf.mxu0
        %973 = vmatprep.mubr.f32.mxu0 0.0
        %974 = vmatmul.mubr.f32.gmra.mxu0 %v753
        %v975 = vpop.f32.mrf.mxu0
        %v976 = vadd.f32 0.0, %v975
        %v977 = vpop.f32.mrf.mxu0
        %978 = vmatprep.mubr.f32.mxu0 0.0
        %979 = vmatmul.mubr.f32.gmra.mxu0 %v756
        %v980 = vpop.f32.mrf.mxu0
        %v981 = vadd.f32 0.0, %v980
        %v982 = vpop.f32.mrf.mxu0
        %983 = vmatprep.mubr.f32.mxu0 0.0
        %984 = vmatmul.mubr.f32.gmra.mxu0 %v759
        %v985 = vpop.f32.mrf.mxu0
        %v986 = vadd.f32 0.0, %v985
        %v987 = vpop.f32.mrf.mxu0
        %988 = vmatprep.mubr.f32.mxu0 0.0
        %989 = vmatmul.mubr.f32.gmra.mxu0 %v762
        %v990 = vpop.f32.mrf.mxu0
        %v991 = vadd.f32 0.0, %v990
        %v992 = vpop.f32.mrf.mxu0
        %993 = vmatprep.mubr.f32.mxu0 0.0
        %994 = vmatmul.mubr.f32.gmra.mxu0 %v765
        %v995 = vpop.f32.mrf.mxu0
        %v996 = vadd.f32 0.0, %v995
        %v997 = vpop.f32.mrf.mxu0
        %998 = vmatprep.mubr.f32.mxu0 0.0
        %999 = vmatmul.mubr.f32.gmra.mxu0 %v768
        %v1000 = vpop.f32.mrf.mxu0
        %v1001 = vadd.f32 0.0, %v1000
        %v1002 = vpop.f32.mrf.mxu0
        %1003 = vmatprep.mubr.f32.mxu0 0.0
        %1004 = vmatmul.mubr.f32.gmra.mxu0 %v771
        %v1005 = vpop.f32.mrf.mxu0
        %v1006 = vadd.f32 0.0, %v1005
        %v1007 = vpop.f32.mrf.mxu0
        %1008 = vmatprep.mubr.f32.mxu0 0.0
        %1009 = vmatmul.mubr.f32.gmra.mxu0 %v774
        %v1010 = vpop.f32.mrf.mxu0
        %v1011 = vadd.f32 0.0, %v1010
        %v1012 = vpop.f32.mrf.mxu0
        %1013 = vmatprep.mubr.f32.mxu0 0.0
        %1014 = vmatmul.mubr.f32.gmra.mxu0 %v777
        %v1015 = vpop.f32.mrf.mxu0
        %v1016 = vadd.f32 0.0, %v1015
        %v1017 = vpop.f32.mrf.mxu0
        %1018 = vmatprep.mubr.f32.mxu0 0.0
        %1019 = vmatmul.mubr.f32.gmra.mxu0 %v780
        %v1020 = vpop.f32.mrf.mxu0
        %v1021 = vadd.f32 0.0, %v1020
        %v1022 = vpop.f32.mrf.mxu0
        %1023 = vmatprep.mubr.f32.mxu0 0.0
        %1024 = vmatmul.mubr.f32.gmra.mxu0 %v783
        %v1025 = vpop.f32.mrf.mxu0
        %v1026 = vadd.f32 0.0, %v1025
        %v1027 = vpop.f32.mrf.mxu0
        %1028 = vmatprep.mubr.f32.mxu0 0.0
        %1029 = vmatmul.mubr.f32.gmra.mxu0 %v786
        %v1030 = vpop.f32.mrf.mxu0
        %v1031 = vadd.f32 0.0, %v1030
        %v1032 = vpop.f32.mrf.mxu0
        %1033 = vmatprep.mubr.f32.mxu0 0.0
        %1034 = vmatmul.mubr.f32.gmra.mxu0 %v789
        %v1035 = vpop.f32.mrf.mxu0
        %v1036 = vadd.f32 0.0, %v1035
        %v1037 = vpop.f32.mrf.mxu0
        %1038 = vdwg.mxu0
        %v1039 = vld [vmem:[#allocation2] sm:$0xff]
        %v1040 = vld [vmem:[#allocation2 + $0x8] sm:$0xff]
        %v1041 = vld [vmem:[#allocation2 + $0x10] sm:$0xff]
        %v1042 = vld [vmem:[#allocation2 + $0x18] sm:$0xff]
        %v1043 = vld [vmem:[#allocation2 + $0x20] sm:$0xff]
        %v1044 = vld [vmem:[#allocation2 + $0x28] sm:$0xff]
        %v1045 = vld [vmem:[#allocation2 + $0x30] sm:$0xff]
        %v1046 = vld [vmem:[#allocation2 + $0x38] sm:$0xff]
        %v1047 = vld [vmem:[#allocation2 + $0x40] sm:$0xff]
        %v1048 = vld [vmem:[#allocation2 + $0x48] sm:$0xff]
        %v1049 = vld [vmem:[#allocation2 + $0x50] sm:$0xff]
        %v1050 = vld [vmem:[#allocation2 + $0x58] sm:$0xff]
        %v1051 = vld [vmem:[#allocation2 + $0x60] sm:$0xff]
        %v1052 = vld [vmem:[#allocation2 + $0x68] sm:$0xff]
        %v1053 = vld [vmem:[#allocation2 + $0x70] sm:$0xff]
        %v1054 = vld [vmem:[#allocation2 + $0x78] sm:$0xff]
        %v1055 = vld [vmem:[#allocation2 + $0x80] sm:$0xff]
        %v1056 = vld [vmem:[#allocation2 + $0x88] sm:$0xff]
        %v1057 = vld [vmem:[#allocation2 + $0x90] sm:$0xff]
        %v1058 = vld [vmem:[#allocation2 + $0x98] sm:$0xff]
        %v1059 = vld [vmem:[#allocation2 + $0xa0] sm:$0xff]
        %v1060 = vld [vmem:[#allocation2 + $0xa8] sm:$0xff]
        %v1061 = vld [vmem:[#allocation2 + $0xb0] sm:$0xff]
        %v1062 = vld [vmem:[#allocation2 + $0xb8] sm:$0xff]
        %v1063 = vld [vmem:[#allocation2 + $0xc0] sm:$0xff]
        %v1064 = vld [vmem:[#allocation2 + $0xc8] sm:$0xff]
        %v1065 = vld [vmem:[#allocation2 + $0xd0] sm:$0xff]
        %v1066 = vld [vmem:[#allocation2 + $0xd8] sm:$0xff]
        %v1067 = vld [vmem:[#allocation2 + $0xe0] sm:$0xff]
        %v1068 = vld [vmem:[#allocation2 + $0xe8] sm:$0xff]
        %v1069 = vld [vmem:[#allocation2 + $0xf0] sm:$0xff]
        %v1070 = vld [vmem:[#allocation2 + $0xf8] sm:$0xff]
        %v1071 = vld [vmem:[#allocation2 + $0x100] sm:$0xff]
        %v1072 = vld [vmem:[#allocation2 + $0x108] sm:$0xff]
        %v1073 = vld [vmem:[#allocation2 + $0x110] sm:$0xff]
        %v1074 = vld [vmem:[#allocation2 + $0x118] sm:$0xff]
        %v1075 = vadd.f32 %v1039, %v861
        %v1076 = vadd.f32 %v1040, %v866
        %v1077 = vadd.f32 %v1041, %v871
        %v1078 = vadd.f32 %v1042, %v876
        %v1079 = vadd.f32 %v1043, %v881
        %v1080 = vadd.f32 %v1044, %v886
        %v1081 = vadd.f32 %v1045, %v891
        %v1082 = vadd.f32 %v1046, %v896
        %v1083 = vadd.f32 %v1047, %v901
        %v1084 = vadd.f32 %v1048, %v906
        %v1085 = vadd.f32 %v1049, %v911
        %v1086 = vadd.f32 %v1050, %v916
        %v1087 = vadd.f32 %v1051, %v921
        %v1088 = vadd.f32 %v1052, %v926
        %v1089 = vadd.f32 %v1053, %v931
        %v1090 = vadd.f32 %v1054, %v936
        %v1091 = vadd.f32 %v1055, %v941
        %v1092 = vadd.f32 %v1056, %v946
        %v1093 = vadd.f32 %v1057, %v951
        %v1094 = vadd.f32 %v1058, %v956
        %v1095 = vadd.f32 %v1059, %v961
        %v1096 = vadd.f32 %v1060, %v966
        %v1097 = vadd.f32 %v1061, %v971
        %v1098 = vadd.f32 %v1062, %v976
        %v1099 = vadd.f32 %v1063, %v981
        %v1100 = vadd.f32 %v1064, %v986
        %v1101 = vadd.f32 %v1065, %v991
        %v1102 = vadd.f32 %v1066, %v996
        %v1103 = vadd.f32 %v1067, %v1001
        %v1104 = vadd.f32 %v1068, %v1006
        %v1105 = vadd.f32 %v1069, %v1011
        %v1106 = vadd.f32 %v1070, %v1016
        %v1107 = vadd.f32 %v1071, %v1021
        %v1108 = vadd.f32 %v1072, %v1026
        %v1109 = vadd.f32 %v1073, %v1031
        %v1110 = vadd.f32 %v1074, %v1036
        %1111 = vst [vmem:[#allocation2] sm:$0xff] %v1075
        %1112 = vst [vmem:[#allocation2 + $0x8] sm:$0xff] %v1076
        %1113 = vst [vmem:[#allocation2 + $0x10] sm:$0xff] %v1077
        %1114 = vst [vmem:[#allocation2 + $0x18] sm:$0xff] %v1078
        %1115 = vst [vmem:[#allocation2 + $0x20] sm:$0xff] %v1079
        %1116 = vst [vmem:[#allocation2 + $0x28] sm:$0xff] %v1080
        %1117 = vst [vmem:[#allocation2 + $0x30] sm:$0xff] %v1081
        %1118 = vst [vmem:[#allocation2 + $0x38] sm:$0xff] %v1082
        %1119 = vst [vmem:[#allocation2 + $0x40] sm:$0xff] %v1083
        %1120 = vst [vmem:[#allocation2 + $0x48] sm:$0xff] %v1084
        %1121 = vst [vmem:[#allocation2 + $0x50] sm:$0xff] %v1085
        %1122 = vst [vmem:[#allocation2 + $0x58] sm:$0xff] %v1086
        %1123 = vst [vmem:[#allocation2 + $0x60] sm:$0xff] %v1087
        %1124 = vst [vmem:[#allocation2 + $0x68] sm:$0xff] %v1088
        %1125 = vst [vmem:[#allocation2 + $0x70] sm:$0xff] %v1089
        %1126 = vst [vmem:[#allocation2 + $0x78] sm:$0xff] %v1090
        %1127 = vst [vmem:[#allocation2 + $0x80] sm:$0xff] %v1091
        %1128 = vst [vmem:[#allocation2 + $0x88] sm:$0xff] %v1092
        %1129 = vst [vmem:[#allocation2 + $0x90] sm:$0xff] %v1093
        %1130 = vst [vmem:[#allocation2 + $0x98] sm:$0xff] %v1094
        %1131 = vst [vmem:[#allocation2 + $0xa0] sm:$0xff] %v1095
        %1132 = vst [vmem:[#allocation2 + $0xa8] sm:$0xff] %v1096
        %1133 = vst [vmem:[#allocation2 + $0xb0] sm:$0xff] %v1097
        %1134 = vst [vmem:[#allocation2 + $0xb8] sm:$0xff] %v1098
        %1135 = vst [vmem:[#allocation2 + $0xc0] sm:$0xff] %v1099
        %1136 = vst [vmem:[#allocation2 + $0xc8] sm:$0xff] %v1100
        %1137 = vst [vmem:[#allocation2 + $0xd0] sm:$0xff] %v1101
        %1138 = vst [vmem:[#allocation2 + $0xd8] sm:$0xff] %v1102
        %1139 = vst [vmem:[#allocation2 + $0xe0] sm:$0xff] %v1103
        %1140 = vst [vmem:[#allocation2 + $0xe8] sm:$0xff] %v1104
        %1141 = vst [vmem:[#allocation2 + $0xf0] sm:$0xff] %v1105
        %1142 = vst [vmem:[#allocation2 + $0xf8] sm:$0xff] %v1106
        %1143 = vst [vmem:[#allocation2 + $0x100] sm:$0xff] %v1107
        %1144 = vst [vmem:[#allocation2 + $0x108] sm:$0xff] %v1108
        %1145 = vst [vmem:[#allocation2 + $0x110] sm:$0xff] %v1109
        %1146 = vst [vmem:[#allocation2 + $0x118] sm:$0xff] %v1110
        %v1147 = vld [vmem:[%s206 + $0x2] sm:$0xff]
        %v1148 = vld [vmem:[%s206 + $0xa] sm:$0xff]
        %v1149 = vld [vmem:[%s206 + $0x12] sm:$0xff]
        %v1150 = vld [vmem:[%s206 + $0x1a] sm:$0xff]
        %v1151 = vld [vmem:[%s206 + $0x22] sm:$0xff]
        %v1152 = vld [vmem:[%s206 + $0x2a] sm:$0xff]
        %v1153 = vld [vmem:[%s206 + $0x32] sm:$0xff]
        %v1154 = vld [vmem:[%s206 + $0x3a] sm:$0xff]
        %v1155 = vld [vmem:[%s206 + $0x42] sm:$0xff]
        %v1156 = vld [vmem:[%s206 + $0x4a] sm:$0xff]
        %v1157 = vld [vmem:[%s206 + $0x52] sm:$0xff]
        %v1158 = vld [vmem:[%s206 + $0x5a] sm:$0xff]
        %v1159 = vld [vmem:[%s206 + $0x62] sm:$0xff]
        %v1160 = vld [vmem:[%s206 + $0x6a] sm:$0xff]
        %v1161 = vld [vmem:[%s206 + $0x72] sm:$0xff]
        %v1162 = vld [vmem:[%s206 + $0x7a] sm:$0xff]
        %v1163 = vld [vmem:[%s206 + $0x82] sm:$0xff]
        %v1164 = vld [vmem:[%s206 + $0x8a] sm:$0xff]
        %v1165 = vld [vmem:[%s206 + $0x92] sm:$0xff]
        %v1166 = vld [vmem:[%s206 + $0x9a] sm:$0xff]
        %v1167 = vld [vmem:[%s206 + $0xa2] sm:$0xff]
        %v1168 = vld [vmem:[%s206 + $0xaa] sm:$0xff]
        %v1169 = vld [vmem:[%s206 + $0xb2] sm:$0xff]
        %v1170 = vld [vmem:[%s206 + $0xba] sm:$0xff]
        %v1171 = vld [vmem:[%s206 + $0xc2] sm:$0xff]
        %v1172 = vld [vmem:[%s206 + $0xca] sm:$0xff]
        %v1173 = vld [vmem:[%s206 + $0xd2] sm:$0xff]
        %v1174 = vld [vmem:[%s206 + $0xda] sm:$0xff]
        %v1175 = vld [vmem:[%s206 + $0xe2] sm:$0xff]
        %v1176 = vld [vmem:[%s206 + $0xea] sm:$0xff]
        %v1177 = vld [vmem:[%s206 + $0xf2] sm:$0xff]
        %v1178 = vld [vmem:[%s206 + $0xfa] sm:$0xff]
        %v1179 = vld [vmem:[%s206 + $0x102] sm:$0xff]
        %v1180 = vld [vmem:[%s206 + $0x10a] sm:$0xff]
        %v1181 = vld [vmem:[%s206 + $0x112] sm:$0xff]
        %v1182 = vld [vmem:[%s206 + $0x11a] sm:$0xff]
        %s1183 = scalar_lea.vmem %s210, 8
        %v1184 = vld [vmem:[%s1183] sm:$0xf]
        %v1186 = vsel %vm251, %v1147, 0
        %v1189 = vsel %vm251, %v1148, 0
        %v1192 = vsel %vm251, %v1149, 0
        %v1195 = vsel %vm251, %v1150, 0
        %v1198 = vsel %vm251, %v1151, 0
        %v1201 = vsel %vm251, %v1152, 0
        %v1204 = vsel %vm251, %v1153, 0
        %v1207 = vsel %vm251, %v1154, 0
        %v1210 = vsel %vm251, %v1155, 0
        %v1213 = vsel %vm251, %v1156, 0
        %v1216 = vsel %vm251, %v1157, 0
        %v1219 = vsel %vm251, %v1158, 0
        %v1222 = vsel %vm251, %v1159, 0
        %v1225 = vsel %vm251, %v1160, 0
        %v1228 = vsel %vm251, %v1161, 0
        %v1231 = vsel %vm251, %v1162, 0
        %v1234 = vsel %vm251, %v1163, 0
        %v1237 = vsel %vm251, %v1164, 0
        %v1240 = vsel %vm251, %v1165, 0
        %v1243 = vsel %vm251, %v1166, 0
        %v1246 = vsel %vm251, %v1167, 0
        %v1249 = vsel %vm251, %v1168, 0
        %v1252 = vsel %vm251, %v1169, 0
        %v1255 = vsel %vm251, %v1170, 0
        %v1258 = vsel %vm251, %v1171, 0
        %v1261 = vsel %vm251, %v1172, 0
        %v1264 = vsel %vm251, %v1173, 0
        %v1267 = vsel %vm251, %v1174, 0
        %v1270 = vsel %vm251, %v1175, 0
        %v1273 = vsel %vm251, %v1176, 0
        %v1276 = vsel %vm251, %v1177, 0
        %v1279 = vsel %vm251, %v1178, 0
        %v1282 = vsel %vm251, %v1179, 0
        %v1285 = vsel %vm251, %v1180, 0
        %v1288 = vsel %vm251, %v1181, 0
        %v1291 = vsel %vm251, %v1182, 0
        %v1294 = vsel %vm360, %v1184, 0
        %1296 = vmatprep.subr.mxu0 0.0
        %1297 = vmatpush1.msra.mxu0 0.0
        %1298 = vmatprep.subr.mxu0 0.0
        %1299 = vmatpush1.msra.mxu0 0.0
        %1300 = vmatprep.subr.mxu0 0.0
        %1301 = vmatpush1.msra.mxu0 0.0
        %1302 = vmatprep.subr.mxu0 0.0
        %1303 = vmatpush1.msra.mxu0 0.0
        %1304 = vmatprep.subr.mxu0 0.0
        %1305 = vmatpush1.msra.mxu0 0.0
        %1306 = vmatprep.subr.mxu0 0.0
        %1307 = vmatpush1.msra.mxu0 0.0
        %1308 = vmatprep.subr.mxu0 0.0
        %1309 = vmatpush1.msra.mxu0 0.0
        %1310 = vmatprep.subr.mxu0 0.0
        %1311 = vmatpush1.msra.mxu0 0.0
        %1312 = vmatprep.subr.mxu0 0.0
        %1313 = vmatpush1.msra.mxu0 0.0
        %1314 = vmatprep.subr.mxu0 0.0
        %1315 = vmatpush1.msra.mxu0 0.0
        %1316 = vmatprep.subr.mxu0 0.0
        %1317 = vmatpush1.msra.mxu0 0.0
        %1318 = vmatprep.subr.mxu0 0.0
        %1319 = vmatpush1.msra.mxu0 0.0
        %1320 = vmatprep.subr.mxu0 0.0
        %1321 = vmatpush1.msra.mxu0 0.0
        %1322 = vmatprep.subr.mxu0 0.0
        %1323 = vmatpush1.msra.mxu0 0.0
        %1324 = vmatprep.subr.mxu0 0.0
        %1325 = vmatpush1.msra.mxu0 0.0
        %1326 = vmatprep.subr.mxu0 0.0
        %1327 = vmatpush1.msra.mxu0 %v1294
        %1328 = vmatprep.subr.mxu0 0.0
        %1329 = vmatpush2.msra.mxu0 0.0
        %1330 = vmatprep.subr.mxu0 0.0
        %1331 = vmatpush2.msra.mxu0 0.0
        %1332 = vmatprep.subr.mxu0 0.0
        %1333 = vmatpush2.msra.mxu0 0.0
        %1334 = vmatprep.subr.mxu0 0.0
        %1335 = vmatpush2.msra.mxu0 0.0
        %1336 = vmatprep.subr.mxu0 0.0
        %1337 = vmatpush2.msra.mxu0 0.0
        %1338 = vmatprep.subr.mxu0 0.0
        %1339 = vmatpush2.msra.mxu0 0.0
        %1340 = vmatprep.subr.mxu0 0.0
        %1341 = vmatpush2.msra.mxu0 0.0
        %1342 = vmatprep.subr.mxu0 0.0
        %1343 = vmatpush2.msra.mxu0 0.0
        %1344 = vmatprep.subr.mxu0 0.0
        %1345 = vmatpush2.msra.mxu0 0.0
        %1346 = vmatprep.subr.mxu0 0.0
        %1347 = vmatpush2.msra.mxu0 0.0
        %1348 = vmatprep.subr.mxu0 0.0
        %1349 = vmatpush2.msra.mxu0 0.0
        %1350 = vmatprep.subr.mxu0 0.0
        %1351 = vmatpush2.msra.mxu0 0.0
        %1352 = vmatprep.subr.mxu0 0.0
        %1353 = vmatpush2.msra.mxu0 0.0
        %1354 = vmatprep.subr.mxu0 0.0
        %1355 = vmatpush2.msra.mxu0 0.0
        %1356 = vmatprep.subr.mxu0 0.0
        %1357 = vmatpush2.msra.mxu0 0.0
        %1358 = vmatprep.subr.mxu0 0.0
        %1359 = vmatpush2.msra.mxu0 0.0
        %1360 = vmatprep.mubr.f32.mxu0 0.0
        %1361 = vmatmul.mubr.f32.gmra.mxu0 %v1186
        %v1362 = vpop.f32.mrf.mxu0
        %v1363 = vadd.f32 0.0, %v1362
        %v1364 = vpop.f32.mrf.mxu0
        %1365 = vmatprep.mubr.f32.mxu0 0.0
        %1366 = vmatmul.mubr.f32.gmra.mxu0 %v1189
        %v1367 = vpop.f32.mrf.mxu0
        %v1368 = vadd.f32 0.0, %v1367
        %v1369 = vpop.f32.mrf.mxu0
        %1370 = vmatprep.mubr.f32.mxu0 0.0
        %1371 = vmatmul.mubr.f32.gmra.mxu0 %v1192
        %v1372 = vpop.f32.mrf.mxu0
        %v1373 = vadd.f32 0.0, %v1372
        %v1374 = vpop.f32.mrf.mxu0
        %1375 = vmatprep.mubr.f32.mxu0 0.0
        %1376 = vmatmul.mubr.f32.gmra.mxu0 %v1195
        %v1377 = vpop.f32.mrf.mxu0
        %v1378 = vadd.f32 0.0, %v1377
        %v1379 = vpop.f32.mrf.mxu0
        %1380 = vmatprep.mubr.f32.mxu0 0.0
        %1381 = vmatmul.mubr.f32.gmra.mxu0 %v1198
        %v1382 = vpop.f32.mrf.mxu0
        %v1383 = vadd.f32 0.0, %v1382
        %v1384 = vpop.f32.mrf.mxu0
        %1385 = vmatprep.mubr.f32.mxu0 0.0
        %1386 = vmatmul.mubr.f32.gmra.mxu0 %v1201
        %v1387 = vpop.f32.mrf.mxu0
        %v1388 = vadd.f32 0.0, %v1387
        %v1389 = vpop.f32.mrf.mxu0
        %1390 = vmatprep.mubr.f32.mxu0 0.0
        %1391 = vmatmul.mubr.f32.gmra.mxu0 %v1204
        %v1392 = vpop.f32.mrf.mxu0
        %v1393 = vadd.f32 0.0, %v1392
        %v1394 = vpop.f32.mrf.mxu0
        %1395 = vmatprep.mubr.f32.mxu0 0.0
        %1396 = vmatmul.mubr.f32.gmra.mxu0 %v1207
        %v1397 = vpop.f32.mrf.mxu0
        %v1398 = vadd.f32 0.0, %v1397
        %v1399 = vpop.f32.mrf.mxu0
        %1400 = vmatprep.mubr.f32.mxu0 0.0
        %1401 = vmatmul.mubr.f32.gmra.mxu0 %v1210
        %v1402 = vpop.f32.mrf.mxu0
        %v1403 = vadd.f32 0.0, %v1402
        %v1404 = vpop.f32.mrf.mxu0
        %1405 = vmatprep.mubr.f32.mxu0 0.0
        %1406 = vmatmul.mubr.f32.gmra.mxu0 %v1213
        %v1407 = vpop.f32.mrf.mxu0
        %v1408 = vadd.f32 0.0, %v1407
        %v1409 = vpop.f32.mrf.mxu0
        %1410 = vmatprep.mubr.f32.mxu0 0.0
        %1411 = vmatmul.mubr.f32.gmra.mxu0 %v1216
        %v1412 = vpop.f32.mrf.mxu0
        %v1413 = vadd.f32 0.0, %v1412
        %v1414 = vpop.f32.mrf.mxu0
        %1415 = vmatprep.mubr.f32.mxu0 0.0
        %1416 = vmatmul.mubr.f32.gmra.mxu0 %v1219
        %v1417 = vpop.f32.mrf.mxu0
        %v1418 = vadd.f32 0.0, %v1417
        %v1419 = vpop.f32.mrf.mxu0
        %1420 = vmatprep.mubr.f32.mxu0 0.0
        %1421 = vmatmul.mubr.f32.gmra.mxu0 %v1222
        %v1422 = vpop.f32.mrf.mxu0
        %v1423 = vadd.f32 0.0, %v1422
        %v1424 = vpop.f32.mrf.mxu0
        %1425 = vmatprep.mubr.f32.mxu0 0.0
        %1426 = vmatmul.mubr.f32.gmra.mxu0 %v1225
        %v1427 = vpop.f32.mrf.mxu0
        %v1428 = vadd.f32 0.0, %v1427
        %v1429 = vpop.f32.mrf.mxu0
        %1430 = vmatprep.mubr.f32.mxu0 0.0
        %1431 = vmatmul.mubr.f32.gmra.mxu0 %v1228
        %v1432 = vpop.f32.mrf.mxu0
        %v1433 = vadd.f32 0.0, %v1432
        %v1434 = vpop.f32.mrf.mxu0
        %1435 = vmatprep.mubr.f32.mxu0 0.0
        %1436 = vmatmul.mubr.f32.gmra.mxu0 %v1231
        %v1437 = vpop.f32.mrf.mxu0
        %v1438 = vadd.f32 0.0, %v1437
        %v1439 = vpop.f32.mrf.mxu0
        %1440 = vmatprep.mubr.f32.mxu0 0.0
        %1441 = vmatmul.mubr.f32.gmra.mxu0 %v1234
        %v1442 = vpop.f32.mrf.mxu0
        %v1443 = vadd.f32 0.0, %v1442
        %v1444 = vpop.f32.mrf.mxu0
        %1445 = vmatprep.mubr.f32.mxu0 0.0
        %1446 = vmatmul.mubr.f32.gmra.mxu0 %v1237
        %v1447 = vpop.f32.mrf.mxu0
        %v1448 = vadd.f32 0.0, %v1447
        %v1449 = vpop.f32.mrf.mxu0
        %1450 = vmatprep.mubr.f32.mxu0 0.0
        %1451 = vmatmul.mubr.f32.gmra.mxu0 %v1240
        %v1452 = vpop.f32.mrf.mxu0
        %v1453 = vadd.f32 0.0, %v1452
        %v1454 = vpop.f32.mrf.mxu0
        %1455 = vmatprep.mubr.f32.mxu0 0.0
        %1456 = vmatmul.mubr.f32.gmra.mxu0 %v1243
        %v1457 = vpop.f32.mrf.mxu0
        %v1458 = vadd.f32 0.0, %v1457
        %v1459 = vpop.f32.mrf.mxu0
        %1460 = vmatprep.mubr.f32.mxu0 0.0
        %1461 = vmatmul.mubr.f32.gmra.mxu0 %v1246
        %v1462 = vpop.f32.mrf.mxu0
        %v1463 = vadd.f32 0.0, %v1462
        %v1464 = vpop.f32.mrf.mxu0
        %1465 = vmatprep.mubr.f32.mxu0 0.0
        %1466 = vmatmul.mubr.f32.gmra.mxu0 %v1249
        %v1467 = vpop.f32.mrf.mxu0
        %v1468 = vadd.f32 0.0, %v1467
        %v1469 = vpop.f32.mrf.mxu0
        %1470 = vmatprep.mubr.f32.mxu0 0.0
        %1471 = vmatmul.mubr.f32.gmra.mxu0 %v1252
        %v1472 = vpop.f32.mrf.mxu0
        %v1473 = vadd.f32 0.0, %v1472
        %v1474 = vpop.f32.mrf.mxu0
        %1475 = vmatprep.mubr.f32.mxu0 0.0
        %1476 = vmatmul.mubr.f32.gmra.mxu0 %v1255
        %v1477 = vpop.f32.mrf.mxu0
        %v1478 = vadd.f32 0.0, %v1477
        %v1479 = vpop.f32.mrf.mxu0
        %1480 = vmatprep.mubr.f32.mxu0 0.0
        %1481 = vmatmul.mubr.f32.gmra.mxu0 %v1258
        %v1482 = vpop.f32.mrf.mxu0
        %v1483 = vadd.f32 0.0, %v1482
        %v1484 = vpop.f32.mrf.mxu0
        %1485 = vmatprep.mubr.f32.mxu0 0.0
        %1486 = vmatmul.mubr.f32.gmra.mxu0 %v1261
        %v1487 = vpop.f32.mrf.mxu0
        %v1488 = vadd.f32 0.0, %v1487
        %v1489 = vpop.f32.mrf.mxu0
        %1490 = vmatprep.mubr.f32.mxu0 0.0
        %1491 = vmatmul.mubr.f32.gmra.mxu0 %v1264
        %v1492 = vpop.f32.mrf.mxu0
        %v1493 = vadd.f32 0.0, %v1492
        %v1494 = vpop.f32.mrf.mxu0
        %1495 = vmatprep.mubr.f32.mxu0 0.0
        %1496 = vmatmul.mubr.f32.gmra.mxu0 %v1267
        %v1497 = vpop.f32.mrf.mxu0
        %v1498 = vadd.f32 0.0, %v1497
        %v1499 = vpop.f32.mrf.mxu0
        %1500 = vmatprep.mubr.f32.mxu0 0.0
        %1501 = vmatmul.mubr.f32.gmra.mxu0 %v1270
        %v1502 = vpop.f32.mrf.mxu0
        %v1503 = vadd.f32 0.0, %v1502
        %v1504 = vpop.f32.mrf.mxu0
        %1505 = vmatprep.mubr.f32.mxu0 0.0
        %1506 = vmatmul.mubr.f32.gmra.mxu0 %v1273
        %v1507 = vpop.f32.mrf.mxu0
        %v1508 = vadd.f32 0.0, %v1507
        %v1509 = vpop.f32.mrf.mxu0
        %1510 = vmatprep.mubr.f32.mxu0 0.0
        %1511 = vmatmul.mubr.f32.gmra.mxu0 %v1276
        %v1512 = vpop.f32.mrf.mxu0
        %v1513 = vadd.f32 0.0, %v1512
        %v1514 = vpop.f32.mrf.mxu0
        %1515 = vmatprep.mubr.f32.mxu0 0.0
        %1516 = vmatmul.mubr.f32.gmra.mxu0 %v1279
        %v1517 = vpop.f32.mrf.mxu0
        %v1518 = vadd.f32 0.0, %v1517
        %v1519 = vpop.f32.mrf.mxu0
        %1520 = vmatprep.mubr.f32.mxu0 0.0
        %1521 = vmatmul.mubr.f32.gmra.mxu0 %v1282
        %v1522 = vpop.f32.mrf.mxu0
        %v1523 = vadd.f32 0.0, %v1522
        %v1524 = vpop.f32.mrf.mxu0
        %1525 = vmatprep.mubr.f32.mxu0 0.0
        %1526 = vmatmul.mubr.f32.gmra.mxu0 %v1285
        %v1527 = vpop.f32.mrf.mxu0
        %v1528 = vadd.f32 0.0, %v1527
        %v1529 = vpop.f32.mrf.mxu0
        %1530 = vmatprep.mubr.f32.mxu0 0.0
        %1531 = vmatmul.mubr.f32.gmra.mxu0 %v1288
        %v1532 = vpop.f32.mrf.mxu0
        %v1533 = vadd.f32 0.0, %v1532
        %v1534 = vpop.f32.mrf.mxu0
        %1535 = vmatprep.mubr.f32.mxu0 0.0
        %1536 = vmatmul.mubr.f32.gmra.mxu0 %v1291
        %v1537 = vpop.f32.mrf.mxu0
        %v1538 = vadd.f32 0.0, %v1537
        %v1539 = vpop.f32.mrf.mxu0
        %1540 = vdwg.mxu0
        %v1541 = vld [vmem:[#allocation2] sm:$0xff]
        %v1542 = vld [vmem:[#allocation2 + $0x8] sm:$0xff]
        %v1543 = vld [vmem:[#allocation2 + $0x10] sm:$0xff]
        %v1544 = vld [vmem:[#allocation2 + $0x18] sm:$0xff]
        %v1545 = vld [vmem:[#allocation2 + $0x20] sm:$0xff]
        %v1546 = vld [vmem:[#allocation2 + $0x28] sm:$0xff]
        %v1547 = vld [vmem:[#allocation2 + $0x30] sm:$0xff]
        %v1548 = vld [vmem:[#allocation2 + $0x38] sm:$0xff]
        %v1549 = vld [vmem:[#allocation2 + $0x40] sm:$0xff]
        %v1550 = vld [vmem:[#allocation2 + $0x48] sm:$0xff]
        %v1551 = vld [vmem:[#allocation2 + $0x50] sm:$0xff]
        %v1552 = vld [vmem:[#allocation2 + $0x58] sm:$0xff]
        %v1553 = vld [vmem:[#allocation2 + $0x60] sm:$0xff]
        %v1554 = vld [vmem:[#allocation2 + $0x68] sm:$0xff]
        %v1555 = vld [vmem:[#allocation2 + $0x70] sm:$0xff]
        %v1556 = vld [vmem:[#allocation2 + $0x78] sm:$0xff]
        %v1557 = vld [vmem:[#allocation2 + $0x80] sm:$0xff]
        %v1558 = vld [vmem:[#allocation2 + $0x88] sm:$0xff]
        %v1559 = vld [vmem:[#allocation2 + $0x90] sm:$0xff]
        %v1560 = vld [vmem:[#allocation2 + $0x98] sm:$0xff]
        %v1561 = vld [vmem:[#allocation2 + $0xa0] sm:$0xff]
        %v1562 = vld [vmem:[#allocation2 + $0xa8] sm:$0xff]
        %v1563 = vld [vmem:[#allocation2 + $0xb0] sm:$0xff]
        %v1564 = vld [vmem:[#allocation2 + $0xb8] sm:$0xff]
        %v1565 = vld [vmem:[#allocation2 + $0xc0] sm:$0xff]
        %v1566 = vld [vmem:[#allocation2 + $0xc8] sm:$0xff]
        %v1567 = vld [vmem:[#allocation2 + $0xd0] sm:$0xff]
        %v1568 = vld [vmem:[#allocation2 + $0xd8] sm:$0xff]
        %v1569 = vld [vmem:[#allocation2 + $0xe0] sm:$0xff]
        %v1570 = vld [vmem:[#allocation2 + $0xe8] sm:$0xff]
        %v1571 = vld [vmem:[#allocation2 + $0xf0] sm:$0xff]
        %v1572 = vld [vmem:[#allocation2 + $0xf8] sm:$0xff]
        %v1573 = vld [vmem:[#allocation2 + $0x100] sm:$0xff]
        %v1574 = vld [vmem:[#allocation2 + $0x108] sm:$0xff]
        %v1575 = vld [vmem:[#allocation2 + $0x110] sm:$0xff]
        %v1576 = vld [vmem:[#allocation2 + $0x118] sm:$0xff]
        %v1577 = vadd.f32 %v1541, %v1363
        %v1578 = vadd.f32 %v1542, %v1368
        %v1579 = vadd.f32 %v1543, %v1373
        %v1580 = vadd.f32 %v1544, %v1378
        %v1581 = vadd.f32 %v1545, %v1383
        %v1582 = vadd.f32 %v1546, %v1388
        %v1583 = vadd.f32 %v1547, %v1393
        %v1584 = vadd.f32 %v1548, %v1398
        %v1585 = vadd.f32 %v1549, %v1403
        %v1586 = vadd.f32 %v1550, %v1408
        %v1587 = vadd.f32 %v1551, %v1413
        %v1588 = vadd.f32 %v1552, %v1418
        %v1589 = vadd.f32 %v1553, %v1423
        %v1590 = vadd.f32 %v1554, %v1428
        %v1591 = vadd.f32 %v1555, %v1433
        %v1592 = vadd.f32 %v1556, %v1438
        %v1593 = vadd.f32 %v1557, %v1443
        %v1594 = vadd.f32 %v1558, %v1448
        %v1595 = vadd.f32 %v1559, %v1453
        %v1596 = vadd.f32 %v1560, %v1458
        %v1597 = vadd.f32 %v1561, %v1463
        %v1598 = vadd.f32 %v1562, %v1468
        %v1599 = vadd.f32 %v1563, %v1473
        %v1600 = vadd.f32 %v1564, %v1478
        %v1601 = vadd.f32 %v1565, %v1483
        %v1602 = vadd.f32 %v1566, %v1488
        %v1603 = vadd.f32 %v1567, %v1493
        %v1604 = vadd.f32 %v1568, %v1498
        %v1605 = vadd.f32 %v1569, %v1503
        %v1606 = vadd.f32 %v1570, %v1508
        %v1607 = vadd.f32 %v1571, %v1513
        %v1608 = vadd.f32 %v1572, %v1518
        %v1609 = vadd.f32 %v1573, %v1523
        %v1610 = vadd.f32 %v1574, %v1528
        %v1611 = vadd.f32 %v1575, %v1533
        %v1612 = vadd.f32 %v1576, %v1538
        %1613 = vst [vmem:[#allocation2] sm:$0xff] %v1577
        %1614 = vst [vmem:[#allocation2 + $0x8] sm:$0xff] %v1578
        %1615 = vst [vmem:[#allocation2 + $0x10] sm:$0xff] %v1579
        %1616 = vst [vmem:[#allocation2 + $0x18] sm:$0xff] %v1580
        %1617 = vst [vmem:[#allocation2 + $0x20] sm:$0xff] %v1581
        %1618 = vst [vmem:[#allocation2 + $0x28] sm:$0xff] %v1582
        %1619 = vst [vmem:[#allocation2 + $0x30] sm:$0xff] %v1583
        %1620 = vst [vmem:[#allocation2 + $0x38] sm:$0xff] %v1584
        %1621 = vst [vmem:[#allocation2 + $0x40] sm:$0xff] %v1585
        %1622 = vst [vmem:[#allocation2 + $0x48] sm:$0xff] %v1586
        %1623 = vst [vmem:[#allocation2 + $0x50] sm:$0xff] %v1587
        %1624 = vst [vmem:[#allocation2 + $0x58] sm:$0xff] %v1588
        %1625 = vst [vmem:[#allocation2 + $0x60] sm:$0xff] %v1589
        %1626 = vst [vmem:[#allocation2 + $0x68] sm:$0xff] %v1590
        %1627 = vst [vmem:[#allocation2 + $0x70] sm:$0xff] %v1591
        %1628 = vst [vmem:[#allocation2 + $0x78] sm:$0xff] %v1592
        %1629 = vst [vmem:[#allocation2 + $0x80] sm:$0xff] %v1593
        %1630 = vst [vmem:[#allocation2 + $0x88] sm:$0xff] %v1594
        %1631 = vst [vmem:[#allocation2 + $0x90] sm:$0xff] %v1595
        %1632 = vst [vmem:[#allocation2 + $0x98] sm:$0xff] %v1596
        %1633 = vst [vmem:[#allocation2 + $0xa0] sm:$0xff] %v1597
        %1634 = vst [vmem:[#allocation2 + $0xa8] sm:$0xff] %v1598
        %1635 = vst [vmem:[#allocation2 + $0xb0] sm:$0xff] %v1599
        %1636 = vst [vmem:[#allocation2 + $0xb8] sm:$0xff] %v1600
        %1637 = vst [vmem:[#allocation2 + $0xc0] sm:$0xff] %v1601
        %1638 = vst [vmem:[#allocation2 + $0xc8] sm:$0xff] %v1602
        %1639 = vst [vmem:[#allocation2 + $0xd0] sm:$0xff] %v1603
        %1640 = vst [vmem:[#allocation2 + $0xd8] sm:$0xff] %v1604
        %1641 = vst [vmem:[#allocation2 + $0xe0] sm:$0xff] %v1605
        %1642 = vst [vmem:[#allocation2 + $0xe8] sm:$0xff] %v1606
        %1643 = vst [vmem:[#allocation2 + $0xf0] sm:$0xff] %v1607
        %1644 = vst [vmem:[#allocation2 + $0xf8] sm:$0xff] %v1608
        %1645 = vst [vmem:[#allocation2 + $0x100] sm:$0xff] %v1609
        %1646 = vst [vmem:[#allocation2 + $0x108] sm:$0xff] %v1610
        %1647 = vst [vmem:[#allocation2 + $0x110] sm:$0xff] %v1611
        %1648 = vst [vmem:[#allocation2 + $0x118] sm:$0xff] %v1612
        %v1649 = vld [vmem:[%s206 + $0x12] sm:$0xff]
        %v1650 = vld [vmem:[%s206 + $0x1a] sm:$0xff]
        %v1651 = vld [vmem:[%s206 + $0x22] sm:$0xff]
        %v1652 = vld [vmem:[%s206 + $0x2a] sm:$0xff]
        %v1653 = vld [vmem:[%s206 + $0x32] sm:$0xff]
        %v1654 = vld [vmem:[%s206 + $0x3a] sm:$0xff]
        %v1655 = vld [vmem:[%s206 + $0x42] sm:$0xff]
        %v1656 = vld [vmem:[%s206 + $0x4a] sm:$0xff]
        %v1657 = vld [vmem:[%s206 + $0x52] sm:$0xff]
        %v1658 = vld [vmem:[%s206 + $0x5a] sm:$0xff]
        %v1659 = vld [vmem:[%s206 + $0x62] sm:$0xff]
        %v1660 = vld [vmem:[%s206 + $0x6a] sm:$0xff]
        %v1661 = vld [vmem:[%s206 + $0x72] sm:$0xff]
        %v1662 = vld [vmem:[%s206 + $0x7a] sm:$0xff]
        %v1663 = vld [vmem:[%s206 + $0x82] sm:$0xff]
        %v1664 = vld [vmem:[%s206 + $0x8a] sm:$0xff]
        %v1665 = vld [vmem:[%s206 + $0x92] sm:$0xff]
        %v1666 = vld [vmem:[%s206 + $0x9a] sm:$0xff]
        %v1667 = vld [vmem:[%s206 + $0xa2] sm:$0xff]
        %v1668 = vld [vmem:[%s206 + $0xaa] sm:$0xff]
        %v1669 = vld [vmem:[%s206 + $0xb2] sm:$0xff]
        %v1670 = vld [vmem:[%s206 + $0xba] sm:$0xff]
        %v1671 = vld [vmem:[%s206 + $0xc2] sm:$0xff]
        %v1672 = vld [vmem:[%s206 + $0xca] sm:$0xff]
        %v1673 = vld [vmem:[%s206 + $0xd2] sm:$0xff]
        %v1674 = vld [vmem:[%s206 + $0xda] sm:$0xff]
        %v1675 = vld [vmem:[%s206 + $0xe2] sm:$0xff]
        %v1676 = vld [vmem:[%s206 + $0xea] sm:$0xff]
        %v1677 = vld [vmem:[%s206 + $0xf2] sm:$0xff]
        %v1678 = vld [vmem:[%s206 + $0xfa] sm:$0xff]
        %v1679 = vld [vmem:[%s206 + $0x102] sm:$0xff]
        %v1680 = vld [vmem:[%s206 + $0x10a] sm:$0xff]
        %v1681 = vld [vmem:[%s206 + $0x112] sm:$0xff]
        %v1682 = vld [vmem:[%s206 + $0x11a] sm:$0xff]
        %v1683 = vld [vmem:[%s206 + $0x122] sm:$0xff]
        %v1684 = vld [vmem:[%s206 + $0x12a] sm:$0xff]
        %s1685 = scalar_lea.vmem %s210, 12
        %v1686 = vld [vmem:[%s1685] sm:$0xf]
        %v1688 = vsel %vm251, %v1649, 0
        %v1691 = vsel %vm251, %v1650, 0
        %v1694 = vsel %vm251, %v1651, 0
        %v1697 = vsel %vm251, %v1652, 0
        %v1700 = vsel %vm251, %v1653, 0
        %v1703 = vsel %vm251, %v1654, 0
        %v1706 = vsel %vm251, %v1655, 0
        %v1709 = vsel %vm251, %v1656, 0
        %v1712 = vsel %vm251, %v1657, 0
        %v1715 = vsel %vm251, %v1658, 0
        %v1718 = vsel %vm251, %v1659, 0
        %v1721 = vsel %vm251, %v1660, 0
        %v1724 = vsel %vm251, %v1661, 0
        %v1727 = vsel %vm251, %v1662, 0
        %v1730 = vsel %vm251, %v1663, 0
        %v1733 = vsel %vm251, %v1664, 0
        %v1736 = vsel %vm251, %v1665, 0
        %v1739 = vsel %vm251, %v1666, 0
        %v1742 = vsel %vm251, %v1667, 0
        %v1745 = vsel %vm251, %v1668, 0
        %v1748 = vsel %vm251, %v1669, 0
        %v1751 = vsel %vm251, %v1670, 0
        %v1754 = vsel %vm251, %v1671, 0
        %v1757 = vsel %vm251, %v1672, 0
        %v1760 = vsel %vm251, %v1673, 0
        %v1763 = vsel %vm251, %v1674, 0
        %v1766 = vsel %vm251, %v1675, 0
        %v1769 = vsel %vm251, %v1676, 0
        %v1772 = vsel %vm251, %v1677, 0
        %v1775 = vsel %vm251, %v1678, 0
        %v1778 = vsel %vm251, %v1679, 0
        %v1781 = vsel %vm251, %v1680, 0
        %v1784 = vsel %vm251, %v1681, 0
        %v1787 = vsel %vm251, %v1682, 0
        %v1790 = vsel %vm251, %v1683, 0
        %v1793 = vsel %vm251, %v1684, 0
        %v1796 = vsel %vm360, %v1686, 0
        %1798 = vmatprep.subr.mxu0 0.0
        %1799 = vmatpush1.msra.mxu0 0.0
        %1800 = vmatprep.subr.mxu0 0.0
        %1801 = vmatpush1.msra.mxu0 0.0
        %1802 = vmatprep.subr.mxu0 0.0
        %1803 = vmatpush1.msra.mxu0 0.0
        %1804 = vmatprep.subr.mxu0 0.0
        %1805 = vmatpush1.msra.mxu0 0.0
        %1806 = vmatprep.subr.mxu0 0.0
        %1807 = vmatpush1.msra.mxu0 0.0
        %1808 = vmatprep.subr.mxu0 0.0
        %1809 = vmatpush1.msra.mxu0 0.0
        %1810 = vmatprep.subr.mxu0 0.0
        %1811 = vmatpush1.msra.mxu0 0.0
        %1812 = vmatprep.subr.mxu0 0.0
        %1813 = vmatpush1.msra.mxu0 0.0
        %1814 = vmatprep.subr.mxu0 0.0
        %1815 = vmatpush1.msra.mxu0 0.0
        %1816 = vmatprep.subr.mxu0 0.0
        %1817 = vmatpush1.msra.mxu0 0.0
        %1818 = vmatprep.subr.mxu0 0.0
        %1819 = vmatpush1.msra.mxu0 0.0
        %1820 = vmatprep.subr.mxu0 0.0
        %1821 = vmatpush1.msra.mxu0 0.0
        %1822 = vmatprep.subr.mxu0 0.0
        %1823 = vmatpush1.msra.mxu0 0.0
        %1824 = vmatprep.subr.mxu0 0.0
        %1825 = vmatpush1.msra.mxu0 0.0
        %1826 = vmatprep.subr.mxu0 0.0
        %1827 = vmatpush1.msra.mxu0 0.0
        %1828 = vmatprep.subr.mxu0 0.0
        %1829 = vmatpush1.msra.mxu0 %v1796
        %1830 = vmatprep.subr.mxu0 0.0
        %1831 = vmatpush2.msra.mxu0 0.0
        %1832 = vmatprep.subr.mxu0 0.0
        %1833 = vmatpush2.msra.mxu0 0.0
        %1834 = vmatprep.subr.mxu0 0.0
        %1835 = vmatpush2.msra.mxu0 0.0
        %1836 = vmatprep.subr.mxu0 0.0
        %1837 = vmatpush2.msra.mxu0 0.0
        %1838 = vmatprep.subr.mxu0 0.0
        %1839 = vmatpush2.msra.mxu0 0.0
        %1840 = vmatprep.subr.mxu0 0.0
        %1841 = vmatpush2.msra.mxu0 0.0
        %1842 = vmatprep.subr.mxu0 0.0
        %1843 = vmatpush2.msra.mxu0 0.0
        %1844 = vmatprep.subr.mxu0 0.0
        %1845 = vmatpush2.msra.mxu0 0.0
        %1846 = vmatprep.subr.mxu0 0.0
        %1847 = vmatpush2.msra.mxu0 0.0
        %1848 = vmatprep.subr.mxu0 0.0
        %1849 = vmatpush2.msra.mxu0 0.0
        %1850 = vmatprep.subr.mxu0 0.0
        %1851 = vmatpush2.msra.mxu0 0.0
        %1852 = vmatprep.subr.mxu0 0.0
        %1853 = vmatpush2.msra.mxu0 0.0
        %1854 = vmatprep.subr.mxu0 0.0
        %1855 = vmatpush2.msra.mxu0 0.0
        %1856 = vmatprep.subr.mxu0 0.0
        %1857 = vmatpush2.msra.mxu0 0.0
        %1858 = vmatprep.subr.mxu0 0.0
        %1859 = vmatpush2.msra.mxu0 0.0
        %1860 = vmatprep.subr.mxu0 0.0
        %1861 = vmatpush2.msra.mxu0 0.0
        %1862 = vmatprep.mubr.f32.mxu0 0.0
        %1863 = vmatmul.mubr.f32.gmra.mxu0 %v1688
        %v1864 = vpop.f32.mrf.mxu0
        %v1865 = vadd.f32 0.0, %v1864
        %v1866 = vpop.f32.mrf.mxu0
        %1867 = vmatprep.mubr.f32.mxu0 0.0
        %1868 = vmatmul.mubr.f32.gmra.mxu0 %v1691
        %v1869 = vpop.f32.mrf.mxu0
        %v1870 = vadd.f32 0.0, %v1869
        %v1871 = vpop.f32.mrf.mxu0
        %1872 = vmatprep.mubr.f32.mxu0 0.0
        %1873 = vmatmul.mubr.f32.gmra.mxu0 %v1694
        %v1874 = vpop.f32.mrf.mxu0
        %v1875 = vadd.f32 0.0, %v1874
        %v1876 = vpop.f32.mrf.mxu0
        %1877 = vmatprep.mubr.f32.mxu0 0.0
        %1878 = vmatmul.mubr.f32.gmra.mxu0 %v1697
        %v1879 = vpop.f32.mrf.mxu0
        %v1880 = vadd.f32 0.0, %v1879
        %v1881 = vpop.f32.mrf.mxu0
        %1882 = vmatprep.mubr.f32.mxu0 0.0
        %1883 = vmatmul.mubr.f32.gmra.mxu0 %v1700
        %v1884 = vpop.f32.mrf.mxu0
        %v1885 = vadd.f32 0.0, %v1884
        %v1886 = vpop.f32.mrf.mxu0
        %1887 = vmatprep.mubr.f32.mxu0 0.0
        %1888 = vmatmul.mubr.f32.gmra.mxu0 %v1703
        %v1889 = vpop.f32.mrf.mxu0
        %v1890 = vadd.f32 0.0, %v1889
        %v1891 = vpop.f32.mrf.mxu0
        %1892 = vmatprep.mubr.f32.mxu0 0.0
        %1893 = vmatmul.mubr.f32.gmra.mxu0 %v1706
        %v1894 = vpop.f32.mrf.mxu0
        %v1895 = vadd.f32 0.0, %v1894
        %v1896 = vpop.f32.mrf.mxu0
        %1897 = vmatprep.mubr.f32.mxu0 0.0
        %1898 = vmatmul.mubr.f32.gmra.mxu0 %v1709
        %v1899 = vpop.f32.mrf.mxu0
        %v1900 = vadd.f32 0.0, %v1899
        %v1901 = vpop.f32.mrf.mxu0
        %1902 = vmatprep.mubr.f32.mxu0 0.0
        %1903 = vmatmul.mubr.f32.gmra.mxu0 %v1712
        %v1904 = vpop.f32.mrf.mxu0
        %v1905 = vadd.f32 0.0, %v1904
        %v1906 = vpop.f32.mrf.mxu0
        %1907 = vmatprep.mubr.f32.mxu0 0.0
        %1908 = vmatmul.mubr.f32.gmra.mxu0 %v1715
        %v1909 = vpop.f32.mrf.mxu0
        %v1910 = vadd.f32 0.0, %v1909
        %v1911 = vpop.f32.mrf.mxu0
        %1912 = vmatprep.mubr.f32.mxu0 0.0
        %1913 = vmatmul.mubr.f32.gmra.mxu0 %v1718
        %v1914 = vpop.f32.mrf.mxu0
        %v1915 = vadd.f32 0.0, %v1914
        %v1916 = vpop.f32.mrf.mxu0
        %1917 = vmatprep.mubr.f32.mxu0 0.0
        %1918 = vmatmul.mubr.f32.gmra.mxu0 %v1721
        %v1919 = vpop.f32.mrf.mxu0
        %v1920 = vadd.f32 0.0, %v1919
        %v1921 = vpop.f32.mrf.mxu0
        %1922 = vmatprep.mubr.f32.mxu0 0.0
        %1923 = vmatmul.mubr.f32.gmra.mxu0 %v1724
        %v1924 = vpop.f32.mrf.mxu0
        %v1925 = vadd.f32 0.0, %v1924
        %v1926 = vpop.f32.mrf.mxu0
        %1927 = vmatprep.mubr.f32.mxu0 0.0
        %1928 = vmatmul.mubr.f32.gmra.mxu0 %v1727
        %v1929 = vpop.f32.mrf.mxu0
        %v1930 = vadd.f32 0.0, %v1929
        %v1931 = vpop.f32.mrf.mxu0
        %1932 = vmatprep.mubr.f32.mxu0 0.0
        %1933 = vmatmul.mubr.f32.gmra.mxu0 %v1730
        %v1934 = vpop.f32.mrf.mxu0
        %v1935 = vadd.f32 0.0, %v1934
        %v1936 = vpop.f32.mrf.mxu0
        %1937 = vmatprep.mubr.f32.mxu0 0.0
        %1938 = vmatmul.mubr.f32.gmra.mxu0 %v1733
        %v1939 = vpop.f32.mrf.mxu0
        %v1940 = vadd.f32 0.0, %v1939
        %v1941 = vpop.f32.mrf.mxu0
        %1942 = vmatprep.mubr.f32.mxu0 0.0
        %1943 = vmatmul.mubr.f32.gmra.mxu0 %v1736
        %v1944 = vpop.f32.mrf.mxu0
        %v1945 = vadd.f32 0.0, %v1944
        %v1946 = vpop.f32.mrf.mxu0
        %1947 = vmatprep.mubr.f32.mxu0 0.0
        %1948 = vmatmul.mubr.f32.gmra.mxu0 %v1739
        %v1949 = vpop.f32.mrf.mxu0
        %v1950 = vadd.f32 0.0, %v1949
        %v1951 = vpop.f32.mrf.mxu0
        %1952 = vmatprep.mubr.f32.mxu0 0.0
        %1953 = vmatmul.mubr.f32.gmra.mxu0 %v1742
        %v1954 = vpop.f32.mrf.mxu0
        %v1955 = vadd.f32 0.0, %v1954
        %v1956 = vpop.f32.mrf.mxu0
        %1957 = vmatprep.mubr.f32.mxu0 0.0
        %1958 = vmatmul.mubr.f32.gmra.mxu0 %v1745
        %v1959 = vpop.f32.mrf.mxu0
        %v1960 = vadd.f32 0.0, %v1959
        %v1961 = vpop.f32.mrf.mxu0
        %1962 = vmatprep.mubr.f32.mxu0 0.0
        %1963 = vmatmul.mubr.f32.gmra.mxu0 %v1748
        %v1964 = vpop.f32.mrf.mxu0
        %v1965 = vadd.f32 0.0, %v1964
        %v1966 = vpop.f32.mrf.mxu0
        %1967 = vmatprep.mubr.f32.mxu0 0.0
        %1968 = vmatmul.mubr.f32.gmra.mxu0 %v1751
        %v1969 = vpop.f32.mrf.mxu0
        %v1970 = vadd.f32 0.0, %v1969
        %v1971 = vpop.f32.mrf.mxu0
        %1972 = vmatprep.mubr.f32.mxu0 0.0
        %1973 = vmatmul.mubr.f32.gmra.mxu0 %v1754
        %v1974 = vpop.f32.mrf.mxu0
        %v1975 = vadd.f32 0.0, %v1974
        %v1976 = vpop.f32.mrf.mxu0
        %1977 = vmatprep.mubr.f32.mxu0 0.0
        %1978 = vmatmul.mubr.f32.gmra.mxu0 %v1757
        %v1979 = vpop.f32.mrf.mxu0
        %v1980 = vadd.f32 0.0, %v1979
        %v1981 = vpop.f32.mrf.mxu0
        %1982 = vmatprep.mubr.f32.mxu0 0.0
        %1983 = vmatmul.mubr.f32.gmra.mxu0 %v1760
        %v1984 = vpop.f32.mrf.mxu0
        %v1985 = vadd.f32 0.0, %v1984
        %v1986 = vpop.f32.mrf.mxu0
        %1987 = vmatprep.mubr.f32.mxu0 0.0
        %1988 = vmatmul.mubr.f32.gmra.mxu0 %v1763
        %v1989 = vpop.f32.mrf.mxu0
        %v1990 = vadd.f32 0.0, %v1989
        %v1991 = vpop.f32.mrf.mxu0
        %1992 = vmatprep.mubr.f32.mxu0 0.0
        %1993 = vmatmul.mubr.f32.gmra.mxu0 %v1766
        %v1994 = vpop.f32.mrf.mxu0
        %v1995 = vadd.f32 0.0, %v1994
        %v1996 = vpop.f32.mrf.mxu0
        %1997 = vmatprep.mubr.f32.mxu0 0.0
        %1998 = vmatmul.mubr.f32.gmra.mxu0 %v1769
        %v1999 = vpop.f32.mrf.mxu0
        %v2000 = vadd.f32 0.0, %v1999
        %v2001 = vpop.f32.mrf.mxu0
        %2002 = vmatprep.mubr.f32.mxu0 0.0
        %2003 = vmatmul.mubr.f32.gmra.mxu0 %v1772
        %v2004 = vpop.f32.mrf.mxu0
        %v2005 = vadd.f32 0.0, %v2004
        %v2006 = vpop.f32.mrf.mxu0
        %2007 = vmatprep.mubr.f32.mxu0 0.0
        %2008 = vmatmul.mubr.f32.gmra.mxu0 %v1775
        %v2009 = vpop.f32.mrf.mxu0
        %v2010 = vadd.f32 0.0, %v2009
        %v2011 = vpop.f32.mrf.mxu0
        %2012 = vmatprep.mubr.f32.mxu0 0.0
        %2013 = vmatmul.mubr.f32.gmra.mxu0 %v1778
        %v2014 = vpop.f32.mrf.mxu0
        %v2015 = vadd.f32 0.0, %v2014
        %v2016 = vpop.f32.mrf.mxu0
        %2017 = vmatprep.mubr.f32.mxu0 0.0
        %2018 = vmatmul.mubr.f32.gmra.mxu0 %v1781
        %v2019 = vpop.f32.mrf.mxu0
        %v2020 = vadd.f32 0.0, %v2019
        %v2021 = vpop.f32.mrf.mxu0
        %2022 = vmatprep.mubr.f32.mxu0 0.0
        %2023 = vmatmul.mubr.f32.gmra.mxu0 %v1784
        %v2024 = vpop.f32.mrf.mxu0
        %v2025 = vadd.f32 0.0, %v2024
        %v2026 = vpop.f32.mrf.mxu0
        %2027 = vmatprep.mubr.f32.mxu0 0.0
        %2028 = vmatmul.mubr.f32.gmra.mxu0 %v1787
        %v2029 = vpop.f32.mrf.mxu0
        %v2030 = vadd.f32 0.0, %v2029
        %v2031 = vpop.f32.mrf.mxu0
        %2032 = vmatprep.mubr.f32.mxu0 0.0
        %2033 = vmatmul.mubr.f32.gmra.mxu0 %v1790
        %v2034 = vpop.f32.mrf.mxu0
        %v2035 = vadd.f32 0.0, %v2034
        %v2036 = vpop.f32.mrf.mxu0
        %2037 = vmatprep.mubr.f32.mxu0 0.0
        %2038 = vmatmul.mubr.f32.gmra.mxu0 %v1793
        %v2039 = vpop.f32.mrf.mxu0
        %v2040 = vadd.f32 0.0, %v2039
        %v2041 = vpop.f32.mrf.mxu0
        %2042 = vdwg.mxu0
        %v2043 = vld [vmem:[#allocation2] sm:$0xff]
        %v2044 = vld [vmem:[#allocation2 + $0x8] sm:$0xff]
        %v2045 = vld [vmem:[#allocation2 + $0x10] sm:$0xff]
        %v2046 = vld [vmem:[#allocation2 + $0x18] sm:$0xff]
        %v2047 = vld [vmem:[#allocation2 + $0x20] sm:$0xff]
        %v2048 = vld [vmem:[#allocation2 + $0x28] sm:$0xff]
        %v2049 = vld [vmem:[#allocation2 + $0x30] sm:$0xff]
        %v2050 = vld [vmem:[#allocation2 + $0x38] sm:$0xff]
        %v2051 = vld [vmem:[#allocation2 + $0x40] sm:$0xff]
        %v2052 = vld [vmem:[#allocation2 + $0x48] sm:$0xff]
        %v2053 = vld [vmem:[#allocation2 + $0x50] sm:$0xff]
        %v2054 = vld [vmem:[#allocation2 + $0x58] sm:$0xff]
        %v2055 = vld [vmem:[#allocation2 + $0x60] sm:$0xff]
        %v2056 = vld [vmem:[#allocation2 + $0x68] sm:$0xff]
        %v2057 = vld [vmem:[#allocation2 + $0x70] sm:$0xff]
        %v2058 = vld [vmem:[#allocation2 + $0x78] sm:$0xff]
        %v2059 = vld [vmem:[#allocation2 + $0x80] sm:$0xff]
        %v2060 = vld [vmem:[#allocation2 + $0x88] sm:$0xff]
        %v2061 = vld [vmem:[#allocation2 + $0x90] sm:$0xff]
        %v2062 = vld [vmem:[#allocation2 + $0x98] sm:$0xff]
        %v2063 = vld [vmem:[#allocation2 + $0xa0] sm:$0xff]
        %v2064 = vld [vmem:[#allocation2 + $0xa8] sm:$0xff]
        %v2065 = vld [vmem:[#allocation2 + $0xb0] sm:$0xff]
        %v2066 = vld [vmem:[#allocation2 + $0xb8] sm:$0xff]
        %v2067 = vld [vmem:[#allocation2 + $0xc0] sm:$0xff]
        %v2068 = vld [vmem:[#allocation2 + $0xc8] sm:$0xff]
        %v2069 = vld [vmem:[#allocation2 + $0xd0] sm:$0xff]
        %v2070 = vld [vmem:[#allocation2 + $0xd8] sm:$0xff]
        %v2071 = vld [vmem:[#allocation2 + $0xe0] sm:$0xff]
        %v2072 = vld [vmem:[#allocation2 + $0xe8] sm:$0xff]
        %v2073 = vld [vmem:[#allocation2 + $0xf0] sm:$0xff]
        %v2074 = vld [vmem:[#allocation2 + $0xf8] sm:$0xff]
        %v2075 = vld [vmem:[#allocation2 + $0x100] sm:$0xff]
        %v2076 = vld [vmem:[#allocation2 + $0x108] sm:$0xff]
        %v2077 = vld [vmem:[#allocation2 + $0x110] sm:$0xff]
        %v2078 = vld [vmem:[#allocation2 + $0x118] sm:$0xff]
        %v2079 = vadd.f32 %v2043, %v1865
        %v2080 = vadd.f32 %v2044, %v1870
        %v2081 = vadd.f32 %v2045, %v1875
        %v2082 = vadd.f32 %v2046, %v1880
        %v2083 = vadd.f32 %v2047, %v1885
        %v2084 = vadd.f32 %v2048, %v1890
        %v2085 = vadd.f32 %v2049, %v1895
        %v2086 = vadd.f32 %v2050, %v1900
        %v2087 = vadd.f32 %v2051, %v1905
        %v2088 = vadd.f32 %v2052, %v1910
        %v2089 = vadd.f32 %v2053, %v1915
        %v2090 = vadd.f32 %v2054, %v1920
        %v2091 = vadd.f32 %v2055, %v1925
        %v2092 = vadd.f32 %v2056, %v1930
        %v2093 = vadd.f32 %v2057, %v1935
        %v2094 = vadd.f32 %v2058, %v1940
        %v2095 = vadd.f32 %v2059, %v1945
        %v2096 = vadd.f32 %v2060, %v1950
        %v2097 = vadd.f32 %v2061, %v1955
        %v2098 = vadd.f32 %v2062, %v1960
        %v2099 = vadd.f32 %v2063, %v1965
        %v2100 = vadd.f32 %v2064, %v1970
        %v2101 = vadd.f32 %v2065, %v1975
        %v2102 = vadd.f32 %v2066, %v1980
        %v2103 = vadd.f32 %v2067, %v1985
        %v2104 = vadd.f32 %v2068, %v1990
        %v2105 = vadd.f32 %v2069, %v1995
        %v2106 = vadd.f32 %v2070, %v2000
        %v2107 = vadd.f32 %v2071, %v2005
        %v2108 = vadd.f32 %v2072, %v2010
        %v2109 = vadd.f32 %v2073, %v2015
        %v2110 = vadd.f32 %v2074, %v2020
        %v2111 = vadd.f32 %v2075, %v2025
        %v2112 = vadd.f32 %v2076, %v2030
        %v2113 = vadd.f32 %v2077, %v2035
        %v2114 = vadd.f32 %v2078, %v2040
        %2115 = vst [vmem:[#allocation2] sm:$0xff] %v2079
        %2116 = vst [vmem:[#allocation2 + $0x8] sm:$0xff] %v2080
        %2117 = vst [vmem:[#allocation2 + $0x10] sm:$0xff] %v2081
        %2118 = vst [vmem:[#allocation2 + $0x18] sm:$0xff] %v2082
        %2119 = vst [vmem:[#allocation2 + $0x20] sm:$0xff] %v2083
        %2120 = vst [vmem:[#allocation2 + $0x28] sm:$0xff] %v2084
        %2121 = vst [vmem:[#allocation2 + $0x30] sm:$0xff] %v2085
        %2122 = vst [vmem:[#allocation2 + $0x38] sm:$0xff] %v2086
        %2123 = vst [vmem:[#allocation2 + $0x40] sm:$0xff] %v2087
        %2124 = vst [vmem:[#allocation2 + $0x48] sm:$0xff] %v2088
        %2125 = vst [vmem:[#allocation2 + $0x50] sm:$0xff] %v2089
        %2126 = vst [vmem:[#allocation2 + $0x58] sm:$0xff] %v2090
        %2127 = vst [vmem:[#allocation2 + $0x60] sm:$0xff] %v2091
        %2128 = vst [vmem:[#allocation2 + $0x68] sm:$0xff] %v2092
        %2129 = vst [vmem:[#allocation2 + $0x70] sm:$0xff] %v2093
        %2130 = vst [vmem:[#allocation2 + $0x78] sm:$0xff] %v2094
        %2131 = vst [vmem:[#allocation2 + $0x80] sm:$0xff] %v2095
        %2132 = vst [vmem:[#allocation2 + $0x88] sm:$0xff] %v2096
        %2133 = vst [vmem:[#allocation2 + $0x90] sm:$0xff] %v2097
        %2134 = vst [vmem:[#allocation2 + $0x98] sm:$0xff] %v2098
        %2135 = vst [vmem:[#allocation2 + $0xa0] sm:$0xff] %v2099
        %2136 = vst [vmem:[#allocation2 + $0xa8] sm:$0xff] %v2100
        %2137 = vst [vmem:[#allocation2 + $0xb0] sm:$0xff] %v2101
        %2138 = vst [vmem:[#allocation2 + $0xb8] sm:$0xff] %v2102
        %2139 = vst [vmem:[#allocation2 + $0xc0] sm:$0xff] %v2103
        %2140 = vst [vmem:[#allocation2 + $0xc8] sm:$0xff] %v2104
        %2141 = vst [vmem:[#allocation2 + $0xd0] sm:$0xff] %v2105
        %2142 = vst [vmem:[#allocation2 + $0xd8] sm:$0xff] %v2106
        %2143 = vst [vmem:[#allocation2 + $0xe0] sm:$0xff] %v2107
        %2144 = vst [vmem:[#allocation2 + $0xe8] sm:$0xff] %v2108
        %2145 = vst [vmem:[#allocation2 + $0xf0] sm:$0xff] %v2109
        %2146 = vst [vmem:[#allocation2 + $0xf8] sm:$0xff] %v2110
        %2147 = vst [vmem:[#allocation2 + $0x100] sm:$0xff] %v2111
        %2148 = vst [vmem:[#allocation2 + $0x108] sm:$0xff] %v2112
        %2149 = vst [vmem:[#allocation2 + $0x110] sm:$0xff] %v2113
        %2150 = vst [vmem:[#allocation2 + $0x118] sm:$0xff] %v2114
        %v2151 = vld [vmem:[%s206 + $0x13] sm:$0xff]
        %v2152 = vld [vmem:[%s206 + $0x1b] sm:$0xff]
        %v2153 = vld [vmem:[%s206 + $0x23] sm:$0xff]
        %v2154 = vld [vmem:[%s206 + $0x2b] sm:$0xff]
        %v2155 = vld [vmem:[%s206 + $0x33] sm:$0xff]
        %v2156 = vld [vmem:[%s206 + $0x3b] sm:$0xff]
        %v2157 = vld [vmem:[%s206 + $0x43] sm:$0xff]
        %v2158 = vld [vmem:[%s206 + $0x4b] sm:$0xff]
        %v2159 = vld [vmem:[%s206 + $0x53] sm:$0xff]
        %v2160 = vld [vmem:[%s206 + $0x5b] sm:$0xff]
        %v2161 = vld [vmem:[%s206 + $0x63] sm:$0xff]
        %v2162 = vld [vmem:[%s206 + $0x6b] sm:$0xff]
        %v2163 = vld [vmem:[%s206 + $0x73] sm:$0xff]
        %v2164 = vld [vmem:[%s206 + $0x7b] sm:$0xff]
        %v2165 = vld [vmem:[%s206 + $0x83] sm:$0xff]
        %v2166 = vld [vmem:[%s206 + $0x8b] sm:$0xff]
        %v2167 = vld [vmem:[%s206 + $0x93] sm:$0xff]
        %v2168 = vld [vmem:[%s206 + $0x9b] sm:$0xff]
        %v2169 = vld [vmem:[%s206 + $0xa3] sm:$0xff]
        %v2170 = vld [vmem:[%s206 + $0xab] sm:$0xff]
        %v2171 = vld [vmem:[%s206 + $0xb3] sm:$0xff]
        %v2172 = vld [vmem:[%s206 + $0xbb] sm:$0xff]
        %v2173 = vld [vmem:[%s206 + $0xc3] sm:$0xff]
        %v2174 = vld [vmem:[%s206 + $0xcb] sm:$0xff]
        %v2175 = vld [vmem:[%s206 + $0xd3] sm:$0xff]
        %v2176 = vld [vmem:[%s206 + $0xdb] sm:$0xff]
        %v2177 = vld [vmem:[%s206 + $0xe3] sm:$0xff]
        %v2178 = vld [vmem:[%s206 + $0xeb] sm:$0xff]
        %v2179 = vld [vmem:[%s206 + $0xf3] sm:$0xff]
        %v2180 = vld [vmem:[%s206 + $0xfb] sm:$0xff]
        %v2181 = vld [vmem:[%s206 + $0x103] sm:$0xff]
        %v2182 = vld [vmem:[%s206 + $0x10b] sm:$0xff]
        %v2183 = vld [vmem:[%s206 + $0x113] sm:$0xff]
        %v2184 = vld [vmem:[%s206 + $0x11b] sm:$0xff]
        %v2185 = vld [vmem:[%s206 + $0x123] sm:$0xff]
        %v2186 = vld [vmem:[%s206 + $0x12b] sm:$0xff]
        %s2187 = scalar_lea.vmem %s210, 16
        %v2188 = vld [vmem:[%s2187] sm:$0xf]
        %v2190 = vsel %vm251, %v2151, 0
        %v2193 = vsel %vm251, %v2152, 0
        %v2196 = vsel %vm251, %v2153, 0
        %v2199 = vsel %vm251, %v2154, 0
        %v2202 = vsel %vm251, %v2155, 0
        %v2205 = vsel %vm251, %v2156, 0
        %v2208 = vsel %vm251, %v2157, 0
        %v2211 = vsel %vm251, %v2158, 0
        %v2214 = vsel %vm251, %v2159, 0
        %v2217 = vsel %vm251, %v2160, 0
        %v2220 = vsel %vm251, %v2161, 0
        %v2223 = vsel %vm251, %v2162, 0
        %v2226 = vsel %vm251, %v2163, 0
        %v2229 = vsel %vm251, %v2164, 0
        %v2232 = vsel %vm251, %v2165, 0
        %v2235 = vsel %vm251, %v2166, 0
        %v2238 = vsel %vm251, %v2167, 0
        %v2241 = vsel %vm251, %v2168, 0
        %v2244 = vsel %vm251, %v2169, 0
        %v2247 = vsel %vm251, %v2170, 0
        %v2250 = vsel %vm251, %v2171, 0
        %v2253 = vsel %vm251, %v2172, 0
        %v2256 = vsel %vm251, %v2173, 0
        %v2259 = vsel %vm251, %v2174, 0
        %v2262 = vsel %vm251, %v2175, 0
        %v2265 = vsel %vm251, %v2176, 0
        %v2268 = vsel %vm251, %v2177, 0
        %v2271 = vsel %vm251, %v2178, 0
        %v2274 = vsel %vm251, %v2179, 0
        %v2277 = vsel %vm251, %v2180, 0
        %v2280 = vsel %vm251, %v2181, 0
        %v2283 = vsel %vm251, %v2182, 0
        %v2286 = vsel %vm251, %v2183, 0
        %v2289 = vsel %vm251, %v2184, 0
        %v2292 = vsel %vm251, %v2185, 0
        %v2295 = vsel %vm251, %v2186, 0
        %v2298 = vsel %vm360, %v2188, 0
        %2300 = vmatprep.subr.mxu0 0.0
        %2301 = vmatpush1.msra.mxu0 0.0
        %2302 = vmatprep.subr.mxu0 0.0
        %2303 = vmatpush1.msra.mxu0 0.0
        %2304 = vmatprep.subr.mxu0 0.0
        %2305 = vmatpush1.msra.mxu0 0.0
        %2306 = vmatprep.subr.mxu0 0.0
        %2307 = vmatpush1.msra.mxu0 0.0
        %2308 = vmatprep.subr.mxu0 0.0
        %2309 = vmatpush1.msra.mxu0 0.0
        %2310 = vmatprep.subr.mxu0 0.0
        %2311 = vmatpush1.msra.mxu0 0.0
        %2312 = vmatprep.subr.mxu0 0.0
        %2313 = vmatpush1.msra.mxu0 0.0
        %2314 = vmatprep.subr.mxu0 0.0
        %2315 = vmatpush1.msra.mxu0 0.0
        %2316 = vmatprep.subr.mxu0 0.0
        %2317 = vmatpush1.msra.mxu0 0.0
        %2318 = vmatprep.subr.mxu0 0.0
        %2319 = vmatpush1.msra.mxu0 0.0
        %2320 = vmatprep.subr.mxu0 0.0
        %2321 = vmatpush1.msra.mxu0 0.0
        %2322 = vmatprep.subr.mxu0 0.0
        %2323 = vmatpush1.msra.mxu0 0.0
        %2324 = vmatprep.subr.mxu0 0.0
        %2325 = vmatpush1.msra.mxu0 0.0
        %2326 = vmatprep.subr.mxu0 0.0
        %2327 = vmatpush1.msra.mxu0 0.0
        %2328 = vmatprep.subr.mxu0 0.0
        %2329 = vmatpush1.msra.mxu0 0.0
        %2330 = vmatprep.subr.mxu0 0.0
        %2331 = vmatpush1.msra.mxu0 %v2298
        %2332 = vmatprep.subr.mxu0 0.0
        %2333 = vmatpush2.msra.mxu0 0.0
        %2334 = vmatprep.subr.mxu0 0.0
        %2335 = vmatpush2.msra.mxu0 0.0
        %2336 = vmatprep.subr.mxu0 0.0
        %2337 = vmatpush2.msra.mxu0 0.0
        %2338 = vmatprep.subr.mxu0 0.0
        %2339 = vmatpush2.msra.mxu0 0.0
        %2340 = vmatprep.subr.mxu0 0.0
        %2341 = vmatpush2.msra.mxu0 0.0
        %2342 = vmatprep.subr.mxu0 0.0
        %2343 = vmatpush2.msra.mxu0 0.0
        %2344 = vmatprep.subr.mxu0 0.0
        %2345 = vmatpush2.msra.mxu0 0.0
        %2346 = vmatprep.subr.mxu0 0.0
        %2347 = vmatpush2.msra.mxu0 0.0
        %2348 = vmatprep.subr.mxu0 0.0
        %2349 = vmatpush2.msra.mxu0 0.0
        %2350 = vmatprep.subr.mxu0 0.0
        %2351 = vmatpush2.msra.mxu0 0.0
        %2352 = vmatprep.subr.mxu0 0.0
        %2353 = vmatpush2.msra.mxu0 0.0
        %2354 = vmatprep.subr.mxu0 0.0
        %2355 = vmatpush2.msra.mxu0 0.0
        %2356 = vmatprep.subr.mxu0 0.0
        %2357 = vmatpush2.msra.mxu0 0.0
        %2358 = vmatprep.subr.mxu0 0.0
        %2359 = vmatpush2.msra.mxu0 0.0
        %2360 = vmatprep.subr.mxu0 0.0
        %2361 = vmatpush2.msra.mxu0 0.0
        %2362 = vmatprep.subr.mxu0 0.0
        %2363 = vmatpush2.msra.mxu0 0.0
        %2364 = vmatprep.mubr.f32.mxu0 0.0
        %2365 = vmatmul.mubr.f32.gmra.mxu0 %v2190
        %v2366 = vpop.f32.mrf.mxu0
        %v2367 = vadd.f32 0.0, %v2366
        %v2368 = vpop.f32.mrf.mxu0
        %2369 = vmatprep.mubr.f32.mxu0 0.0
        %2370 = vmatmul.mubr.f32.gmra.mxu0 %v2193
        %v2371 = vpop.f32.mrf.mxu0
        %v2372 = vadd.f32 0.0, %v2371
        %v2373 = vpop.f32.mrf.mxu0
        %2374 = vmatprep.mubr.f32.mxu0 0.0
        %2375 = vmatmul.mubr.f32.gmra.mxu0 %v2196
        %v2376 = vpop.f32.mrf.mxu0
        %v2377 = vadd.f32 0.0, %v2376
        %v2378 = vpop.f32.mrf.mxu0
        %2379 = vmatprep.mubr.f32.mxu0 0.0
        %2380 = vmatmul.mubr.f32.gmra.mxu0 %v2199
        %v2381 = vpop.f32.mrf.mxu0
        %v2382 = vadd.f32 0.0, %v2381
        %v2383 = vpop.f32.mrf.mxu0
        %2384 = vmatprep.mubr.f32.mxu0 0.0
        %2385 = vmatmul.mubr.f32.gmra.mxu0 %v2202
        %v2386 = vpop.f32.mrf.mxu0
        %v2387 = vadd.f32 0.0, %v2386
        %v2388 = vpop.f32.mrf.mxu0
        %2389 = vmatprep.mubr.f32.mxu0 0.0
        %2390 = vmatmul.mubr.f32.gmra.mxu0 %v2205
        %v2391 = vpop.f32.mrf.mxu0
        %v2392 = vadd.f32 0.0, %v2391
        %v2393 = vpop.f32.mrf.mxu0
        %2394 = vmatprep.mubr.f32.mxu0 0.0
        %2395 = vmatmul.mubr.f32.gmra.mxu0 %v2208
        %v2396 = vpop.f32.mrf.mxu0
        %v2397 = vadd.f32 0.0, %v2396
        %v2398 = vpop.f32.mrf.mxu0
        %2399 = vmatprep.mubr.f32.mxu0 0.0
        %2400 = vmatmul.mubr.f32.gmra.mxu0 %v2211
        %v2401 = vpop.f32.mrf.mxu0
        %v2402 = vadd.f32 0.0, %v2401
        %v2403 = vpop.f32.mrf.mxu0
        %2404 = vmatprep.mubr.f32.mxu0 0.0
        %2405 = vmatmul.mubr.f32.gmra.mxu0 %v2214
        %v2406 = vpop.f32.mrf.mxu0
        %v2407 = vadd.f32 0.0, %v2406
        %v2408 = vpop.f32.mrf.mxu0
        %2409 = vmatprep.mubr.f32.mxu0 0.0
        %2410 = vmatmul.mubr.f32.gmra.mxu0 %v2217
        %v2411 = vpop.f32.mrf.mxu0
        %v2412 = vadd.f32 0.0, %v2411
        %v2413 = vpop.f32.mrf.mxu0
        %2414 = vmatprep.mubr.f32.mxu0 0.0
        %2415 = vmatmul.mubr.f32.gmra.mxu0 %v2220
        %v2416 = vpop.f32.mrf.mxu0
        %v2417 = vadd.f32 0.0, %v2416
        %v2418 = vpop.f32.mrf.mxu0
        %2419 = vmatprep.mubr.f32.mxu0 0.0
        %2420 = vmatmul.mubr.f32.gmra.mxu0 %v2223
        %v2421 = vpop.f32.mrf.mxu0
        %v2422 = vadd.f32 0.0, %v2421
        %v2423 = vpop.f32.mrf.mxu0
        %2424 = vmatprep.mubr.f32.mxu0 0.0
        %2425 = vmatmul.mubr.f32.gmra.mxu0 %v2226
        %v2426 = vpop.f32.mrf.mxu0
        %v2427 = vadd.f32 0.0, %v2426
        %v2428 = vpop.f32.mrf.mxu0
        %2429 = vmatprep.mubr.f32.mxu0 0.0
        %2430 = vmatmul.mubr.f32.gmra.mxu0 %v2229
        %v2431 = vpop.f32.mrf.mxu0
        %v2432 = vadd.f32 0.0, %v2431
        %v2433 = vpop.f32.mrf.mxu0
        %2434 = vmatprep.mubr.f32.mxu0 0.0
        %2435 = vmatmul.mubr.f32.gmra.mxu0 %v2232
        %v2436 = vpop.f32.mrf.mxu0
        %v2437 = vadd.f32 0.0, %v2436
        %v2438 = vpop.f32.mrf.mxu0
        %2439 = vmatprep.mubr.f32.mxu0 0.0
        %2440 = vmatmul.mubr.f32.gmra.mxu0 %v2235
        %v2441 = vpop.f32.mrf.mxu0
        %v2442 = vadd.f32 0.0, %v2441
        %v2443 = vpop.f32.mrf.mxu0
        %2444 = vmatprep.mubr.f32.mxu0 0.0
        %2445 = vmatmul.mubr.f32.gmra.mxu0 %v2238
        %v2446 = vpop.f32.mrf.mxu0
        %v2447 = vadd.f32 0.0, %v2446
        %v2448 = vpop.f32.mrf.mxu0
        %2449 = vmatprep.mubr.f32.mxu0 0.0
        %2450 = vmatmul.mubr.f32.gmra.mxu0 %v2241
        %v2451 = vpop.f32.mrf.mxu0
        %v2452 = vadd.f32 0.0, %v2451
        %v2453 = vpop.f32.mrf.mxu0
        %2454 = vmatprep.mubr.f32.mxu0 0.0
        %2455 = vmatmul.mubr.f32.gmra.mxu0 %v2244
        %v2456 = vpop.f32.mrf.mxu0
        %v2457 = vadd.f32 0.0, %v2456
        %v2458 = vpop.f32.mrf.mxu0
        %2459 = vmatprep.mubr.f32.mxu0 0.0
        %2460 = vmatmul.mubr.f32.gmra.mxu0 %v2247
        %v2461 = vpop.f32.mrf.mxu0
        %v2462 = vadd.f32 0.0, %v2461
        %v2463 = vpop.f32.mrf.mxu0
        %2464 = vmatprep.mubr.f32.mxu0 0.0
        %2465 = vmatmul.mubr.f32.gmra.mxu0 %v2250
        %v2466 = vpop.f32.mrf.mxu0
        %v2467 = vadd.f32 0.0, %v2466
        %v2468 = vpop.f32.mrf.mxu0
        %2469 = vmatprep.mubr.f32.mxu0 0.0
        %2470 = vmatmul.mubr.f32.gmra.mxu0 %v2253
        %v2471 = vpop.f32.mrf.mxu0
        %v2472 = vadd.f32 0.0, %v2471
        %v2473 = vpop.f32.mrf.mxu0
        %2474 = vmatprep.mubr.f32.mxu0 0.0
        %2475 = vmatmul.mubr.f32.gmra.mxu0 %v2256
        %v2476 = vpop.f32.mrf.mxu0
        %v2477 = vadd.f32 0.0, %v2476
        %v2478 = vpop.f32.mrf.mxu0
        %2479 = vmatprep.mubr.f32.mxu0 0.0
        %2480 = vmatmul.mubr.f32.gmra.mxu0 %v2259
        %v2481 = vpop.f32.mrf.mxu0
        %v2482 = vadd.f32 0.0, %v2481
        %v2483 = vpop.f32.mrf.mxu0
        %2484 = vmatprep.mubr.f32.mxu0 0.0
        %2485 = vmatmul.mubr.f32.gmra.mxu0 %v2262
        %v2486 = vpop.f32.mrf.mxu0
        %v2487 = vadd.f32 0.0, %v2486
        %v2488 = vpop.f32.mrf.mxu0
        %2489 = vmatprep.mubr.f32.mxu0 0.0
        %2490 = vmatmul.mubr.f32.gmra.mxu0 %v2265
        %v2491 = vpop.f32.mrf.mxu0
        %v2492 = vadd.f32 0.0, %v2491
        %v2493 = vpop.f32.mrf.mxu0
        %2494 = vmatprep.mubr.f32.mxu0 0.0
        %2495 = vmatmul.mubr.f32.gmra.mxu0 %v2268
        %v2496 = vpop.f32.mrf.mxu0
        %v2497 = vadd.f32 0.0, %v2496
        %v2498 = vpop.f32.mrf.mxu0
        %2499 = vmatprep.mubr.f32.mxu0 0.0
        %2500 = vmatmul.mubr.f32.gmra.mxu0 %v2271
        %v2501 = vpop.f32.mrf.mxu0
        %v2502 = vadd.f32 0.0, %v2501
        %v2503 = vpop.f32.mrf.mxu0
        %2504 = vmatprep.mubr.f32.mxu0 0.0
        %2505 = vmatmul.mubr.f32.gmra.mxu0 %v2274
        %v2506 = vpop.f32.mrf.mxu0
        %v2507 = vadd.f32 0.0, %v2506
        %v2508 = vpop.f32.mrf.mxu0
        %2509 = vmatprep.mubr.f32.mxu0 0.0
        %2510 = vmatmul.mubr.f32.gmra.mxu0 %v2277
        %v2511 = vpop.f32.mrf.mxu0
        %v2512 = vadd.f32 0.0, %v2511
        %v2513 = vpop.f32.mrf.mxu0
        %2514 = vmatprep.mubr.f32.mxu0 0.0
        %2515 = vmatmul.mubr.f32.gmra.mxu0 %v2280
        %v2516 = vpop.f32.mrf.mxu0
        %v2517 = vadd.f32 0.0, %v2516
        %v2518 = vpop.f32.mrf.mxu0
        %2519 = vmatprep.mubr.f32.mxu0 0.0
        %2520 = vmatmul.mubr.f32.gmra.mxu0 %v2283
        %v2521 = vpop.f32.mrf.mxu0
        %v2522 = vadd.f32 0.0, %v2521
        %v2523 = vpop.f32.mrf.mxu0
        %2524 = vmatprep.mubr.f32.mxu0 0.0
        %2525 = vmatmul.mubr.f32.gmra.mxu0 %v2286
        %v2526 = vpop.f32.mrf.mxu0
        %v2527 = vadd.f32 0.0, %v2526
        %v2528 = vpop.f32.mrf.mxu0
        %2529 = vmatprep.mubr.f32.mxu0 0.0
        %2530 = vmatmul.mubr.f32.gmra.mxu0 %v2289
        %v2531 = vpop.f32.mrf.mxu0
        %v2532 = vadd.f32 0.0, %v2531
        %v2533 = vpop.f32.mrf.mxu0
        %2534 = vmatprep.mubr.f32.mxu0 0.0
        %2535 = vmatmul.mubr.f32.gmra.mxu0 %v2292
        %v2536 = vpop.f32.mrf.mxu0
        %v2537 = vadd.f32 0.0, %v2536
        %v2538 = vpop.f32.mrf.mxu0
        %2539 = vmatprep.mubr.f32.mxu0 0.0
        %2540 = vmatmul.mubr.f32.gmra.mxu0 %v2295
        %v2541 = vpop.f32.mrf.mxu0
        %v2542 = vadd.f32 0.0, %v2541
        %v2543 = vpop.f32.mrf.mxu0
        %2544 = vdwg.mxu0
        %v2545 = vld [vmem:[#allocation2] sm:$0xff]
        %v2546 = vld [vmem:[#allocation2 + $0x8] sm:$0xff]
        %v2547 = vld [vmem:[#allocation2 + $0x10] sm:$0xff]
        %v2548 = vld [vmem:[#allocation2 + $0x18] sm:$0xff]
        %v2549 = vld [vmem:[#allocation2 + $0x20] sm:$0xff]
        %v2550 = vld [vmem:[#allocation2 + $0x28] sm:$0xff]
        %v2551 = vld [vmem:[#allocation2 + $0x30] sm:$0xff]
        %v2552 = vld [vmem:[#allocation2 + $0x38] sm:$0xff]
        %v2553 = vld [vmem:[#allocation2 + $0x40] sm:$0xff]
        %v2554 = vld [vmem:[#allocation2 + $0x48] sm:$0xff]
        %v2555 = vld [vmem:[#allocation2 + $0x50] sm:$0xff]
        %v2556 = vld [vmem:[#allocation2 + $0x58] sm:$0xff]
        %v2557 = vld [vmem:[#allocation2 + $0x60] sm:$0xff]
        %v2558 = vld [vmem:[#allocation2 + $0x68] sm:$0xff]
        %v2559 = vld [vmem:[#allocation2 + $0x70] sm:$0xff]
        %v2560 = vld [vmem:[#allocation2 + $0x78] sm:$0xff]
        %v2561 = vld [vmem:[#allocation2 + $0x80] sm:$0xff]
        %v2562 = vld [vmem:[#allocation2 + $0x88] sm:$0xff]
        %v2563 = vld [vmem:[#allocation2 + $0x90] sm:$0xff]
        %v2564 = vld [vmem:[#allocation2 + $0x98] sm:$0xff]
        %v2565 = vld [vmem:[#allocation2 + $0xa0] sm:$0xff]
        %v2566 = vld [vmem:[#allocation2 + $0xa8] sm:$0xff]
        %v2567 = vld [vmem:[#allocation2 + $0xb0] sm:$0xff]
        %v2568 = vld [vmem:[#allocation2 + $0xb8] sm:$0xff]
        %v2569 = vld [vmem:[#allocation2 + $0xc0] sm:$0xff]
        %v2570 = vld [vmem:[#allocation2 + $0xc8] sm:$0xff]
        %v2571 = vld [vmem:[#allocation2 + $0xd0] sm:$0xff]
        %v2572 = vld [vmem:[#allocation2 + $0xd8] sm:$0xff]
        %v2573 = vld [vmem:[#allocation2 + $0xe0] sm:$0xff]
        %v2574 = vld [vmem:[#allocation2 + $0xe8] sm:$0xff]
        %v2575 = vld [vmem:[#allocation2 + $0xf0] sm:$0xff]
        %v2576 = vld [vmem:[#allocation2 + $0xf8] sm:$0xff]
        %v2577 = vld [vmem:[#allocation2 + $0x100] sm:$0xff]
        %v2578 = vld [vmem:[#allocation2 + $0x108] sm:$0xff]
        %v2579 = vld [vmem:[#allocation2 + $0x110] sm:$0xff]
        %v2580 = vld [vmem:[#allocation2 + $0x118] sm:$0xff]
        %v2581 = vadd.f32 %v2545, %v2367
        %v2582 = vadd.f32 %v2546, %v2372
        %v2583 = vadd.f32 %v2547, %v2377
        %v2584 = vadd.f32 %v2548, %v2382
        %v2585 = vadd.f32 %v2549, %v2387
        %v2586 = vadd.f32 %v2550, %v2392
        %v2587 = vadd.f32 %v2551, %v2397
        %v2588 = vadd.f32 %v2552, %v2402
        %v2589 = vadd.f32 %v2553, %v2407
        %v2590 = vadd.f32 %v2554, %v2412
        %v2591 = vadd.f32 %v2555, %v2417
        %v2592 = vadd.f32 %v2556, %v2422
        %v2593 = vadd.f32 %v2557, %v2427
        %v2594 = vadd.f32 %v2558, %v2432
        %v2595 = vadd.f32 %v2559, %v2437
        %v2596 = vadd.f32 %v2560, %v2442
        %v2597 = vadd.f32 %v2561, %v2447
        %v2598 = vadd.f32 %v2562, %v2452
        %v2599 = vadd.f32 %v2563, %v2457
        %v2600 = vadd.f32 %v2564, %v2462
        %v2601 = vadd.f32 %v2565, %v2467
        %v2602 = vadd.f32 %v2566, %v2472
        %v2603 = vadd.f32 %v2567, %v2477
        %v2604 = vadd.f32 %v2568, %v2482
        %v2605 = vadd.f32 %v2569, %v2487
        %v2606 = vadd.f32 %v2570, %v2492
        %v2607 = vadd.f32 %v2571, %v2497
        %v2608 = vadd.f32 %v2572, %v2502
        %v2609 = vadd.f32 %v2573, %v2507
        %v2610 = vadd.f32 %v2574, %v2512
        %v2611 = vadd.f32 %v2575, %v2517
        %v2612 = vadd.f32 %v2576, %v2522
        %v2613 = vadd.f32 %v2577, %v2527
        %v2614 = vadd.f32 %v2578, %v2532
        %v2615 = vadd.f32 %v2579, %v2537
        %v2616 = vadd.f32 %v2580, %v2542
        %2617 = vst [vmem:[#allocation2] sm:$0xff] %v2581
        %2618 = vst [vmem:[#allocation2 + $0x8] sm:$0xff] %v2582
        %2619 = vst [vmem:[#allocation2 + $0x10] sm:$0xff] %v2583
        %2620 = vst [vmem:[#allocation2 + $0x18] sm:$0xff] %v2584
        %2621 = vst [vmem:[#allocation2 + $0x20] sm:$0xff] %v2585
        %2622 = vst [vmem:[#allocation2 + $0x28] sm:$0xff] %v2586
        %2623 = vst [vmem:[#allocation2 + $0x30] sm:$0xff] %v2587
        %2624 = vst [vmem:[#allocation2 + $0x38] sm:$0xff] %v2588
        %2625 = vst [vmem:[#allocation2 + $0x40] sm:$0xff] %v2589
        %2626 = vst [vmem:[#allocation2 + $0x48] sm:$0xff] %v2590
        %2627 = vst [vmem:[#allocation2 + $0x50] sm:$0xff] %v2591
        %2628 = vst [vmem:[#allocation2 + $0x58] sm:$0xff] %v2592
        %2629 = vst [vmem:[#allocation2 + $0x60] sm:$0xff] %v2593
        %2630 = vst [vmem:[#allocation2 + $0x68] sm:$0xff] %v2594
        %2631 = vst [vmem:[#allocation2 + $0x70] sm:$0xff] %v2595
        %2632 = vst [vmem:[#allocation2 + $0x78] sm:$0xff] %v2596
        %2633 = vst [vmem:[#allocation2 + $0x80] sm:$0xff] %v2597
        %2634 = vst [vmem:[#allocation2 + $0x88] sm:$0xff] %v2598
        %2635 = vst [vmem:[#allocation2 + $0x90] sm:$0xff] %v2599
        %2636 = vst [vmem:[#allocation2 + $0x98] sm:$0xff] %v2600
        %2637 = vst [vmem:[#allocation2 + $0xa0] sm:$0xff] %v2601
        %2638 = vst [vmem:[#allocation2 + $0xa8] sm:$0xff] %v2602
        %2639 = vst [vmem:[#allocation2 + $0xb0] sm:$0xff] %v2603
        %2640 = vst [vmem:[#allocation2 + $0xb8] sm:$0xff] %v2604
        %2641 = vst [vmem:[#allocation2 + $0xc0] sm:$0xff] %v2605
        %2642 = vst [vmem:[#allocation2 + $0xc8] sm:$0xff] %v2606
        %2643 = vst [vmem:[#allocation2 + $0xd0] sm:$0xff] %v2607
        %2644 = vst [vmem:[#allocation2 + $0xd8] sm:$0xff] %v2608
        %2645 = vst [vmem:[#allocation2 + $0xe0] sm:$0xff] %v2609
        %2646 = vst [vmem:[#allocation2 + $0xe8] sm:$0xff] %v2610
        %2647 = vst [vmem:[#allocation2 + $0xf0] sm:$0xff] %v2611
        %2648 = vst [vmem:[#allocation2 + $0xf8] sm:$0xff] %v2612
        %2649 = vst [vmem:[#allocation2 + $0x100] sm:$0xff] %v2613
        %2650 = vst [vmem:[#allocation2 + $0x108] sm:$0xff] %v2614
        %2651 = vst [vmem:[#allocation2 + $0x110] sm:$0xff] %v2615
        %2652 = vst [vmem:[#allocation2 + $0x118] sm:$0xff] %v2616
        %v2653 = vld [vmem:[%s206 + $0x14] sm:$0xff]
        %v2654 = vld [vmem:[%s206 + $0x1c] sm:$0xff]
        %v2655 = vld [vmem:[%s206 + $0x24] sm:$0xff]
        %v2656 = vld [vmem:[%s206 + $0x2c] sm:$0xff]
        %v2657 = vld [vmem:[%s206 + $0x34] sm:$0xff]
        %v2658 = vld [vmem:[%s206 + $0x3c] sm:$0xff]
        %v2659 = vld [vmem:[%s206 + $0x44] sm:$0xff]
        %v2660 = vld [vmem:[%s206 + $0x4c] sm:$0xff]
        %v2661 = vld [vmem:[%s206 + $0x54] sm:$0xff]
        %v2662 = vld [vmem:[%s206 + $0x5c] sm:$0xff]
        %v2663 = vld [vmem:[%s206 + $0x64] sm:$0xff]
        %v2664 = vld [vmem:[%s206 + $0x6c] sm:$0xff]
        %v2665 = vld [vmem:[%s206 + $0x74] sm:$0xff]
        %v2666 = vld [vmem:[%s206 + $0x7c] sm:$0xff]
        %v2667 = vld [vmem:[%s206 + $0x84] sm:$0xff]
        %v2668 = vld [vmem:[%s206 + $0x8c] sm:$0xff]
        %v2669 = vld [vmem:[%s206 + $0x94] sm:$0xff]
        %v2670 = vld [vmem:[%s206 + $0x9c] sm:$0xff]
        %v2671 = vld [vmem:[%s206 + $0xa4] sm:$0xff]
        %v2672 = vld [vmem:[%s206 + $0xac] sm:$0xff]
        %v2673 = vld [vmem:[%s206 + $0xb4] sm:$0xff]
        %v2674 = vld [vmem:[%s206 + $0xbc] sm:$0xff]
        %v2675 = vld [vmem:[%s206 + $0xc4] sm:$0xff]
        %v2676 = vld [vmem:[%s206 + $0xcc] sm:$0xff]
        %v2677 = vld [vmem:[%s206 + $0xd4] sm:$0xff]
        %v2678 = vld [vmem:[%s206 + $0xdc] sm:$0xff]
        %v2679 = vld [vmem:[%s206 + $0xe4] sm:$0xff]
        %v2680 = vld [vmem:[%s206 + $0xec] sm:$0xff]
        %v2681 = vld [vmem:[%s206 + $0xf4] sm:$0xff]
        %v2682 = vld [vmem:[%s206 + $0xfc] sm:$0xff]
        %v2683 = vld [vmem:[%s206 + $0x104] sm:$0xff]
        %v2684 = vld [vmem:[%s206 + $0x10c] sm:$0xff]
        %v2685 = vld [vmem:[%s206 + $0x114] sm:$0xff]
        %v2686 = vld [vmem:[%s206 + $0x11c] sm:$0xff]
        %v2687 = vld [vmem:[%s206 + $0x124] sm:$0xff]
        %v2688 = vld [vmem:[%s206 + $0x12c] sm:$0xff]
        %s2689 = scalar_lea.vmem %s210, 20
        %v2690 = vld [vmem:[%s2689] sm:$0xf]
        %v2692 = vsel %vm251, %v2653, 0
        %v2695 = vsel %vm251, %v2654, 0
        %v2698 = vsel %vm251, %v2655, 0
        %v2701 = vsel %vm251, %v2656, 0
        %v2704 = vsel %vm251, %v2657, 0
        %v2707 = vsel %vm251, %v2658, 0
        %v2710 = vsel %vm251, %v2659, 0
        %v2713 = vsel %vm251, %v2660, 0
        %v2716 = vsel %vm251, %v2661, 0
        %v2719 = vsel %vm251, %v2662, 0
        %v2722 = vsel %vm251, %v2663, 0
        %v2725 = vsel %vm251, %v2664, 0
        %v2728 = vsel %vm251, %v2665, 0
        %v2731 = vsel %vm251, %v2666, 0
        %v2734 = vsel %vm251, %v2667, 0
        %v2737 = vsel %vm251, %v2668, 0
        %v2740 = vsel %vm251, %v2669, 0
        %v2743 = vsel %vm251, %v2670, 0
        %v2746 = vsel %vm251, %v2671, 0
        %v2749 = vsel %vm251, %v2672, 0
        %v2752 = vsel %vm251, %v2673, 0
        %v2755 = vsel %vm251, %v2674, 0
        %v2758 = vsel %vm251, %v2675, 0
        %v2761 = vsel %vm251, %v2676, 0
        %v2764 = vsel %vm251, %v2677, 0
        %v2767 = vsel %vm251, %v2678, 0
        %v2770 = vsel %vm251, %v2679, 0
        %v2773 = vsel %vm251, %v2680, 0
        %v2776 = vsel %vm251, %v2681, 0
        %v2779 = vsel %vm251, %v2682, 0
        %v2782 = vsel %vm251, %v2683, 0
        %v2785 = vsel %vm251, %v2684, 0
        %v2788 = vsel %vm251, %v2685, 0
        %v2791 = vsel %vm251, %v2686, 0
        %v2794 = vsel %vm251, %v2687, 0
        %v2797 = vsel %vm251, %v2688, 0
        %v2800 = vsel %vm360, %v2690, 0
        %2802 = vmatprep.subr.mxu0 0.0
        %2803 = vmatpush1.msra.mxu0 0.0
        %2804 = vmatprep.subr.mxu0 0.0
        %2805 = vmatpush1.msra.mxu0 0.0
        %2806 = vmatprep.subr.mxu0 0.0
        %2807 = vmatpush1.msra.mxu0 0.0
        %2808 = vmatprep.subr.mxu0 0.0
        %2809 = vmatpush1.msra.mxu0 0.0
        %2810 = vmatprep.subr.mxu0 0.0
        %2811 = vmatpush1.msra.mxu0 0.0
        %2812 = vmatprep.subr.mxu0 0.0
        %2813 = vmatpush1.msra.mxu0 0.0
        %2814 = vmatprep.subr.mxu0 0.0
        %2815 = vmatpush1.msra.mxu0 0.0
        %2816 = vmatprep.subr.mxu0 0.0
        %2817 = vmatpush1.msra.mxu0 0.0
        %2818 = vmatprep.subr.mxu0 0.0
        %2819 = vmatpush1.msra.mxu0 0.0
        %2820 = vmatprep.subr.mxu0 0.0
        %2821 = vmatpush1.msra.mxu0 0.0
        %2822 = vmatprep.subr.mxu0 0.0
        %2823 = vmatpush1.msra.mxu0 0.0
        %2824 = vmatprep.subr.mxu0 0.0
        %2825 = vmatpush1.msra.mxu0 0.0
        %2826 = vmatprep.subr.mxu0 0.0
        %2827 = vmatpush1.msra.mxu0 0.0
        %2828 = vmatprep.subr.mxu0 0.0
        %2829 = vmatpush1.msra.mxu0 0.0
        %2830 = vmatprep.subr.mxu0 0.0
        %2831 = vmatpush1.msra.mxu0 0.0
        %2832 = vmatprep.subr.mxu0 0.0
        %2833 = vmatpush1.msra.mxu0 %v2800
        %2834 = vmatprep.subr.mxu0 0.0
        %2835 = vmatpush2.msra.mxu0 0.0
        %2836 = vmatprep.subr.mxu0 0.0
        %2837 = vmatpush2.msra.mxu0 0.0
        %2838 = vmatprep.subr.mxu0 0.0
        %2839 = vmatpush2.msra.mxu0 0.0
        %2840 = vmatprep.subr.mxu0 0.0
        %2841 = vmatpush2.msra.mxu0 0.0
        %2842 = vmatprep.subr.mxu0 0.0
        %2843 = vmatpush2.msra.mxu0 0.0
        %2844 = vmatprep.subr.mxu0 0.0
        %2845 = vmatpush2.msra.mxu0 0.0
        %2846 = vmatprep.subr.mxu0 0.0
        %2847 = vmatpush2.msra.mxu0 0.0
        %2848 = vmatprep.subr.mxu0 0.0
        %2849 = vmatpush2.msra.mxu0 0.0
        %2850 = vmatprep.subr.mxu0 0.0
        %2851 = vmatpush2.msra.mxu0 0.0
        %2852 = vmatprep.subr.mxu0 0.0
        %2853 = vmatpush2.msra.mxu0 0.0
        %2854 = vmatprep.subr.mxu0 0.0
        %2855 = vmatpush2.msra.mxu0 0.0
        %2856 = vmatprep.subr.mxu0 0.0
        %2857 = vmatpush2.msra.mxu0 0.0
        %2858 = vmatprep.subr.mxu0 0.0
        %2859 = vmatpush2.msra.mxu0 0.0
        %2860 = vmatprep.subr.mxu0 0.0
        %2861 = vmatpush2.msra.mxu0 0.0
        %2862 = vmatprep.subr.mxu0 0.0
        %2863 = vmatpush2.msra.mxu0 0.0
        %2864 = vmatprep.subr.mxu0 0.0
        %2865 = vmatpush2.msra.mxu0 0.0
        %2866 = vmatprep.mubr.f32.mxu0 0.0
        %2867 = vmatmul.mubr.f32.gmra.mxu0 %v2692
        %v2868 = vpop.f32.mrf.mxu0
        %v2869 = vadd.f32 0.0, %v2868
        %v2870 = vpop.f32.mrf.mxu0
        %2871 = vmatprep.mubr.f32.mxu0 0.0
        %2872 = vmatmul.mubr.f32.gmra.mxu0 %v2695
        %v2873 = vpop.f32.mrf.mxu0
        %v2874 = vadd.f32 0.0, %v2873
        %v2875 = vpop.f32.mrf.mxu0
        %2876 = vmatprep.mubr.f32.mxu0 0.0
        %2877 = vmatmul.mubr.f32.gmra.mxu0 %v2698
        %v2878 = vpop.f32.mrf.mxu0
        %v2879 = vadd.f32 0.0, %v2878
        %v2880 = vpop.f32.mrf.mxu0
        %2881 = vmatprep.mubr.f32.mxu0 0.0
        %2882 = vmatmul.mubr.f32.gmra.mxu0 %v2701
        %v2883 = vpop.f32.mrf.mxu0
        %v2884 = vadd.f32 0.0, %v2883
        %v2885 = vpop.f32.mrf.mxu0
        %2886 = vmatprep.mubr.f32.mxu0 0.0
        %2887 = vmatmul.mubr.f32.gmra.mxu0 %v2704
        %v2888 = vpop.f32.mrf.mxu0
        %v2889 = vadd.f32 0.0, %v2888
        %v2890 = vpop.f32.mrf.mxu0
        %2891 = vmatprep.mubr.f32.mxu0 0.0
        %2892 = vmatmul.mubr.f32.gmra.mxu0 %v2707
        %v2893 = vpop.f32.mrf.mxu0
        %v2894 = vadd.f32 0.0, %v2893
        %v2895 = vpop.f32.mrf.mxu0
        %2896 = vmatprep.mubr.f32.mxu0 0.0
        %2897 = vmatmul.mubr.f32.gmra.mxu0 %v2710
        %v2898 = vpop.f32.mrf.mxu0
        %v2899 = vadd.f32 0.0, %v2898
        %v2900 = vpop.f32.mrf.mxu0
        %2901 = vmatprep.mubr.f32.mxu0 0.0
        %2902 = vmatmul.mubr.f32.gmra.mxu0 %v2713
        %v2903 = vpop.f32.mrf.mxu0
        %v2904 = vadd.f32 0.0, %v2903
        %v2905 = vpop.f32.mrf.mxu0
        %2906 = vmatprep.mubr.f32.mxu0 0.0
        %2907 = vmatmul.mubr.f32.gmra.mxu0 %v2716
        %v2908 = vpop.f32.mrf.mxu0
        %v2909 = vadd.f32 0.0, %v2908
        %v2910 = vpop.f32.mrf.mxu0
        %2911 = vmatprep.mubr.f32.mxu0 0.0
        %2912 = vmatmul.mubr.f32.gmra.mxu0 %v2719
        %v2913 = vpop.f32.mrf.mxu0
        %v2914 = vadd.f32 0.0, %v2913
        %v2915 = vpop.f32.mrf.mxu0
        %2916 = vmatprep.mubr.f32.mxu0 0.0
        %2917 = vmatmul.mubr.f32.gmra.mxu0 %v2722
        %v2918 = vpop.f32.mrf.mxu0
        %v2919 = vadd.f32 0.0, %v2918
        %v2920 = vpop.f32.mrf.mxu0
        %2921 = vmatprep.mubr.f32.mxu0 0.0
        %2922 = vmatmul.mubr.f32.gmra.mxu0 %v2725
        %v2923 = vpop.f32.mrf.mxu0
        %v2924 = vadd.f32 0.0, %v2923
        %v2925 = vpop.f32.mrf.mxu0
        %2926 = vmatprep.mubr.f32.mxu0 0.0
        %2927 = vmatmul.mubr.f32.gmra.mxu0 %v2728
        %v2928 = vpop.f32.mrf.mxu0
        %v2929 = vadd.f32 0.0, %v2928
        %v2930 = vpop.f32.mrf.mxu0
        %2931 = vmatprep.mubr.f32.mxu0 0.0
        %2932 = vmatmul.mubr.f32.gmra.mxu0 %v2731
        %v2933 = vpop.f32.mrf.mxu0
        %v2934 = vadd.f32 0.0, %v2933
        %v2935 = vpop.f32.mrf.mxu0
        %2936 = vmatprep.mubr.f32.mxu0 0.0
        %2937 = vmatmul.mubr.f32.gmra.mxu0 %v2734
        %v2938 = vpop.f32.mrf.mxu0
        %v2939 = vadd.f32 0.0, %v2938
        %v2940 = vpop.f32.mrf.mxu0
        %2941 = vmatprep.mubr.f32.mxu0 0.0
        %2942 = vmatmul.mubr.f32.gmra.mxu0 %v2737
        %v2943 = vpop.f32.mrf.mxu0
        %v2944 = vadd.f32 0.0, %v2943
        %v2945 = vpop.f32.mrf.mxu0
        %2946 = vmatprep.mubr.f32.mxu0 0.0
        %2947 = vmatmul.mubr.f32.gmra.mxu0 %v2740
        %v2948 = vpop.f32.mrf.mxu0
        %v2949 = vadd.f32 0.0, %v2948
        %v2950 = vpop.f32.mrf.mxu0
        %2951 = vmatprep.mubr.f32.mxu0 0.0
        %2952 = vmatmul.mubr.f32.gmra.mxu0 %v2743
        %v2953 = vpop.f32.mrf.mxu0
        %v2954 = vadd.f32 0.0, %v2953
        %v2955 = vpop.f32.mrf.mxu0
        %2956 = vmatprep.mubr.f32.mxu0 0.0
        %2957 = vmatmul.mubr.f32.gmra.mxu0 %v2746
        %v2958 = vpop.f32.mrf.mxu0
        %v2959 = vadd.f32 0.0, %v2958
        %v2960 = vpop.f32.mrf.mxu0
        %2961 = vmatprep.mubr.f32.mxu0 0.0
        %2962 = vmatmul.mubr.f32.gmra.mxu0 %v2749
        %v2963 = vpop.f32.mrf.mxu0
        %v2964 = vadd.f32 0.0, %v2963
        %v2965 = vpop.f32.mrf.mxu0
        %2966 = vmatprep.mubr.f32.mxu0 0.0
        %2967 = vmatmul.mubr.f32.gmra.mxu0 %v2752
        %v2968 = vpop.f32.mrf.mxu0
        %v2969 = vadd.f32 0.0, %v2968
        %v2970 = vpop.f32.mrf.mxu0
        %2971 = vmatprep.mubr.f32.mxu0 0.0
        %2972 = vmatmul.mubr.f32.gmra.mxu0 %v2755
        %v2973 = vpop.f32.mrf.mxu0
        %v2974 = vadd.f32 0.0, %v2973
        %v2975 = vpop.f32.mrf.mxu0
        %2976 = vmatprep.mubr.f32.mxu0 0.0
        %2977 = vmatmul.mubr.f32.gmra.mxu0 %v2758
        %v2978 = vpop.f32.mrf.mxu0
        %v2979 = vadd.f32 0.0, %v2978
        %v2980 = vpop.f32.mrf.mxu0
        %2981 = vmatprep.mubr.f32.mxu0 0.0
        %2982 = vmatmul.mubr.f32.gmra.mxu0 %v2761
        %v2983 = vpop.f32.mrf.mxu0
        %v2984 = vadd.f32 0.0, %v2983
        %v2985 = vpop.f32.mrf.mxu0
        %2986 = vmatprep.mubr.f32.mxu0 0.0
        %2987 = vmatmul.mubr.f32.gmra.mxu0 %v2764
        %v2988 = vpop.f32.mrf.mxu0
        %v2989 = vadd.f32 0.0, %v2988
        %v2990 = vpop.f32.mrf.mxu0
        %2991 = vmatprep.mubr.f32.mxu0 0.0
        %2992 = vmatmul.mubr.f32.gmra.mxu0 %v2767
        %v2993 = vpop.f32.mrf.mxu0
        %v2994 = vadd.f32 0.0, %v2993
        %v2995 = vpop.f32.mrf.mxu0
        %2996 = vmatprep.mubr.f32.mxu0 0.0
        %2997 = vmatmul.mubr.f32.gmra.mxu0 %v2770
        %v2998 = vpop.f32.mrf.mxu0
        %v2999 = vadd.f32 0.0, %v2998
        %v3000 = vpop.f32.mrf.mxu0
        %3001 = vmatprep.mubr.f32.mxu0 0.0
        %3002 = vmatmul.mubr.f32.gmra.mxu0 %v2773
        %v3003 = vpop.f32.mrf.mxu0
        %v3004 = vadd.f32 0.0, %v3003
        %v3005 = vpop.f32.mrf.mxu0
        %3006 = vmatprep.mubr.f32.mxu0 0.0
        %3007 = vmatmul.mubr.f32.gmra.mxu0 %v2776
        %v3008 = vpop.f32.mrf.mxu0
        %v3009 = vadd.f32 0.0, %v3008
        %v3010 = vpop.f32.mrf.mxu0
        %3011 = vmatprep.mubr.f32.mxu0 0.0
        %3012 = vmatmul.mubr.f32.gmra.mxu0 %v2779
        %v3013 = vpop.f32.mrf.mxu0
        %v3014 = vadd.f32 0.0, %v3013
        %v3015 = vpop.f32.mrf.mxu0
        %3016 = vmatprep.mubr.f32.mxu0 0.0
        %3017 = vmatmul.mubr.f32.gmra.mxu0 %v2782
        %v3018 = vpop.f32.mrf.mxu0
        %v3019 = vadd.f32 0.0, %v3018
        %v3020 = vpop.f32.mrf.mxu0
        %3021 = vmatprep.mubr.f32.mxu0 0.0
        %3022 = vmatmul.mubr.f32.gmra.mxu0 %v2785
        %v3023 = vpop.f32.mrf.mxu0
        %v3024 = vadd.f32 0.0, %v3023
        %v3025 = vpop.f32.mrf.mxu0
        %3026 = vmatprep.mubr.f32.mxu0 0.0
        %3027 = vmatmul.mubr.f32.gmra.mxu0 %v2788
        %v3028 = vpop.f32.mrf.mxu0
        %v3029 = vadd.f32 0.0, %v3028
        %v3030 = vpop.f32.mrf.mxu0
        %3031 = vmatprep.mubr.f32.mxu0 0.0
        %3032 = vmatmul.mubr.f32.gmra.mxu0 %v2791
        %v3033 = vpop.f32.mrf.mxu0
        %v3034 = vadd.f32 0.0, %v3033
        %v3035 = vpop.f32.mrf.mxu0
        %3036 = vmatprep.mubr.f32.mxu0 0.0
        %3037 = vmatmul.mubr.f32.gmra.mxu0 %v2794
        %v3038 = vpop.f32.mrf.mxu0
        %v3039 = vadd.f32 0.0, %v3038
        %v3040 = vpop.f32.mrf.mxu0
        %3041 = vmatprep.mubr.f32.mxu0 0.0
        %3042 = vmatmul.mubr.f32.gmra.mxu0 %v2797
        %v3043 = vpop.f32.mrf.mxu0
        %v3044 = vadd.f32 0.0, %v3043
        %v3045 = vpop.f32.mrf.mxu0
        %3046 = vdwg.mxu0
        %v3047 = vld [vmem:[#allocation2] sm:$0xff]
        %v3048 = vld [vmem:[#allocation2 + $0x8] sm:$0xff]
        %v3049 = vld [vmem:[#allocation2 + $0x10] sm:$0xff]
        %v3050 = vld [vmem:[#allocation2 + $0x18] sm:$0xff]
        %v3051 = vld [vmem:[#allocation2 + $0x20] sm:$0xff]
        %v3052 = vld [vmem:[#allocation2 + $0x28] sm:$0xff]
        %v3053 = vld [vmem:[#allocation2 + $0x30] sm:$0xff]
        %v3054 = vld [vmem:[#allocation2 + $0x38] sm:$0xff]
        %v3055 = vld [vmem:[#allocation2 + $0x40] sm:$0xff]
        %v3056 = vld [vmem:[#allocation2 + $0x48] sm:$0xff]
        %v3057 = vld [vmem:[#allocation2 + $0x50] sm:$0xff]
        %v3058 = vld [vmem:[#allocation2 + $0x58] sm:$0xff]
        %v3059 = vld [vmem:[#allocation2 + $0x60] sm:$0xff]
        %v3060 = vld [vmem:[#allocation2 + $0x68] sm:$0xff]
        %v3061 = vld [vmem:[#allocation2 + $0x70] sm:$0xff]
        %v3062 = vld [vmem:[#allocation2 + $0x78] sm:$0xff]
        %v3063 = vld [vmem:[#allocation2 + $0x80] sm:$0xff]
        %v3064 = vld [vmem:[#allocation2 + $0x88] sm:$0xff]
        %v3065 = vld [vmem:[#allocation2 + $0x90] sm:$0xff]
        %v3066 = vld [vmem:[#allocation2 + $0x98] sm:$0xff]
        %v3067 = vld [vmem:[#allocation2 + $0xa0] sm:$0xff]
        %v3068 = vld [vmem:[#allocation2 + $0xa8] sm:$0xff]
        %v3069 = vld [vmem:[#allocation2 + $0xb0] sm:$0xff]
        %v3070 = vld [vmem:[#allocation2 + $0xb8] sm:$0xff]
        %v3071 = vld [vmem:[#allocation2 + $0xc0] sm:$0xff]
        %v3072 = vld [vmem:[#allocation2 + $0xc8] sm:$0xff]
        %v3073 = vld [vmem:[#allocation2 + $0xd0] sm:$0xff]
        %v3074 = vld [vmem:[#allocation2 + $0xd8] sm:$0xff]
        %v3075 = vld [vmem:[#allocation2 + $0xe0] sm:$0xff]
        %v3076 = vld [vmem:[#allocation2 + $0xe8] sm:$0xff]
        %v3077 = vld [vmem:[#allocation2 + $0xf0] sm:$0xff]
        %v3078 = vld [vmem:[#allocation2 + $0xf8] sm:$0xff]
        %v3079 = vld [vmem:[#allocation2 + $0x100] sm:$0xff]
        %v3080 = vld [vmem:[#allocation2 + $0x108] sm:$0xff]
        %v3081 = vld [vmem:[#allocation2 + $0x110] sm:$0xff]
        %v3082 = vld [vmem:[#allocation2 + $0x118] sm:$0xff]
        %v3083 = vadd.f32 %v3047, %v2869
        %v3084 = vadd.f32 %v3048, %v2874
        %v3085 = vadd.f32 %v3049, %v2879
        %v3086 = vadd.f32 %v3050, %v2884
        %v3087 = vadd.f32 %v3051, %v2889
        %v3088 = vadd.f32 %v3052, %v2894
        %v3089 = vadd.f32 %v3053, %v2899
        %v3090 = vadd.f32 %v3054, %v2904
        %v3091 = vadd.f32 %v3055, %v2909
        %v3092 = vadd.f32 %v3056, %v2914
        %v3093 = vadd.f32 %v3057, %v2919
        %v3094 = vadd.f32 %v3058, %v2924
        %v3095 = vadd.f32 %v3059, %v2929
        %v3096 = vadd.f32 %v3060, %v2934
        %v3097 = vadd.f32 %v3061, %v2939
        %v3098 = vadd.f32 %v3062, %v2944
        %v3099 = vadd.f32 %v3063, %v2949
        %v3100 = vadd.f32 %v3064, %v2954
        %v3101 = vadd.f32 %v3065, %v2959
        %v3102 = vadd.f32 %v3066, %v2964
        %v3103 = vadd.f32 %v3067, %v2969
        %v3104 = vadd.f32 %v3068, %v2974
        %v3105 = vadd.f32 %v3069, %v2979
        %v3106 = vadd.f32 %v3070, %v2984
        %v3107 = vadd.f32 %v3071, %v2989
        %v3108 = vadd.f32 %v3072, %v2994
        %v3109 = vadd.f32 %v3073, %v2999
        %v3110 = vadd.f32 %v3074, %v3004
        %v3111 = vadd.f32 %v3075, %v3009
        %v3112 = vadd.f32 %v3076, %v3014
        %v3113 = vadd.f32 %v3077, %v3019
        %v3114 = vadd.f32 %v3078, %v3024
        %v3115 = vadd.f32 %v3079, %v3029
        %v3116 = vadd.f32 %v3080, %v3034
        %v3117 = vadd.f32 %v3081, %v3039
        %v3118 = vadd.f32 %v3082, %v3044
        %3119 = vst [vmem:[#allocation2] sm:$0xff] %v3083
        %3120 = vst [vmem:[#allocation2 + $0x8] sm:$0xff] %v3084
        %3121 = vst [vmem:[#allocation2 + $0x10] sm:$0xff] %v3085
        %3122 = vst [vmem:[#allocation2 + $0x18] sm:$0xff] %v3086
        %3123 = vst [vmem:[#allocation2 + $0x20] sm:$0xff] %v3087
        %3124 = vst [vmem:[#allocation2 + $0x28] sm:$0xff] %v3088
        %3125 = vst [vmem:[#allocation2 + $0x30] sm:$0xff] %v3089
        %3126 = vst [vmem:[#allocation2 + $0x38] sm:$0xff] %v3090
        %3127 = vst [vmem:[#allocation2 + $0x40] sm:$0xff] %v3091
        %3128 = vst [vmem:[#allocation2 + $0x48] sm:$0xff] %v3092
        %3129 = vst [vmem:[#allocation2 + $0x50] sm:$0xff] %v3093
        %3130 = vst [vmem:[#allocation2 + $0x58] sm:$0xff] %v3094
        %3131 = vst [vmem:[#allocation2 + $0x60] sm:$0xff] %v3095
        %3132 = vst [vmem:[#allocation2 + $0x68] sm:$0xff] %v3096
        %3133 = vst [vmem:[#allocation2 + $0x70] sm:$0xff] %v3097
        %3134 = vst [vmem:[#allocation2 + $0x78] sm:$0xff] %v3098
        %3135 = vst [vmem:[#allocation2 + $0x80] sm:$0xff] %v3099
        %3136 = vst [vmem:[#allocation2 + $0x88] sm:$0xff] %v3100
        %3137 = vst [vmem:[#allocation2 + $0x90] sm:$0xff] %v3101
        %3138 = vst [vmem:[#allocation2 + $0x98] sm:$0xff] %v3102
        %3139 = vst [vmem:[#allocation2 + $0xa0] sm:$0xff] %v3103
        %3140 = vst [vmem:[#allocation2 + $0xa8] sm:$0xff] %v3104
        %3141 = vst [vmem:[#allocation2 + $0xb0] sm:$0xff] %v3105
        %3142 = vst [vmem:[#allocation2 + $0xb8] sm:$0xff] %v3106
        %3143 = vst [vmem:[#allocation2 + $0xc0] sm:$0xff] %v3107
        %3144 = vst [vmem:[#allocation2 + $0xc8] sm:$0xff] %v3108
        %3145 = vst [vmem:[#allocation2 + $0xd0] sm:$0xff] %v3109
        %3146 = vst [vmem:[#allocation2 + $0xd8] sm:$0xff] %v3110
        %3147 = vst [vmem:[#allocation2 + $0xe0] sm:$0xff] %v3111
        %3148 = vst [vmem:[#allocation2 + $0xe8] sm:$0xff] %v3112
        %3149 = vst [vmem:[#allocation2 + $0xf0] sm:$0xff] %v3113
        %3150 = vst [vmem:[#allocation2 + $0xf8] sm:$0xff] %v3114
        %3151 = vst [vmem:[#allocation2 + $0x100] sm:$0xff] %v3115
        %3152 = vst [vmem:[#allocation2 + $0x108] sm:$0xff] %v3116
        %3153 = vst [vmem:[#allocation2 + $0x110] sm:$0xff] %v3117
        %3154 = vst [vmem:[#allocation2 + $0x118] sm:$0xff] %v3118
        %v3155 = vld [vmem:[%s206 + $0x24] sm:$0xff]
        %v3156 = vld [vmem:[%s206 + $0x2c] sm:$0xff]
        %v3157 = vld [vmem:[%s206 + $0x34] sm:$0xff]
        %v3158 = vld [vmem:[%s206 + $0x3c] sm:$0xff]
        %v3159 = vld [vmem:[%s206 + $0x44] sm:$0xff]
        %v3160 = vld [vmem:[%s206 + $0x4c] sm:$0xff]
        %v3161 = vld [vmem:[%s206 + $0x54] sm:$0xff]
        %v3162 = vld [vmem:[%s206 + $0x5c] sm:$0xff]
        %v3163 = vld [vmem:[%s206 + $0x64] sm:$0xff]
        %v3164 = vld [vmem:[%s206 + $0x6c] sm:$0xff]
        %v3165 = vld [vmem:[%s206 + $0x74] sm:$0xff]
        %v3166 = vld [vmem:[%s206 + $0x7c] sm:$0xff]
        %v3167 = vld [vmem:[%s206 + $0x84] sm:$0xff]
        %v3168 = vld [vmem:[%s206 + $0x8c] sm:$0xff]
        %v3169 = vld [vmem:[%s206 + $0x94] sm:$0xff]
        %v3170 = vld [vmem:[%s206 + $0x9c] sm:$0xff]
        %v3171 = vld [vmem:[%s206 + $0xa4] sm:$0xff]
        %v3172 = vld [vmem:[%s206 + $0xac] sm:$0xff]
        %v3173 = vld [vmem:[%s206 + $0xb4] sm:$0xff]
        %v3174 = vld [vmem:[%s206 + $0xbc] sm:$0xff]
        %v3175 = vld [vmem:[%s206 + $0xc4] sm:$0xff]
        %v3176 = vld [vmem:[%s206 + $0xcc] sm:$0xff]
        %v3177 = vld [vmem:[%s206 + $0xd4] sm:$0xff]
        %v3178 = vld [vmem:[%s206 + $0xdc] sm:$0xff]
        %v3179 = vld [vmem:[%s206 + $0xe4] sm:$0xff]
        %v3180 = vld [vmem:[%s206 + $0xec] sm:$0xff]
        %v3181 = vld [vmem:[%s206 + $0xf4] sm:$0xff]
        %v3182 = vld [vmem:[%s206 + $0xfc] sm:$0xff]
        %v3183 = vld [vmem:[%s206 + $0x104] sm:$0xff]
        %v3184 = vld [vmem:[%s206 + $0x10c] sm:$0xff]
        %v3185 = vld [vmem:[%s206 + $0x114] sm:$0xff]
        %v3186 = vld [vmem:[%s206 + $0x11c] sm:$0xff]
        %v3187 = vld [vmem:[%s206 + $0x124] sm:$0xff]
        %v3188 = vld [vmem:[%s206 + $0x12c] sm:$0xff]
        %v3189 = vld [vmem:[%s206 + $0x134] sm:$0xff]
        %v3190 = vld [vmem:[%s206 + $0x13c] sm:$0xff]
        %s3191 = scalar_lea.vmem %s210, 24
        %v3192 = vld [vmem:[%s3191] sm:$0xf]
        %v3194 = vsel %vm251, %v3155, 0
        %v3197 = vsel %vm251, %v3156, 0
        %v3200 = vsel %vm251, %v3157, 0
        %v3203 = vsel %vm251, %v3158, 0
        %v3206 = vsel %vm251, %v3159, 0
        %v3209 = vsel %vm251, %v3160, 0
        %v3212 = vsel %vm251, %v3161, 0
        %v3215 = vsel %vm251, %v3162, 0
        %v3218 = vsel %vm251, %v3163, 0
        %v3221 = vsel %vm251, %v3164, 0
        %v3224 = vsel %vm251, %v3165, 0
        %v3227 = vsel %vm251, %v3166, 0
        %v3230 = vsel %vm251, %v3167, 0
        %v3233 = vsel %vm251, %v3168, 0
        %v3236 = vsel %vm251, %v3169, 0
        %v3239 = vsel %vm251, %v3170, 0
        %v3242 = vsel %vm251, %v3171, 0
        %v3245 = vsel %vm251, %v3172, 0
        %v3248 = vsel %vm251, %v3173, 0
        %v3251 = vsel %vm251, %v3174, 0
        %v3254 = vsel %vm251, %v3175, 0
        %v3257 = vsel %vm251, %v3176, 0
        %v3260 = vsel %vm251, %v3177, 0
        %v3263 = vsel %vm251, %v3178, 0
        %v3266 = vsel %vm251, %v3179, 0
        %v3269 = vsel %vm251, %v3180, 0
        %v3272 = vsel %vm251, %v3181, 0
        %v3275 = vsel %vm251, %v3182, 0
        %v3278 = vsel %vm251, %v3183, 0
        %v3281 = vsel %vm251, %v3184, 0
        %v3284 = vsel %vm251, %v3185, 0
        %v3287 = vsel %vm251, %v3186, 0
        %v3290 = vsel %vm251, %v3187, 0
        %v3293 = vsel %vm251, %v3188, 0
        %v3296 = vsel %vm251, %v3189, 0
        %v3299 = vsel %vm251, %v3190, 0
        %v3302 = vsel %vm360, %v3192, 0
        %3304 = vmatprep.subr.mxu0 0.0
        %3305 = vmatpush1.msra.mxu0 0.0
        %3306 = vmatprep.subr.mxu0 0.0
        %3307 = vmatpush1.msra.mxu0 0.0
        %3308 = vmatprep.subr.mxu0 0.0
        %3309 = vmatpush1.msra.mxu0 0.0
        %3310 = vmatprep.subr.mxu0 0.0
        %3311 = vmatpush1.msra.mxu0 0.0
        %3312 = vmatprep.subr.mxu0 0.0
        %3313 = vmatpush1.msra.mxu0 0.0
        %3314 = vmatprep.subr.mxu0 0.0
        %3315 = vmatpush1.msra.mxu0 0.0
        %3316 = vmatprep.subr.mxu0 0.0
        %3317 = vmatpush1.msra.mxu0 0.0
        %3318 = vmatprep.subr.mxu0 0.0
        %3319 = vmatpush1.msra.mxu0 0.0
        %3320 = vmatprep.subr.mxu0 0.0
        %3321 = vmatpush1.msra.mxu0 0.0
        %3322 = vmatprep.subr.mxu0 0.0
        %3323 = vmatpush1.msra.mxu0 0.0
        %3324 = vmatprep.subr.mxu0 0.0
        %3325 = vmatpush1.msra.mxu0 0.0
        %3326 = vmatprep.subr.mxu0 0.0
        %3327 = vmatpush1.msra.mxu0 0.0
        %3328 = vmatprep.subr.mxu0 0.0
        %3329 = vmatpush1.msra.mxu0 0.0
        %3330 = vmatprep.subr.mxu0 0.0
        %3331 = vmatpush1.msra.mxu0 0.0
        %3332 = vmatprep.subr.mxu0 0.0
        %3333 = vmatpush1.msra.mxu0 0.0
        %3334 = vmatprep.subr.mxu0 0.0
        %3335 = vmatpush1.msra.mxu0 %v3302
        %3336 = vmatprep.subr.mxu0 0.0
        %3337 = vmatpush2.msra.mxu0 0.0
        %3338 = vmatprep.subr.mxu0 0.0
        %3339 = vmatpush2.msra.mxu0 0.0
        %3340 = vmatprep.subr.mxu0 0.0
        %3341 = vmatpush2.msra.mxu0 0.0
        %3342 = vmatprep.subr.mxu0 0.0
        %3343 = vmatpush2.msra.mxu0 0.0
        %3344 = vmatprep.subr.mxu0 0.0
        %3345 = vmatpush2.msra.mxu0 0.0
        %3346 = vmatprep.subr.mxu0 0.0
        %3347 = vmatpush2.msra.mxu0 0.0
        %3348 = vmatprep.subr.mxu0 0.0
        %3349 = vmatpush2.msra.mxu0 0.0
        %3350 = vmatprep.subr.mxu0 0.0
        %3351 = vmatpush2.msra.mxu0 0.0
        %3352 = vmatprep.subr.mxu0 0.0
        %3353 = vmatpush2.msra.mxu0 0.0
        %3354 = vmatprep.subr.mxu0 0.0
        %3355 = vmatpush2.msra.mxu0 0.0
        %3356 = vmatprep.subr.mxu0 0.0
        %3357 = vmatpush2.msra.mxu0 0.0
        %3358 = vmatprep.subr.mxu0 0.0
        %3359 = vmatpush2.msra.mxu0 0.0
        %3360 = vmatprep.subr.mxu0 0.0
        %3361 = vmatpush2.msra.mxu0 0.0
        %3362 = vmatprep.subr.mxu0 0.0
        %3363 = vmatpush2.msra.mxu0 0.0
        %3364 = vmatprep.subr.mxu0 0.0
        %3365 = vmatpush2.msra.mxu0 0.0
        %3366 = vmatprep.subr.mxu0 0.0
        %3367 = vmatpush2.msra.mxu0 0.0
        %3368 = vmatprep.mubr.f32.mxu0 0.0
        %3369 = vmatmul.mubr.f32.gmra.mxu0 %v3194
        %v3370 = vpop.f32.mrf.mxu0
        %v3371 = vadd.f32 0.0, %v3370
        %v3372 = vpop.f32.mrf.mxu0
        %3373 = vmatprep.mubr.f32.mxu0 0.0
        %3374 = vmatmul.mubr.f32.gmra.mxu0 %v3197
        %v3375 = vpop.f32.mrf.mxu0
        %v3376 = vadd.f32 0.0, %v3375
        %v3377 = vpop.f32.mrf.mxu0
        %3378 = vmatprep.mubr.f32.mxu0 0.0
        %3379 = vmatmul.mubr.f32.gmra.mxu0 %v3200
        %v3380 = vpop.f32.mrf.mxu0
        %v3381 = vadd.f32 0.0, %v3380
        %v3382 = vpop.f32.mrf.mxu0
        %3383 = vmatprep.mubr.f32.mxu0 0.0
        %3384 = vmatmul.mubr.f32.gmra.mxu0 %v3203
        %v3385 = vpop.f32.mrf.mxu0
        %v3386 = vadd.f32 0.0, %v3385
        %v3387 = vpop.f32.mrf.mxu0
        %3388 = vmatprep.mubr.f32.mxu0 0.0
        %3389 = vmatmul.mubr.f32.gmra.mxu0 %v3206
        %v3390 = vpop.f32.mrf.mxu0
        %v3391 = vadd.f32 0.0, %v3390
        %v3392 = vpop.f32.mrf.mxu0
        %3393 = vmatprep.mubr.f32.mxu0 0.0
        %3394 = vmatmul.mubr.f32.gmra.mxu0 %v3209
        %v3395 = vpop.f32.mrf.mxu0
        %v3396 = vadd.f32 0.0, %v3395
        %v3397 = vpop.f32.mrf.mxu0
        %3398 = vmatprep.mubr.f32.mxu0 0.0
        %3399 = vmatmul.mubr.f32.gmra.mxu0 %v3212
        %v3400 = vpop.f32.mrf.mxu0
        %v3401 = vadd.f32 0.0, %v3400
        %v3402 = vpop.f32.mrf.mxu0
        %3403 = vmatprep.mubr.f32.mxu0 0.0
        %3404 = vmatmul.mubr.f32.gmra.mxu0 %v3215
        %v3405 = vpop.f32.mrf.mxu0
        %v3406 = vadd.f32 0.0, %v3405
        %v3407 = vpop.f32.mrf.mxu0
        %3408 = vmatprep.mubr.f32.mxu0 0.0
        %3409 = vmatmul.mubr.f32.gmra.mxu0 %v3218
        %v3410 = vpop.f32.mrf.mxu0
        %v3411 = vadd.f32 0.0, %v3410
        %v3412 = vpop.f32.mrf.mxu0
        %3413 = vmatprep.mubr.f32.mxu0 0.0
        %3414 = vmatmul.mubr.f32.gmra.mxu0 %v3221
        %v3415 = vpop.f32.mrf.mxu0
        %v3416 = vadd.f32 0.0, %v3415
        %v3417 = vpop.f32.mrf.mxu0
        %3418 = vmatprep.mubr.f32.mxu0 0.0
        %3419 = vmatmul.mubr.f32.gmra.mxu0 %v3224
        %v3420 = vpop.f32.mrf.mxu0
        %v3421 = vadd.f32 0.0, %v3420
        %v3422 = vpop.f32.mrf.mxu0
        %3423 = vmatprep.mubr.f32.mxu0 0.0
        %3424 = vmatmul.mubr.f32.gmra.mxu0 %v3227
        %v3425 = vpop.f32.mrf.mxu0
        %v3426 = vadd.f32 0.0, %v3425
        %v3427 = vpop.f32.mrf.mxu0
        %3428 = vmatprep.mubr.f32.mxu0 0.0
        %3429 = vmatmul.mubr.f32.gmra.mxu0 %v3230
        %v3430 = vpop.f32.mrf.mxu0
        %v3431 = vadd.f32 0.0, %v3430
        %v3432 = vpop.f32.mrf.mxu0
        %3433 = vmatprep.mubr.f32.mxu0 0.0
        %3434 = vmatmul.mubr.f32.gmra.mxu0 %v3233
        %v3435 = vpop.f32.mrf.mxu0
        %v3436 = vadd.f32 0.0, %v3435
        %v3437 = vpop.f32.mrf.mxu0
        %3438 = vmatprep.mubr.f32.mxu0 0.0
        %3439 = vmatmul.mubr.f32.gmra.mxu0 %v3236
        %v3440 = vpop.f32.mrf.mxu0
        %v3441 = vadd.f32 0.0, %v3440
        %v3442 = vpop.f32.mrf.mxu0
        %3443 = vmatprep.mubr.f32.mxu0 0.0
        %3444 = vmatmul.mubr.f32.gmra.mxu0 %v3239
        %v3445 = vpop.f32.mrf.mxu0
        %v3446 = vadd.f32 0.0, %v3445
        %v3447 = vpop.f32.mrf.mxu0
        %3448 = vmatprep.mubr.f32.mxu0 0.0
        %3449 = vmatmul.mubr.f32.gmra.mxu0 %v3242
        %v3450 = vpop.f32.mrf.mxu0
        %v3451 = vadd.f32 0.0, %v3450
        %v3452 = vpop.f32.mrf.mxu0
        %3453 = vmatprep.mubr.f32.mxu0 0.0
        %3454 = vmatmul.mubr.f32.gmra.mxu0 %v3245
        %v3455 = vpop.f32.mrf.mxu0
        %v3456 = vadd.f32 0.0, %v3455
        %v3457 = vpop.f32.mrf.mxu0
        %3458 = vmatprep.mubr.f32.mxu0 0.0
        %3459 = vmatmul.mubr.f32.gmra.mxu0 %v3248
        %v3460 = vpop.f32.mrf.mxu0
        %v3461 = vadd.f32 0.0, %v3460
        %v3462 = vpop.f32.mrf.mxu0
        %3463 = vmatprep.mubr.f32.mxu0 0.0
        %3464 = vmatmul.mubr.f32.gmra.mxu0 %v3251
        %v3465 = vpop.f32.mrf.mxu0
        %v3466 = vadd.f32 0.0, %v3465
        %v3467 = vpop.f32.mrf.mxu0
        %3468 = vmatprep.mubr.f32.mxu0 0.0
        %3469 = vmatmul.mubr.f32.gmra.mxu0 %v3254
        %v3470 = vpop.f32.mrf.mxu0
        %v3471 = vadd.f32 0.0, %v3470
        %v3472 = vpop.f32.mrf.mxu0
        %3473 = vmatprep.mubr.f32.mxu0 0.0
        %3474 = vmatmul.mubr.f32.gmra.mxu0 %v3257
        %v3475 = vpop.f32.mrf.mxu0
        %v3476 = vadd.f32 0.0, %v3475
        %v3477 = vpop.f32.mrf.mxu0
        %3478 = vmatprep.mubr.f32.mxu0 0.0
        %3479 = vmatmul.mubr.f32.gmra.mxu0 %v3260
        %v3480 = vpop.f32.mrf.mxu0
        %v3481 = vadd.f32 0.0, %v3480
        %v3482 = vpop.f32.mrf.mxu0
        %3483 = vmatprep.mubr.f32.mxu0 0.0
        %3484 = vmatmul.mubr.f32.gmra.mxu0 %v3263
        %v3485 = vpop.f32.mrf.mxu0
        %v3486 = vadd.f32 0.0, %v3485
        %v3487 = vpop.f32.mrf.mxu0
        %3488 = vmatprep.mubr.f32.mxu0 0.0
        %3489 = vmatmul.mubr.f32.gmra.mxu0 %v3266
        %v3490 = vpop.f32.mrf.mxu0
        %v3491 = vadd.f32 0.0, %v3490
        %v3492 = vpop.f32.mrf.mxu0
        %3493 = vmatprep.mubr.f32.mxu0 0.0
        %3494 = vmatmul.mubr.f32.gmra.mxu0 %v3269
        %v3495 = vpop.f32.mrf.mxu0
        %v3496 = vadd.f32 0.0, %v3495
        %v3497 = vpop.f32.mrf.mxu0
        %3498 = vmatprep.mubr.f32.mxu0 0.0
        %3499 = vmatmul.mubr.f32.gmra.mxu0 %v3272
        %v3500 = vpop.f32.mrf.mxu0
        %v3501 = vadd.f32 0.0, %v3500
        %v3502 = vpop.f32.mrf.mxu0
        %3503 = vmatprep.mubr.f32.mxu0 0.0
        %3504 = vmatmul.mubr.f32.gmra.mxu0 %v3275
        %v3505 = vpop.f32.mrf.mxu0
        %v3506 = vadd.f32 0.0, %v3505
        %v3507 = vpop.f32.mrf.mxu0
        %3508 = vmatprep.mubr.f32.mxu0 0.0
        %3509 = vmatmul.mubr.f32.gmra.mxu0 %v3278
        %v3510 = vpop.f32.mrf.mxu0
        %v3511 = vadd.f32 0.0, %v3510
        %v3512 = vpop.f32.mrf.mxu0
        %3513 = vmatprep.mubr.f32.mxu0 0.0
        %3514 = vmatmul.mubr.f32.gmra.mxu0 %v3281
        %v3515 = vpop.f32.mrf.mxu0
        %v3516 = vadd.f32 0.0, %v3515
        %v3517 = vpop.f32.mrf.mxu0
        %3518 = vmatprep.mubr.f32.mxu0 0.0
        %3519 = vmatmul.mubr.f32.gmra.mxu0 %v3284
        %v3520 = vpop.f32.mrf.mxu0
        %v3521 = vadd.f32 0.0, %v3520
        %v3522 = vpop.f32.mrf.mxu0
        %3523 = vmatprep.mubr.f32.mxu0 0.0
        %3524 = vmatmul.mubr.f32.gmra.mxu0 %v3287
        %v3525 = vpop.f32.mrf.mxu0
        %v3526 = vadd.f32 0.0, %v3525
        %v3527 = vpop.f32.mrf.mxu0
        %3528 = vmatprep.mubr.f32.mxu0 0.0
        %3529 = vmatmul.mubr.f32.gmra.mxu0 %v3290
        %v3530 = vpop.f32.mrf.mxu0
        %v3531 = vadd.f32 0.0, %v3530
        %v3532 = vpop.f32.mrf.mxu0
        %3533 = vmatprep.mubr.f32.mxu0 0.0
        %3534 = vmatmul.mubr.f32.gmra.mxu0 %v3293
        %v3535 = vpop.f32.mrf.mxu0
        %v3536 = vadd.f32 0.0, %v3535
        %v3537 = vpop.f32.mrf.mxu0
        %3538 = vmatprep.mubr.f32.mxu0 0.0
        %3539 = vmatmul.mubr.f32.gmra.mxu0 %v3296
        %v3540 = vpop.f32.mrf.mxu0
        %v3541 = vadd.f32 0.0, %v3540
        %v3542 = vpop.f32.mrf.mxu0
        %3543 = vmatprep.mubr.f32.mxu0 0.0
        %3544 = vmatmul.mubr.f32.gmra.mxu0 %v3299
        %v3545 = vpop.f32.mrf.mxu0
        %v3546 = vadd.f32 0.0, %v3545
        %v3547 = vpop.f32.mrf.mxu0
        %3548 = vdwg.mxu0
        %v3549 = vld [vmem:[#allocation2] sm:$0xff]
        %v3550 = vld [vmem:[#allocation2 + $0x8] sm:$0xff]
        %v3551 = vld [vmem:[#allocation2 + $0x10] sm:$0xff]
        %v3552 = vld [vmem:[#allocation2 + $0x18] sm:$0xff]
        %v3553 = vld [vmem:[#allocation2 + $0x20] sm:$0xff]
        %v3554 = vld [vmem:[#allocation2 + $0x28] sm:$0xff]
        %v3555 = vld [vmem:[#allocation2 + $0x30] sm:$0xff]
        %v3556 = vld [vmem:[#allocation2 + $0x38] sm:$0xff]
        %v3557 = vld [vmem:[#allocation2 + $0x40] sm:$0xff]
        %v3558 = vld [vmem:[#allocation2 + $0x48] sm:$0xff]
        %v3559 = vld [vmem:[#allocation2 + $0x50] sm:$0xff]
        %v3560 = vld [vmem:[#allocation2 + $0x58] sm:$0xff]
        %v3561 = vld [vmem:[#allocation2 + $0x60] sm:$0xff]
        %v3562 = vld [vmem:[#allocation2 + $0x68] sm:$0xff]
        %v3563 = vld [vmem:[#allocation2 + $0x70] sm:$0xff]
        %v3564 = vld [vmem:[#allocation2 + $0x78] sm:$0xff]
        %v3565 = vld [vmem:[#allocation2 + $0x80] sm:$0xff]
        %v3566 = vld [vmem:[#allocation2 + $0x88] sm:$0xff]
        %v3567 = vld [vmem:[#allocation2 + $0x90] sm:$0xff]
        %v3568 = vld [vmem:[#allocation2 + $0x98] sm:$0xff]
        %v3569 = vld [vmem:[#allocation2 + $0xa0] sm:$0xff]
        %v3570 = vld [vmem:[#allocation2 + $0xa8] sm:$0xff]
        %v3571 = vld [vmem:[#allocation2 + $0xb0] sm:$0xff]
        %v3572 = vld [vmem:[#allocation2 + $0xb8] sm:$0xff]
        %v3573 = vld [vmem:[#allocation2 + $0xc0] sm:$0xff]
        %v3574 = vld [vmem:[#allocation2 + $0xc8] sm:$0xff]
        %v3575 = vld [vmem:[#allocation2 + $0xd0] sm:$0xff]
        %v3576 = vld [vmem:[#allocation2 + $0xd8] sm:$0xff]
        %v3577 = vld [vmem:[#allocation2 + $0xe0] sm:$0xff]
        %v3578 = vld [vmem:[#allocation2 + $0xe8] sm:$0xff]
        %v3579 = vld [vmem:[#allocation2 + $0xf0] sm:$0xff]
        %v3580 = vld [vmem:[#allocation2 + $0xf8] sm:$0xff]
        %v3581 = vld [vmem:[#allocation2 + $0x100] sm:$0xff]
        %v3582 = vld [vmem:[#allocation2 + $0x108] sm:$0xff]
        %v3583 = vld [vmem:[#allocation2 + $0x110] sm:$0xff]
        %v3584 = vld [vmem:[#allocation2 + $0x118] sm:$0xff]
        %v3585 = vadd.f32 %v3549, %v3371
        %v3586 = vadd.f32 %v3550, %v3376
        %v3587 = vadd.f32 %v3551, %v3381
        %v3588 = vadd.f32 %v3552, %v3386
        %v3589 = vadd.f32 %v3553, %v3391
        %v3590 = vadd.f32 %v3554, %v3396
        %v3591 = vadd.f32 %v3555, %v3401
        %v3592 = vadd.f32 %v3556, %v3406
        %v3593 = vadd.f32 %v3557, %v3411
        %v3594 = vadd.f32 %v3558, %v3416
        %v3595 = vadd.f32 %v3559, %v3421
        %v3596 = vadd.f32 %v3560, %v3426
        %v3597 = vadd.f32 %v3561, %v3431
        %v3598 = vadd.f32 %v3562, %v3436
        %v3599 = vadd.f32 %v3563, %v3441
        %v3600 = vadd.f32 %v3564, %v3446
        %v3601 = vadd.f32 %v3565, %v3451
        %v3602 = vadd.f32 %v3566, %v3456
        %v3603 = vadd.f32 %v3567, %v3461
        %v3604 = vadd.f32 %v3568, %v3466
        %v3605 = vadd.f32 %v3569, %v3471
        %v3606 = vadd.f32 %v3570, %v3476
        %v3607 = vadd.f32 %v3571, %v3481
        %v3608 = vadd.f32 %v3572, %v3486
        %v3609 = vadd.f32 %v3573, %v3491
        %v3610 = vadd.f32 %v3574, %v3496
        %v3611 = vadd.f32 %v3575, %v3501
        %v3612 = vadd.f32 %v3576, %v3506
        %v3613 = vadd.f32 %v3577, %v3511
        %v3614 = vadd.f32 %v3578, %v3516
        %v3615 = vadd.f32 %v3579, %v3521
        %v3616 = vadd.f32 %v3580, %v3526
        %v3617 = vadd.f32 %v3581, %v3531
        %v3618 = vadd.f32 %v3582, %v3536
        %v3619 = vadd.f32 %v3583, %v3541
        %v3620 = vadd.f32 %v3584, %v3546
        %3621 = vst [vmem:[#allocation2] sm:$0xff] %v3585
        %3622 = vst [vmem:[#allocation2 + $0x8] sm:$0xff] %v3586
        %3623 = vst [vmem:[#allocation2 + $0x10] sm:$0xff] %v3587
        %3624 = vst [vmem:[#allocation2 + $0x18] sm:$0xff] %v3588
        %3625 = vst [vmem:[#allocation2 + $0x20] sm:$0xff] %v3589
        %3626 = vst [vmem:[#allocation2 + $0x28] sm:$0xff] %v3590
        %3627 = vst [vmem:[#allocation2 + $0x30] sm:$0xff] %v3591
        %3628 = vst [vmem:[#allocation2 + $0x38] sm:$0xff] %v3592
        %3629 = vst [vmem:[#allocation2 + $0x40] sm:$0xff] %v3593
        %3630 = vst [vmem:[#allocation2 + $0x48] sm:$0xff] %v3594
        %3631 = vst [vmem:[#allocation2 + $0x50] sm:$0xff] %v3595
        %3632 = vst [vmem:[#allocation2 + $0x58] sm:$0xff] %v3596
        %3633 = vst [vmem:[#allocation2 + $0x60] sm:$0xff] %v3597
        %3634 = vst [vmem:[#allocation2 + $0x68] sm:$0xff] %v3598
        %3635 = vst [vmem:[#allocation2 + $0x70] sm:$0xff] %v3599
        %3636 = vst [vmem:[#allocation2 + $0x78] sm:$0xff] %v3600
        %3637 = vst [vmem:[#allocation2 + $0x80] sm:$0xff] %v3601
        %3638 = vst [vmem:[#allocation2 + $0x88] sm:$0xff] %v3602
        %3639 = vst [vmem:[#allocation2 + $0x90] sm:$0xff] %v3603
        %3640 = vst [vmem:[#allocation2 + $0x98] sm:$0xff] %v3604
        %3641 = vst [vmem:[#allocation2 + $0xa0] sm:$0xff] %v3605
        %3642 = vst [vmem:[#allocation2 + $0xa8] sm:$0xff] %v3606
        %3643 = vst [vmem:[#allocation2 + $0xb0] sm:$0xff] %v3607
        %3644 = vst [vmem:[#allocation2 + $0xb8] sm:$0xff] %v3608
        %3645 = vst [vmem:[#allocation2 + $0xc0] sm:$0xff] %v3609
        %3646 = vst [vmem:[#allocation2 + $0xc8] sm:$0xff] %v3610
        %3647 = vst [vmem:[#allocation2 + $0xd0] sm:$0xff] %v3611
        %3648 = vst [vmem:[#allocation2 + $0xd8] sm:$0xff] %v3612
        %3649 = vst [vmem:[#allocation2 + $0xe0] sm:$0xff] %v3613
        %3650 = vst [vmem:[#allocation2 + $0xe8] sm:$0xff] %v3614
        %3651 = vst [vmem:[#allocation2 + $0xf0] sm:$0xff] %v3615
        %3652 = vst [vmem:[#allocation2 + $0xf8] sm:$0xff] %v3616
        %3653 = vst [vmem:[#allocation2 + $0x100] sm:$0xff] %v3617
        %3654 = vst [vmem:[#allocation2 + $0x108] sm:$0xff] %v3618
        %3655 = vst [vmem:[#allocation2 + $0x110] sm:$0xff] %v3619
        %3656 = vst [vmem:[#allocation2 + $0x118] sm:$0xff] %v3620
        %v3657 = vld [vmem:[%s206 + $0x25] sm:$0xff]
        %v3658 = vld [vmem:[%s206 + $0x2d] sm:$0xff]
        %v3659 = vld [vmem:[%s206 + $0x35] sm:$0xff]
        %v3660 = vld [vmem:[%s206 + $0x3d] sm:$0xff]
        %v3661 = vld [vmem:[%s206 + $0x45] sm:$0xff]
        %v3662 = vld [vmem:[%s206 + $0x4d] sm:$0xff]
        %v3663 = vld [vmem:[%s206 + $0x55] sm:$0xff]
        %v3664 = vld [vmem:[%s206 + $0x5d] sm:$0xff]
        %v3665 = vld [vmem:[%s206 + $0x65] sm:$0xff]
        %v3666 = vld [vmem:[%s206 + $0x6d] sm:$0xff]
        %v3667 = vld [vmem:[%s206 + $0x75] sm:$0xff]
        %v3668 = vld [vmem:[%s206 + $0x7d] sm:$0xff]
        %v3669 = vld [vmem:[%s206 + $0x85] sm:$0xff]
        %v3670 = vld [vmem:[%s206 + $0x8d] sm:$0xff]
        %v3671 = vld [vmem:[%s206 + $0x95] sm:$0xff]
        %v3672 = vld [vmem:[%s206 + $0x9d] sm:$0xff]
        %v3673 = vld [vmem:[%s206 + $0xa5] sm:$0xff]
        %v3674 = vld [vmem:[%s206 + $0xad] sm:$0xff]
        %v3675 = vld [vmem:[%s206 + $0xb5] sm:$0xff]
        %v3676 = vld [vmem:[%s206 + $0xbd] sm:$0xff]
        %v3677 = vld [vmem:[%s206 + $0xc5] sm:$0xff]
        %v3678 = vld [vmem:[%s206 + $0xcd] sm:$0xff]
        %v3679 = vld [vmem:[%s206 + $0xd5] sm:$0xff]
        %v3680 = vld [vmem:[%s206 + $0xdd] sm:$0xff]
        %v3681 = vld [vmem:[%s206 + $0xe5] sm:$0xff]
        %v3682 = vld [vmem:[%s206 + $0xed] sm:$0xff]
        %v3683 = vld [vmem:[%s206 + $0xf5] sm:$0xff]
        %v3684 = vld [vmem:[%s206 + $0xfd] sm:$0xff]
        %v3685 = vld [vmem:[%s206 + $0x105] sm:$0xff]
        %v3686 = vld [vmem:[%s206 + $0x10d] sm:$0xff]
        %v3687 = vld [vmem:[%s206 + $0x115] sm:$0xff]
        %v3688 = vld [vmem:[%s206 + $0x11d] sm:$0xff]
        %v3689 = vld [vmem:[%s206 + $0x125] sm:$0xff]
        %v3690 = vld [vmem:[%s206 + $0x12d] sm:$0xff]
        %v3691 = vld [vmem:[%s206 + $0x135] sm:$0xff]
        %v3692 = vld [vmem:[%s206 + $0x13d] sm:$0xff]
        %s3693 = scalar_lea.vmem %s210, 28
        %v3694 = vld [vmem:[%s3693] sm:$0xf]
        %v3696 = vsel %vm251, %v3657, 0
        %v3699 = vsel %vm251, %v3658, 0
        %v3702 = vsel %vm251, %v3659, 0
        %v3705 = vsel %vm251, %v3660, 0
        %v3708 = vsel %vm251, %v3661, 0
        %v3711 = vsel %vm251, %v3662, 0
        %v3714 = vsel %vm251, %v3663, 0
        %v3717 = vsel %vm251, %v3664, 0
        %v3720 = vsel %vm251, %v3665, 0
        %v3723 = vsel %vm251, %v3666, 0
        %v3726 = vsel %vm251, %v3667, 0
        %v3729 = vsel %vm251, %v3668, 0
        %v3732 = vsel %vm251, %v3669, 0
        %v3735 = vsel %vm251, %v3670, 0
        %v3738 = vsel %vm251, %v3671, 0
        %v3741 = vsel %vm251, %v3672, 0
        %v3744 = vsel %vm251, %v3673, 0
        %v3747 = vsel %vm251, %v3674, 0
        %v3750 = vsel %vm251, %v3675, 0
        %v3753 = vsel %vm251, %v3676, 0
        %v3756 = vsel %vm251, %v3677, 0
        %v3759 = vsel %vm251, %v3678, 0
        %v3762 = vsel %vm251, %v3679, 0
        %v3765 = vsel %vm251, %v3680, 0
        %v3768 = vsel %vm251, %v3681, 0
        %v3771 = vsel %vm251, %v3682, 0
        %v3774 = vsel %vm251, %v3683, 0
        %v3777 = vsel %vm251, %v3684, 0
        %v3780 = vsel %vm251, %v3685, 0
        %v3783 = vsel %vm251, %v3686, 0
        %v3786 = vsel %vm251, %v3687, 0
        %v3789 = vsel %vm251, %v3688, 0
        %v3792 = vsel %vm251, %v3689, 0
        %v3795 = vsel %vm251, %v3690, 0
        %v3798 = vsel %vm251, %v3691, 0
        %v3801 = vsel %vm251, %v3692, 0
        %v3804 = vsel %vm360, %v3694, 0
        %3806 = vmatprep.subr.mxu0 0.0
        %3807 = vmatpush1.msra.mxu0 0.0
        %3808 = vmatprep.subr.mxu0 0.0
        %3809 = vmatpush1.msra.mxu0 0.0
        %3810 = vmatprep.subr.mxu0 0.0
        %3811 = vmatpush1.msra.mxu0 0.0
        %3812 = vmatprep.subr.mxu0 0.0
        %3813 = vmatpush1.msra.mxu0 0.0
        %3814 = vmatprep.subr.mxu0 0.0
        %3815 = vmatpush1.msra.mxu0 0.0
        %3816 = vmatprep.subr.mxu0 0.0
        %3817 = vmatpush1.msra.mxu0 0.0
        %3818 = vmatprep.subr.mxu0 0.0
        %3819 = vmatpush1.msra.mxu0 0.0
        %3820 = vmatprep.subr.mxu0 0.0
        %3821 = vmatpush1.msra.mxu0 0.0
        %3822 = vmatprep.subr.mxu0 0.0
        %3823 = vmatpush1.msra.mxu0 0.0
        %3824 = vmatprep.subr.mxu0 0.0
        %3825 = vmatpush1.msra.mxu0 0.0
        %3826 = vmatprep.subr.mxu0 0.0
        %3827 = vmatpush1.msra.mxu0 0.0
        %3828 = vmatprep.subr.mxu0 0.0
        %3829 = vmatpush1.msra.mxu0 0.0
        %3830 = vmatprep.subr.mxu0 0.0
        %3831 = vmatpush1.msra.mxu0 0.0
        %3832 = vmatprep.subr.mxu0 0.0
        %3833 = vmatpush1.msra.mxu0 0.0
        %3834 = vmatprep.subr.mxu0 0.0
        %3835 = vmatpush1.msra.mxu0 0.0
        %3836 = vmatprep.subr.mxu0 0.0
        %3837 = vmatpush1.msra.mxu0 %v3804
        %3838 = vmatprep.subr.mxu0 0.0
        %3839 = vmatpush2.msra.mxu0 0.0
        %3840 = vmatprep.subr.mxu0 0.0
        %3841 = vmatpush2.msra.mxu0 0.0
        %3842 = vmatprep.subr.mxu0 0.0
        %3843 = vmatpush2.msra.mxu0 0.0
        %3844 = vmatprep.subr.mxu0 0.0
        %3845 = vmatpush2.msra.mxu0 0.0
        %3846 = vmatprep.subr.mxu0 0.0
        %3847 = vmatpush2.msra.mxu0 0.0
        %3848 = vmatprep.subr.mxu0 0.0
        %3849 = vmatpush2.msra.mxu0 0.0
        %3850 = vmatprep.subr.mxu0 0.0
        %3851 = vmatpush2.msra.mxu0 0.0
        %3852 = vmatprep.subr.mxu0 0.0
        %3853 = vmatpush2.msra.mxu0 0.0
        %3854 = vmatprep.subr.mxu0 0.0
        %3855 = vmatpush2.msra.mxu0 0.0
        %3856 = vmatprep.subr.mxu0 0.0
        %3857 = vmatpush2.msra.mxu0 0.0
        %3858 = vmatprep.subr.mxu0 0.0
        %3859 = vmatpush2.msra.mxu0 0.0
        %3860 = vmatprep.subr.mxu0 0.0
        %3861 = vmatpush2.msra.mxu0 0.0
        %3862 = vmatprep.subr.mxu0 0.0
        %3863 = vmatpush2.msra.mxu0 0.0
        %3864 = vmatprep.subr.mxu0 0.0
        %3865 = vmatpush2.msra.mxu0 0.0
        %3866 = vmatprep.subr.mxu0 0.0
        %3867 = vmatpush2.msra.mxu0 0.0
        %3868 = vmatprep.subr.mxu0 0.0
        %3869 = vmatpush2.msra.mxu0 0.0
        %3870 = vmatprep.mubr.f32.mxu0 0.0
        %3871 = vmatmul.mubr.f32.gmra.mxu0 %v3696
        %v3872 = vpop.f32.mrf.mxu0
        %v3873 = vadd.f32 0.0, %v3872
        %v3874 = vpop.f32.mrf.mxu0
        %3875 = vmatprep.mubr.f32.mxu0 0.0
        %3876 = vmatmul.mubr.f32.gmra.mxu0 %v3699
        %v3877 = vpop.f32.mrf.mxu0
        %v3878 = vadd.f32 0.0, %v3877
        %v3879 = vpop.f32.mrf.mxu0
        %3880 = vmatprep.mubr.f32.mxu0 0.0
        %3881 = vmatmul.mubr.f32.gmra.mxu0 %v3702
        %v3882 = vpop.f32.mrf.mxu0
        %v3883 = vadd.f32 0.0, %v3882
        %v3884 = vpop.f32.mrf.mxu0
        %3885 = vmatprep.mubr.f32.mxu0 0.0
        %3886 = vmatmul.mubr.f32.gmra.mxu0 %v3705
        %v3887 = vpop.f32.mrf.mxu0
        %v3888 = vadd.f32 0.0, %v3887
        %v3889 = vpop.f32.mrf.mxu0
        %3890 = vmatprep.mubr.f32.mxu0 0.0
        %3891 = vmatmul.mubr.f32.gmra.mxu0 %v3708
        %v3892 = vpop.f32.mrf.mxu0
        %v3893 = vadd.f32 0.0, %v3892
        %v3894 = vpop.f32.mrf.mxu0
        %3895 = vmatprep.mubr.f32.mxu0 0.0
        %3896 = vmatmul.mubr.f32.gmra.mxu0 %v3711
        %v3897 = vpop.f32.mrf.mxu0
        %v3898 = vadd.f32 0.0, %v3897
        %v3899 = vpop.f32.mrf.mxu0
        %3900 = vmatprep.mubr.f32.mxu0 0.0
        %3901 = vmatmul.mubr.f32.gmra.mxu0 %v3714
        %v3902 = vpop.f32.mrf.mxu0
        %v3903 = vadd.f32 0.0, %v3902
        %v3904 = vpop.f32.mrf.mxu0
        %3905 = vmatprep.mubr.f32.mxu0 0.0
        %3906 = vmatmul.mubr.f32.gmra.mxu0 %v3717
        %v3907 = vpop.f32.mrf.mxu0
        %v3908 = vadd.f32 0.0, %v3907
        %v3909 = vpop.f32.mrf.mxu0
        %3910 = vmatprep.mubr.f32.mxu0 0.0
        %3911 = vmatmul.mubr.f32.gmra.mxu0 %v3720
        %v3912 = vpop.f32.mrf.mxu0
        %v3913 = vadd.f32 0.0, %v3912
        %v3914 = vpop.f32.mrf.mxu0
        %3915 = vmatprep.mubr.f32.mxu0 0.0
        %3916 = vmatmul.mubr.f32.gmra.mxu0 %v3723
        %v3917 = vpop.f32.mrf.mxu0
        %v3918 = vadd.f32 0.0, %v3917
        %v3919 = vpop.f32.mrf.mxu0
        %3920 = vmatprep.mubr.f32.mxu0 0.0
        %3921 = vmatmul.mubr.f32.gmra.mxu0 %v3726
        %v3922 = vpop.f32.mrf.mxu0
        %v3923 = vadd.f32 0.0, %v3922
        %v3924 = vpop.f32.mrf.mxu0
        %3925 = vmatprep.mubr.f32.mxu0 0.0
        %3926 = vmatmul.mubr.f32.gmra.mxu0 %v3729
        %v3927 = vpop.f32.mrf.mxu0
        %v3928 = vadd.f32 0.0, %v3927
        %v3929 = vpop.f32.mrf.mxu0
        %3930 = vmatprep.mubr.f32.mxu0 0.0
        %3931 = vmatmul.mubr.f32.gmra.mxu0 %v3732
        %v3932 = vpop.f32.mrf.mxu0
        %v3933 = vadd.f32 0.0, %v3932
        %v3934 = vpop.f32.mrf.mxu0
        %3935 = vmatprep.mubr.f32.mxu0 0.0
        %3936 = vmatmul.mubr.f32.gmra.mxu0 %v3735
        %v3937 = vpop.f32.mrf.mxu0
        %v3938 = vadd.f32 0.0, %v3937
        %v3939 = vpop.f32.mrf.mxu0
        %3940 = vmatprep.mubr.f32.mxu0 0.0
        %3941 = vmatmul.mubr.f32.gmra.mxu0 %v3738
        %v3942 = vpop.f32.mrf.mxu0
        %v3943 = vadd.f32 0.0, %v3942
        %v3944 = vpop.f32.mrf.mxu0
        %3945 = vmatprep.mubr.f32.mxu0 0.0
        %3946 = vmatmul.mubr.f32.gmra.mxu0 %v3741
        %v3947 = vpop.f32.mrf.mxu0
        %v3948 = vadd.f32 0.0, %v3947
        %v3949 = vpop.f32.mrf.mxu0
        %3950 = vmatprep.mubr.f32.mxu0 0.0
        %3951 = vmatmul.mubr.f32.gmra.mxu0 %v3744
        %v3952 = vpop.f32.mrf.mxu0
        %v3953 = vadd.f32 0.0, %v3952
        %v3954 = vpop.f32.mrf.mxu0
        %3955 = vmatprep.mubr.f32.mxu0 0.0
        %3956 = vmatmul.mubr.f32.gmra.mxu0 %v3747
        %v3957 = vpop.f32.mrf.mxu0
        %v3958 = vadd.f32 0.0, %v3957
        %v3959 = vpop.f32.mrf.mxu0
        %3960 = vmatprep.mubr.f32.mxu0 0.0
        %3961 = vmatmul.mubr.f32.gmra.mxu0 %v3750
        %v3962 = vpop.f32.mrf.mxu0
        %v3963 = vadd.f32 0.0, %v3962
        %v3964 = vpop.f32.mrf.mxu0
        %3965 = vmatprep.mubr.f32.mxu0 0.0
        %3966 = vmatmul.mubr.f32.gmra.mxu0 %v3753
        %v3967 = vpop.f32.mrf.mxu0
        %v3968 = vadd.f32 0.0, %v3967
        %v3969 = vpop.f32.mrf.mxu0
        %3970 = vmatprep.mubr.f32.mxu0 0.0
        %3971 = vmatmul.mubr.f32.gmra.mxu0 %v3756
        %v3972 = vpop.f32.mrf.mxu0
        %v3973 = vadd.f32 0.0, %v3972
        %v3974 = vpop.f32.mrf.mxu0
        %3975 = vmatprep.mubr.f32.mxu0 0.0
        %3976 = vmatmul.mubr.f32.gmra.mxu0 %v3759
        %v3977 = vpop.f32.mrf.mxu0
        %v3978 = vadd.f32 0.0, %v3977
        %v3979 = vpop.f32.mrf.mxu0
        %3980 = vmatprep.mubr.f32.mxu0 0.0
        %3981 = vmatmul.mubr.f32.gmra.mxu0 %v3762
        %v3982 = vpop.f32.mrf.mxu0
        %v3983 = vadd.f32 0.0, %v3982
        %v3984 = vpop.f32.mrf.mxu0
        %3985 = vmatprep.mubr.f32.mxu0 0.0
        %3986 = vmatmul.mubr.f32.gmra.mxu0 %v3765
        %v3987 = vpop.f32.mrf.mxu0
        %v3988 = vadd.f32 0.0, %v3987
        %v3989 = vpop.f32.mrf.mxu0
        %3990 = vmatprep.mubr.f32.mxu0 0.0
        %3991 = vmatmul.mubr.f32.gmra.mxu0 %v3768
        %v3992 = vpop.f32.mrf.mxu0
        %v3993 = vadd.f32 0.0, %v3992
        %v3994 = vpop.f32.mrf.mxu0
        %3995 = vmatprep.mubr.f32.mxu0 0.0
        %3996 = vmatmul.mubr.f32.gmra.mxu0 %v3771
        %v3997 = vpop.f32.mrf.mxu0
        %v3998 = vadd.f32 0.0, %v3997
        %v3999 = vpop.f32.mrf.mxu0
        %4000 = vmatprep.mubr.f32.mxu0 0.0
        %4001 = vmatmul.mubr.f32.gmra.mxu0 %v3774
        %v4002 = vpop.f32.mrf.mxu0
        %v4003 = vadd.f32 0.0, %v4002
        %v4004 = vpop.f32.mrf.mxu0
        %4005 = vmatprep.mubr.f32.mxu0 0.0
        %4006 = vmatmul.mubr.f32.gmra.mxu0 %v3777
        %v4007 = vpop.f32.mrf.mxu0
        %v4008 = vadd.f32 0.0, %v4007
        %v4009 = vpop.f32.mrf.mxu0
        %4010 = vmatprep.mubr.f32.mxu0 0.0
        %4011 = vmatmul.mubr.f32.gmra.mxu0 %v3780
        %v4012 = vpop.f32.mrf.mxu0
        %v4013 = vadd.f32 0.0, %v4012
        %v4014 = vpop.f32.mrf.mxu0
        %4015 = vmatprep.mubr.f32.mxu0 0.0
        %4016 = vmatmul.mubr.f32.gmra.mxu0 %v3783
        %v4017 = vpop.f32.mrf.mxu0
        %v4018 = vadd.f32 0.0, %v4017
        %v4019 = vpop.f32.mrf.mxu0
        %4020 = vmatprep.mubr.f32.mxu0 0.0
        %4021 = vmatmul.mubr.f32.gmra.mxu0 %v3786
        %v4022 = vpop.f32.mrf.mxu0
        %v4023 = vadd.f32 0.0, %v4022
        %v4024 = vpop.f32.mrf.mxu0
        %4025 = vmatprep.mubr.f32.mxu0 0.0
        %4026 = vmatmul.mubr.f32.gmra.mxu0 %v3789
        %v4027 = vpop.f32.mrf.mxu0
        %v4028 = vadd.f32 0.0, %v4027
        %v4029 = vpop.f32.mrf.mxu0
        %4030 = vmatprep.mubr.f32.mxu0 0.0
        %4031 = vmatmul.mubr.f32.gmra.mxu0 %v3792
        %v4032 = vpop.f32.mrf.mxu0
        %v4033 = vadd.f32 0.0, %v4032
        %v4034 = vpop.f32.mrf.mxu0
        %4035 = vmatprep.mubr.f32.mxu0 0.0
        %4036 = vmatmul.mubr.f32.gmra.mxu0 %v3795
        %v4037 = vpop.f32.mrf.mxu0
        %v4038 = vadd.f32 0.0, %v4037
        %v4039 = vpop.f32.mrf.mxu0
        %4040 = vmatprep.mubr.f32.mxu0 0.0
        %4041 = vmatmul.mubr.f32.gmra.mxu0 %v3798
        %v4042 = vpop.f32.mrf.mxu0
        %v4043 = vadd.f32 0.0, %v4042
        %v4044 = vpop.f32.mrf.mxu0
        %4045 = vmatprep.mubr.f32.mxu0 0.0
        %4046 = vmatmul.mubr.f32.gmra.mxu0 %v3801
        %v4047 = vpop.f32.mrf.mxu0
        %v4048 = vadd.f32 0.0, %v4047
        %v4049 = vpop.f32.mrf.mxu0
        %4050 = vdwg.mxu0
        %v4051 = vld [vmem:[#allocation2] sm:$0xff]
        %v4052 = vld [vmem:[#allocation2 + $0x8] sm:$0xff]
        %v4053 = vld [vmem:[#allocation2 + $0x10] sm:$0xff]
        %v4054 = vld [vmem:[#allocation2 + $0x18] sm:$0xff]
        %v4055 = vld [vmem:[#allocation2 + $0x20] sm:$0xff]
        %v4056 = vld [vmem:[#allocation2 + $0x28] sm:$0xff]
        %v4057 = vld [vmem:[#allocation2 + $0x30] sm:$0xff]
        %v4058 = vld [vmem:[#allocation2 + $0x38] sm:$0xff]
        %v4059 = vld [vmem:[#allocation2 + $0x40] sm:$0xff]
        %v4060 = vld [vmem:[#allocation2 + $0x48] sm:$0xff]
        %v4061 = vld [vmem:[#allocation2 + $0x50] sm:$0xff]
        %v4062 = vld [vmem:[#allocation2 + $0x58] sm:$0xff]
        %v4063 = vld [vmem:[#allocation2 + $0x60] sm:$0xff]
        %v4064 = vld [vmem:[#allocation2 + $0x68] sm:$0xff]
        %v4065 = vld [vmem:[#allocation2 + $0x70] sm:$0xff]
        %v4066 = vld [vmem:[#allocation2 + $0x78] sm:$0xff]
        %v4067 = vld [vmem:[#allocation2 + $0x80] sm:$0xff]
        %v4068 = vld [vmem:[#allocation2 + $0x88] sm:$0xff]
        %v4069 = vld [vmem:[#allocation2 + $0x90] sm:$0xff]
        %v4070 = vld [vmem:[#allocation2 + $0x98] sm:$0xff]
        %v4071 = vld [vmem:[#allocation2 + $0xa0] sm:$0xff]
        %v4072 = vld [vmem:[#allocation2 + $0xa8] sm:$0xff]
        %v4073 = vld [vmem:[#allocation2 + $0xb0] sm:$0xff]
        %v4074 = vld [vmem:[#allocation2 + $0xb8] sm:$0xff]
        %v4075 = vld [vmem:[#allocation2 + $0xc0] sm:$0xff]
        %v4076 = vld [vmem:[#allocation2 + $0xc8] sm:$0xff]
        %v4077 = vld [vmem:[#allocation2 + $0xd0] sm:$0xff]
        %v4078 = vld [vmem:[#allocation2 + $0xd8] sm:$0xff]
        %v4079 = vld [vmem:[#allocation2 + $0xe0] sm:$0xff]
        %v4080 = vld [vmem:[#allocation2 + $0xe8] sm:$0xff]
        %v4081 = vld [vmem:[#allocation2 + $0xf0] sm:$0xff]
        %v4082 = vld [vmem:[#allocation2 + $0xf8] sm:$0xff]
        %v4083 = vld [vmem:[#allocation2 + $0x100] sm:$0xff]
        %v4084 = vld [vmem:[#allocation2 + $0x108] sm:$0xff]
        %v4085 = vld [vmem:[#allocation2 + $0x110] sm:$0xff]
        %v4086 = vld [vmem:[#allocation2 + $0x118] sm:$0xff]
        %v4087 = vadd.f32 %v4051, %v3873
        %v4088 = vadd.f32 %v4052, %v3878
        %v4089 = vadd.f32 %v4053, %v3883
        %v4090 = vadd.f32 %v4054, %v3888
        %v4091 = vadd.f32 %v4055, %v3893
        %v4092 = vadd.f32 %v4056, %v3898
        %v4093 = vadd.f32 %v4057, %v3903
        %v4094 = vadd.f32 %v4058, %v3908
        %v4095 = vadd.f32 %v4059, %v3913
        %v4096 = vadd.f32 %v4060, %v3918
        %v4097 = vadd.f32 %v4061, %v3923
        %v4098 = vadd.f32 %v4062, %v3928
        %v4099 = vadd.f32 %v4063, %v3933
        %v4100 = vadd.f32 %v4064, %v3938
        %v4101 = vadd.f32 %v4065, %v3943
        %v4102 = vadd.f32 %v4066, %v3948
        %v4103 = vadd.f32 %v4067, %v3953
        %v4104 = vadd.f32 %v4068, %v3958
        %v4105 = vadd.f32 %v4069, %v3963
        %v4106 = vadd.f32 %v4070, %v3968
        %v4107 = vadd.f32 %v4071, %v3973
        %v4108 = vadd.f32 %v4072, %v3978
        %v4109 = vadd.f32 %v4073, %v3983
        %v4110 = vadd.f32 %v4074, %v3988
        %v4111 = vadd.f32 %v4075, %v3993
        %v4112 = vadd.f32 %v4076, %v3998
        %v4113 = vadd.f32 %v4077, %v4003
        %v4114 = vadd.f32 %v4078, %v4008
        %v4115 = vadd.f32 %v4079, %v4013
        %v4116 = vadd.f32 %v4080, %v4018
        %v4117 = vadd.f32 %v4081, %v4023
        %v4118 = vadd.f32 %v4082, %v4028
        %v4119 = vadd.f32 %v4083, %v4033
        %v4120 = vadd.f32 %v4084, %v4038
        %v4121 = vadd.f32 %v4085, %v4043
        %v4122 = vadd.f32 %v4086, %v4048
        %4123 = vst [vmem:[#allocation2] sm:$0xff] %v4087
        %4124 = vst [vmem:[#allocation2 + $0x8] sm:$0xff] %v4088
        %4125 = vst [vmem:[#allocation2 + $0x10] sm:$0xff] %v4089
        %4126 = vst [vmem:[#allocation2 + $0x18] sm:$0xff] %v4090
        %4127 = vst [vmem:[#allocation2 + $0x20] sm:$0xff] %v4091
        %4128 = vst [vmem:[#allocation2 + $0x28] sm:$0xff] %v4092
        %4129 = vst [vmem:[#allocation2 + $0x30] sm:$0xff] %v4093
        %4130 = vst [vmem:[#allocation2 + $0x38] sm:$0xff] %v4094
        %4131 = vst [vmem:[#allocation2 + $0x40] sm:$0xff] %v4095
        %4132 = vst [vmem:[#allocation2 + $0x48] sm:$0xff] %v4096
        %4133 = vst [vmem:[#allocation2 + $0x50] sm:$0xff] %v4097
        %4134 = vst [vmem:[#allocation2 + $0x58] sm:$0xff] %v4098
        %4135 = vst [vmem:[#allocation2 + $0x60] sm:$0xff] %v4099
        %4136 = vst [vmem:[#allocation2 + $0x68] sm:$0xff] %v4100
        %4137 = vst [vmem:[#allocation2 + $0x70] sm:$0xff] %v4101
        %4138 = vst [vmem:[#allocation2 + $0x78] sm:$0xff] %v4102
        %4139 = vst [vmem:[#allocation2 + $0x80] sm:$0xff] %v4103
        %4140 = vst [vmem:[#allocation2 + $0x88] sm:$0xff] %v4104
        %4141 = vst [vmem:[#allocation2 + $0x90] sm:$0xff] %v4105
        %4142 = vst [vmem:[#allocation2 + $0x98] sm:$0xff] %v4106
        %4143 = vst [vmem:[#allocation2 + $0xa0] sm:$0xff] %v4107
        %4144 = vst [vmem:[#allocation2 + $0xa8] sm:$0xff] %v4108
        %4145 = vst [vmem:[#allocation2 + $0xb0] sm:$0xff] %v4109
        %4146 = vst [vmem:[#allocation2 + $0xb8] sm:$0xff] %v4110
        %4147 = vst [vmem:[#allocation2 + $0xc0] sm:$0xff] %v4111
        %4148 = vst [vmem:[#allocation2 + $0xc8] sm:$0xff] %v4112
        %4149 = vst [vmem:[#allocation2 + $0xd0] sm:$0xff] %v4113
        %4150 = vst [vmem:[#allocation2 + $0xd8] sm:$0xff] %v4114
        %4151 = vst [vmem:[#allocation2 + $0xe0] sm:$0xff] %v4115
        %4152 = vst [vmem:[#allocation2 + $0xe8] sm:$0xff] %v4116
        %4153 = vst [vmem:[#allocation2 + $0xf0] sm:$0xff] %v4117
        %4154 = vst [vmem:[#allocation2 + $0xf8] sm:$0xff] %v4118
        %4155 = vst [vmem:[#allocation2 + $0x100] sm:$0xff] %v4119
        %4156 = vst [vmem:[#allocation2 + $0x108] sm:$0xff] %v4120
        %4157 = vst [vmem:[#allocation2 + $0x110] sm:$0xff] %v4121
        %4158 = vst [vmem:[#allocation2 + $0x118] sm:$0xff] %v4122
        %v4159 = vld [vmem:[%s206 + $0x26] sm:$0xff]
        %v4160 = vld [vmem:[%s206 + $0x2e] sm:$0xff]
        %v4161 = vld [vmem:[%s206 + $0x36] sm:$0xff]
        %v4162 = vld [vmem:[%s206 + $0x3e] sm:$0xff]
        %v4163 = vld [vmem:[%s206 + $0x46] sm:$0xff]
        %v4164 = vld [vmem:[%s206 + $0x4e] sm:$0xff]
        %v4165 = vld [vmem:[%s206 + $0x56] sm:$0xff]
        %v4166 = vld [vmem:[%s206 + $0x5e] sm:$0xff]
        %v4167 = vld [vmem:[%s206 + $0x66] sm:$0xff]
        %v4168 = vld [vmem:[%s206 + $0x6e] sm:$0xff]
        %v4169 = vld [vmem:[%s206 + $0x76] sm:$0xff]
        %v4170 = vld [vmem:[%s206 + $0x7e] sm:$0xff]
        %v4171 = vld [vmem:[%s206 + $0x86] sm:$0xff]
        %v4172 = vld [vmem:[%s206 + $0x8e] sm:$0xff]
        %v4173 = vld [vmem:[%s206 + $0x96] sm:$0xff]
        %v4174 = vld [vmem:[%s206 + $0x9e] sm:$0xff]
        %v4175 = vld [vmem:[%s206 + $0xa6] sm:$0xff]
        %v4176 = vld [vmem:[%s206 + $0xae] sm:$0xff]
        %v4177 = vld [vmem:[%s206 + $0xb6] sm:$0xff]
        %v4178 = vld [vmem:[%s206 + $0xbe] sm:$0xff]
        %v4179 = vld [vmem:[%s206 + $0xc6] sm:$0xff]
        %v4180 = vld [vmem:[%s206 + $0xce] sm:$0xff]
        %v4181 = vld [vmem:[%s206 + $0xd6] sm:$0xff]
        %v4182 = vld [vmem:[%s206 + $0xde] sm:$0xff]
        %v4183 = vld [vmem:[%s206 + $0xe6] sm:$0xff]
        %v4184 = vld [vmem:[%s206 + $0xee] sm:$0xff]
        %v4185 = vld [vmem:[%s206 + $0xf6] sm:$0xff]
        %v4186 = vld [vmem:[%s206 + $0xfe] sm:$0xff]
        %v4187 = vld [vmem:[%s206 + $0x106] sm:$0xff]
        %v4188 = vld [vmem:[%s206 + $0x10e] sm:$0xff]
        %v4189 = vld [vmem:[%s206 + $0x116] sm:$0xff]
        %v4190 = vld [vmem:[%s206 + $0x11e] sm:$0xff]
        %v4191 = vld [vmem:[%s206 + $0x126] sm:$0xff]
        %v4192 = vld [vmem:[%s206 + $0x12e] sm:$0xff]
        %v4193 = vld [vmem:[%s206 + $0x136] sm:$0xff]
        %v4194 = vld [vmem:[%s206 + $0x13e] sm:$0xff]
        %s4195 = scalar_lea.vmem %s210, 32
        %v4196 = vld [vmem:[%s4195] sm:$0xf]
        %v4198 = vsel %vm251, %v4159, 0
        %v4201 = vsel %vm251, %v4160, 0
        %v4204 = vsel %vm251, %v4161, 0
        %v4207 = vsel %vm251, %v4162, 0
        %v4210 = vsel %vm251, %v4163, 0
        %v4213 = vsel %vm251, %v4164, 0
        %v4216 = vsel %vm251, %v4165, 0
        %v4219 = vsel %vm251, %v4166, 0
        %v4222 = vsel %vm251, %v4167, 0
        %v4225 = vsel %vm251, %v4168, 0
        %v4228 = vsel %vm251, %v4169, 0
        %v4231 = vsel %vm251, %v4170, 0
        %v4234 = vsel %vm251, %v4171, 0
        %v4237 = vsel %vm251, %v4172, 0
        %v4240 = vsel %vm251, %v4173, 0
        %v4243 = vsel %vm251, %v4174, 0
        %v4246 = vsel %vm251, %v4175, 0
        %v4249 = vsel %vm251, %v4176, 0
        %v4252 = vsel %vm251, %v4177, 0
        %v4255 = vsel %vm251, %v4178, 0
        %v4258 = vsel %vm251, %v4179, 0
        %v4261 = vsel %vm251, %v4180, 0
        %v4264 = vsel %vm251, %v4181, 0
        %v4267 = vsel %vm251, %v4182, 0
        %v4270 = vsel %vm251, %v4183, 0
        %v4273 = vsel %vm251, %v4184, 0
        %v4276 = vsel %vm251, %v4185, 0
        %v4279 = vsel %vm251, %v4186, 0
        %v4282 = vsel %vm251, %v4187, 0
        %v4285 = vsel %vm251, %v4188, 0
        %v4288 = vsel %vm251, %v4189, 0
        %v4291 = vsel %vm251, %v4190, 0
        %v4294 = vsel %vm251, %v4191, 0
        %v4297 = vsel %vm251, %v4192, 0
        %v4300 = vsel %vm251, %v4193, 0
        %v4303 = vsel %vm251, %v4194, 0
        %v4306 = vsel %vm360, %v4196, 0
        %4308 = vmatprep.subr.mxu0 0.0
        %4309 = vmatpush1.msra.mxu0 0.0
        %4310 = vmatprep.subr.mxu0 0.0
        %4311 = vmatpush1.msra.mxu0 0.0
        %4312 = vmatprep.subr.mxu0 0.0
        %4313 = vmatpush1.msra.mxu0 0.0
        %4314 = vmatprep.subr.mxu0 0.0
        %4315 = vmatpush1.msra.mxu0 0.0
        %4316 = vmatprep.subr.mxu0 0.0
        %4317 = vmatpush1.msra.mxu0 0.0
        %4318 = vmatprep.subr.mxu0 0.0
        %4319 = vmatpush1.msra.mxu0 0.0
        %4320 = vmatprep.subr.mxu0 0.0
        %4321 = vmatpush1.msra.mxu0 0.0
        %4322 = vmatprep.subr.mxu0 0.0
        %4323 = vmatpush1.msra.mxu0 0.0
        %4324 = vmatprep.subr.mxu0 0.0
        %4325 = vmatpush1.msra.mxu0 0.0
        %4326 = vmatprep.subr.mxu0 0.0
        %4327 = vmatpush1.msra.mxu0 0.0
        %4328 = vmatprep.subr.mxu0 0.0
        %4329 = vmatpush1.msra.mxu0 0.0
        %4330 = vmatprep.subr.mxu0 0.0
        %4331 = vmatpush1.msra.mxu0 0.0
        %4332 = vmatprep.subr.mxu0 0.0
        %4333 = vmatpush1.msra.mxu0 0.0
        %4334 = vmatprep.subr.mxu0 0.0
        %4335 = vmatpush1.msra.mxu0 0.0
        %4336 = vmatprep.subr.mxu0 0.0
        %4337 = vmatpush1.msra.mxu0 0.0
        %4338 = vmatprep.subr.mxu0 0.0
        %4339 = vmatpush1.msra.mxu0 %v4306
        %4340 = vmatprep.subr.mxu0 0.0
        %4341 = vmatpush2.msra.mxu0 0.0
        %4342 = vmatprep.subr.mxu0 0.0
        %4343 = vmatpush2.msra.mxu0 0.0
        %4344 = vmatprep.subr.mxu0 0.0
        %4345 = vmatpush2.msra.mxu0 0.0
        %4346 = vmatprep.subr.mxu0 0.0
        %4347 = vmatpush2.msra.mxu0 0.0
        %4348 = vmatprep.subr.mxu0 0.0
        %4349 = vmatpush2.msra.mxu0 0.0
        %4350 = vmatprep.subr.mxu0 0.0
        %4351 = vmatpush2.msra.mxu0 0.0
        %4352 = vmatprep.subr.mxu0 0.0
        %4353 = vmatpush2.msra.mxu0 0.0
        %4354 = vmatprep.subr.mxu0 0.0
        %4355 = vmatpush2.msra.mxu0 0.0
        %4356 = vmatprep.subr.mxu0 0.0
        %4357 = vmatpush2.msra.mxu0 0.0
        %4358 = vmatprep.subr.mxu0 0.0
        %4359 = vmatpush2.msra.mxu0 0.0
        %4360 = vmatprep.subr.mxu0 0.0
        %4361 = vmatpush2.msra.mxu0 0.0
        %4362 = vmatprep.subr.mxu0 0.0
        %4363 = vmatpush2.msra.mxu0 0.0
        %4364 = vmatprep.subr.mxu0 0.0
        %4365 = vmatpush2.msra.mxu0 0.0
        %4366 = vmatprep.subr.mxu0 0.0
        %4367 = vmatpush2.msra.mxu0 0.0
        %4368 = vmatprep.subr.mxu0 0.0
        %4369 = vmatpush2.msra.mxu0 0.0
        %4370 = vmatprep.subr.mxu0 0.0
        %4371 = vmatpush2.msra.mxu0 0.0
        %4372 = vmatprep.mubr.f32.mxu0 0.0
        %4373 = vmatmul.mubr.f32.gmra.mxu0 %v4198
        %v4374 = vpop.f32.mrf.mxu0
        %v4375 = vadd.f32 0.0, %v4374
        %v4376 = vpop.f32.mrf.mxu0
        %4377 = vmatprep.mubr.f32.mxu0 0.0
        %4378 = vmatmul.mubr.f32.gmra.mxu0 %v4201
        %v4379 = vpop.f32.mrf.mxu0
        %v4380 = vadd.f32 0.0, %v4379
        %v4381 = vpop.f32.mrf.mxu0
        %4382 = vmatprep.mubr.f32.mxu0 0.0
        %4383 = vmatmul.mubr.f32.gmra.mxu0 %v4204
        %v4384 = vpop.f32.mrf.mxu0
        %v4385 = vadd.f32 0.0, %v4384
        %v4386 = vpop.f32.mrf.mxu0
        %4387 = vmatprep.mubr.f32.mxu0 0.0
        %4388 = vmatmul.mubr.f32.gmra.mxu0 %v4207
        %v4389 = vpop.f32.mrf.mxu0
        %v4390 = vadd.f32 0.0, %v4389
        %v4391 = vpop.f32.mrf.mxu0
        %4392 = vmatprep.mubr.f32.mxu0 0.0
        %4393 = vmatmul.mubr.f32.gmra.mxu0 %v4210
        %v4394 = vpop.f32.mrf.mxu0
        %v4395 = vadd.f32 0.0, %v4394
        %v4396 = vpop.f32.mrf.mxu0
        %4397 = vmatprep.mubr.f32.mxu0 0.0
        %4398 = vmatmul.mubr.f32.gmra.mxu0 %v4213
        %v4399 = vpop.f32.mrf.mxu0
        %v4400 = vadd.f32 0.0, %v4399
        %v4401 = vpop.f32.mrf.mxu0
        %4402 = vmatprep.mubr.f32.mxu0 0.0
        %4403 = vmatmul.mubr.f32.gmra.mxu0 %v4216
        %v4404 = vpop.f32.mrf.mxu0
        %v4405 = vadd.f32 0.0, %v4404
        %v4406 = vpop.f32.mrf.mxu0
        %4407 = vmatprep.mubr.f32.mxu0 0.0
        %4408 = vmatmul.mubr.f32.gmra.mxu0 %v4219
        %v4409 = vpop.f32.mrf.mxu0
        %v4410 = vadd.f32 0.0, %v4409
        %v4411 = vpop.f32.mrf.mxu0
        %4412 = vmatprep.mubr.f32.mxu0 0.0
        %4413 = vmatmul.mubr.f32.gmra.mxu0 %v4222
        %v4414 = vpop.f32.mrf.mxu0
        %v4415 = vadd.f32 0.0, %v4414
        %v4416 = vpop.f32.mrf.mxu0
        %4417 = vmatprep.mubr.f32.mxu0 0.0
        %4418 = vmatmul.mubr.f32.gmra.mxu0 %v4225
        %v4419 = vpop.f32.mrf.mxu0
        %v4420 = vadd.f32 0.0, %v4419
        %v4421 = vpop.f32.mrf.mxu0
        %4422 = vmatprep.mubr.f32.mxu0 0.0
        %4423 = vmatmul.mubr.f32.gmra.mxu0 %v4228
        %v4424 = vpop.f32.mrf.mxu0
        %v4425 = vadd.f32 0.0, %v4424
        %v4426 = vpop.f32.mrf.mxu0
        %4427 = vmatprep.mubr.f32.mxu0 0.0
        %4428 = vmatmul.mubr.f32.gmra.mxu0 %v4231
        %v4429 = vpop.f32.mrf.mxu0
        %v4430 = vadd.f32 0.0, %v4429
        %v4431 = vpop.f32.mrf.mxu0
        %4432 = vmatprep.mubr.f32.mxu0 0.0
        %4433 = vmatmul.mubr.f32.gmra.mxu0 %v4234
        %v4434 = vpop.f32.mrf.mxu0
        %v4435 = vadd.f32 0.0, %v4434
        %v4436 = vpop.f32.mrf.mxu0
        %4437 = vmatprep.mubr.f32.mxu0 0.0
        %4438 = vmatmul.mubr.f32.gmra.mxu0 %v4237
        %v4439 = vpop.f32.mrf.mxu0
        %v4440 = vadd.f32 0.0, %v4439
        %v4441 = vpop.f32.mrf.mxu0
        %4442 = vmatprep.mubr.f32.mxu0 0.0
        %4443 = vmatmul.mubr.f32.gmra.mxu0 %v4240
        %v4444 = vpop.f32.mrf.mxu0
        %v4445 = vadd.f32 0.0, %v4444
        %v4446 = vpop.f32.mrf.mxu0
        %4447 = vmatprep.mubr.f32.mxu0 0.0
        %4448 = vmatmul.mubr.f32.gmra.mxu0 %v4243
        %v4449 = vpop.f32.mrf.mxu0
        %v4450 = vadd.f32 0.0, %v4449
        %v4451 = vpop.f32.mrf.mxu0
        %4452 = vmatprep.mubr.f32.mxu0 0.0
        %4453 = vmatmul.mubr.f32.gmra.mxu0 %v4246
        %v4454 = vpop.f32.mrf.mxu0
        %v4455 = vadd.f32 0.0, %v4454
        %v4456 = vpop.f32.mrf.mxu0
        %4457 = vmatprep.mubr.f32.mxu0 0.0
        %4458 = vmatmul.mubr.f32.gmra.mxu0 %v4249
        %v4459 = vpop.f32.mrf.mxu0
        %v4460 = vadd.f32 0.0, %v4459
        %v4461 = vpop.f32.mrf.mxu0
        %4462 = vmatprep.mubr.f32.mxu0 0.0
        %4463 = vmatmul.mubr.f32.gmra.mxu0 %v4252
        %v4464 = vpop.f32.mrf.mxu0
        %v4465 = vadd.f32 0.0, %v4464
        %v4466 = vpop.f32.mrf.mxu0
        %4467 = vmatprep.mubr.f32.mxu0 0.0
        %4468 = vmatmul.mubr.f32.gmra.mxu0 %v4255
        %v4469 = vpop.f32.mrf.mxu0
        %v4470 = vadd.f32 0.0, %v4469
        %v4471 = vpop.f32.mrf.mxu0
        %4472 = vmatprep.mubr.f32.mxu0 0.0
        %4473 = vmatmul.mubr.f32.gmra.mxu0 %v4258
        %v4474 = vpop.f32.mrf.mxu0
        %v4475 = vadd.f32 0.0, %v4474
        %v4476 = vpop.f32.mrf.mxu0
        %4477 = vmatprep.mubr.f32.mxu0 0.0
        %4478 = vmatmul.mubr.f32.gmra.mxu0 %v4261
        %v4479 = vpop.f32.mrf.mxu0
        %v4480 = vadd.f32 0.0, %v4479
        %v4481 = vpop.f32.mrf.mxu0
        %4482 = vmatprep.mubr.f32.mxu0 0.0
        %4483 = vmatmul.mubr.f32.gmra.mxu0 %v4264
        %v4484 = vpop.f32.mrf.mxu0
        %v4485 = vadd.f32 0.0, %v4484
        %v4486 = vpop.f32.mrf.mxu0
        %4487 = vmatprep.mubr.f32.mxu0 0.0
        %4488 = vmatmul.mubr.f32.gmra.mxu0 %v4267
        %v4489 = vpop.f32.mrf.mxu0
        %v4490 = vadd.f32 0.0, %v4489
        %v4491 = vpop.f32.mrf.mxu0
        %4492 = vmatprep.mubr.f32.mxu0 0.0
        %4493 = vmatmul.mubr.f32.gmra.mxu0 %v4270
        %v4494 = vpop.f32.mrf.mxu0
        %v4495 = vadd.f32 0.0, %v4494
        %v4496 = vpop.f32.mrf.mxu0
        %4497 = vmatprep.mubr.f32.mxu0 0.0
        %4498 = vmatmul.mubr.f32.gmra.mxu0 %v4273
        %v4499 = vpop.f32.mrf.mxu0
        %v4500 = vadd.f32 0.0, %v4499
        %v4501 = vpop.f32.mrf.mxu0
        %4502 = vmatprep.mubr.f32.mxu0 0.0
        %4503 = vmatmul.mubr.f32.gmra.mxu0 %v4276
        %v4504 = vpop.f32.mrf.mxu0
        %v4505 = vadd.f32 0.0, %v4504
        %v4506 = vpop.f32.mrf.mxu0
        %4507 = vmatprep.mubr.f32.mxu0 0.0
        %4508 = vmatmul.mubr.f32.gmra.mxu0 %v4279
        %v4509 = vpop.f32.mrf.mxu0
        %v4510 = vadd.f32 0.0, %v4509
        %v4511 = vpop.f32.mrf.mxu0
        %4512 = vmatprep.mubr.f32.mxu0 0.0
        %4513 = vmatmul.mubr.f32.gmra.mxu0 %v4282
        %v4514 = vpop.f32.mrf.mxu0
        %v4515 = vadd.f32 0.0, %v4514
        %v4516 = vpop.f32.mrf.mxu0
        %4517 = vmatprep.mubr.f32.mxu0 0.0
        %4518 = vmatmul.mubr.f32.gmra.mxu0 %v4285
        %v4519 = vpop.f32.mrf.mxu0
        %v4520 = vadd.f32 0.0, %v4519
        %v4521 = vpop.f32.mrf.mxu0
        %4522 = vmatprep.mubr.f32.mxu0 0.0
        %4523 = vmatmul.mubr.f32.gmra.mxu0 %v4288
        %v4524 = vpop.f32.mrf.mxu0
        %v4525 = vadd.f32 0.0, %v4524
        %v4526 = vpop.f32.mrf.mxu0
        %4527 = vmatprep.mubr.f32.mxu0 0.0
        %4528 = vmatmul.mubr.f32.gmra.mxu0 %v4291
        %v4529 = vpop.f32.mrf.mxu0
        %v4530 = vadd.f32 0.0, %v4529
        %v4531 = vpop.f32.mrf.mxu0
        %4532 = vmatprep.mubr.f32.mxu0 0.0
        %4533 = vmatmul.mubr.f32.gmra.mxu0 %v4294
        %v4534 = vpop.f32.mrf.mxu0
        %v4535 = vadd.f32 0.0, %v4534
        %v4536 = vpop.f32.mrf.mxu0
        %4537 = vmatprep.mubr.f32.mxu0 0.0
        %4538 = vmatmul.mubr.f32.gmra.mxu0 %v4297
        %v4539 = vpop.f32.mrf.mxu0
        %v4540 = vadd.f32 0.0, %v4539
        %v4541 = vpop.f32.mrf.mxu0
        %4542 = vmatprep.mubr.f32.mxu0 0.0
        %4543 = vmatmul.mubr.f32.gmra.mxu0 %v4300
        %v4544 = vpop.f32.mrf.mxu0
        %v4545 = vadd.f32 0.0, %v4544
        %v4546 = vpop.f32.mrf.mxu0
        %4547 = vmatprep.mubr.f32.mxu0 0.0
        %4548 = vmatmul.mubr.f32.gmra.mxu0 %v4303
        %v4549 = vpop.f32.mrf.mxu0
        %v4550 = vadd.f32 0.0, %v4549
        %v4551 = vpop.f32.mrf.mxu0
        %4552 = vdwg.mxu0
        %v4553 = vld [vmem:[#allocation2] sm:$0xff]
        %v4554 = vld [vmem:[#allocation2 + $0x8] sm:$0xff]
        %v4555 = vld [vmem:[#allocation2 + $0x10] sm:$0xff]
        %v4556 = vld [vmem:[#allocation2 + $0x18] sm:$0xff]
        %v4557 = vld [vmem:[#allocation2 + $0x20] sm:$0xff]
        %v4558 = vld [vmem:[#allocation2 + $0x28] sm:$0xff]
        %v4559 = vld [vmem:[#allocation2 + $0x30] sm:$0xff]
        %v4560 = vld [vmem:[#allocation2 + $0x38] sm:$0xff]
        %v4561 = vld [vmem:[#allocation2 + $0x40] sm:$0xff]
        %v4562 = vld [vmem:[#allocation2 + $0x48] sm:$0xff]
        %v4563 = vld [vmem:[#allocation2 + $0x50] sm:$0xff]
        %v4564 = vld [vmem:[#allocation2 + $0x58] sm:$0xff]
        %v4565 = vld [vmem:[#allocation2 + $0x60] sm:$0xff]
        %v4566 = vld [vmem:[#allocation2 + $0x68] sm:$0xff]
        %v4567 = vld [vmem:[#allocation2 + $0x70] sm:$0xff]
        %v4568 = vld [vmem:[#allocation2 + $0x78] sm:$0xff]
        %v4569 = vld [vmem:[#allocation2 + $0x80] sm:$0xff]
        %v4570 = vld [vmem:[#allocation2 + $0x88] sm:$0xff]
        %v4571 = vld [vmem:[#allocation2 + $0x90] sm:$0xff]
        %v4572 = vld [vmem:[#allocation2 + $0x98] sm:$0xff]
        %v4573 = vld [vmem:[#allocation2 + $0xa0] sm:$0xff]
        %v4574 = vld [vmem:[#allocation2 + $0xa8] sm:$0xff]
        %v4575 = vld [vmem:[#allocation2 + $0xb0] sm:$0xff]
        %v4576 = vld [vmem:[#allocation2 + $0xb8] sm:$0xff]
        %v4577 = vld [vmem:[#allocation2 + $0xc0] sm:$0xff]
        %v4578 = vld [vmem:[#allocation2 + $0xc8] sm:$0xff]
        %v4579 = vld [vmem:[#allocation2 + $0xd0] sm:$0xff]
        %v4580 = vld [vmem:[#allocation2 + $0xd8] sm:$0xff]
        %v4581 = vld [vmem:[#allocation2 + $0xe0] sm:$0xff]
        %v4582 = vld [vmem:[#allocation2 + $0xe8] sm:$0xff]
        %v4583 = vld [vmem:[#allocation2 + $0xf0] sm:$0xff]
        %v4584 = vld [vmem:[#allocation2 + $0xf8] sm:$0xff]
        %v4585 = vld [vmem:[#allocation2 + $0x100] sm:$0xff]
        %v4586 = vld [vmem:[#allocation2 + $0x108] sm:$0xff]
        %v4587 = vld [vmem:[#allocation2 + $0x110] sm:$0xff]
        %v4588 = vld [vmem:[#allocation2 + $0x118] sm:$0xff]
        %v4589 = vadd.f32 %v4553, %v4375
        %v4590 = vadd.f32 %v4554, %v4380
        %v4591 = vadd.f32 %v4555, %v4385
        %v4592 = vadd.f32 %v4556, %v4390
        %v4593 = vadd.f32 %v4557, %v4395
        %v4594 = vadd.f32 %v4558, %v4400
        %v4595 = vadd.f32 %v4559, %v4405
        %v4596 = vadd.f32 %v4560, %v4410
        %v4597 = vadd.f32 %v4561, %v4415
        %v4598 = vadd.f32 %v4562, %v4420
        %v4599 = vadd.f32 %v4563, %v4425
        %v4600 = vadd.f32 %v4564, %v4430
        %v4601 = vadd.f32 %v4565, %v4435
        %v4602 = vadd.f32 %v4566, %v4440
        %v4603 = vadd.f32 %v4567, %v4445
        %v4604 = vadd.f32 %v4568, %v4450
        %v4605 = vadd.f32 %v4569, %v4455
        %v4606 = vadd.f32 %v4570, %v4460
        %v4607 = vadd.f32 %v4571, %v4465
        %v4608 = vadd.f32 %v4572, %v4470
        %v4609 = vadd.f32 %v4573, %v4475
        %v4610 = vadd.f32 %v4574, %v4480
        %v4611 = vadd.f32 %v4575, %v4485
        %v4612 = vadd.f32 %v4576, %v4490
        %v4613 = vadd.f32 %v4577, %v4495
        %v4614 = vadd.f32 %v4578, %v4500
        %v4615 = vadd.f32 %v4579, %v4505
        %v4616 = vadd.f32 %v4580, %v4510
        %v4617 = vadd.f32 %v4581, %v4515
        %v4618 = vadd.f32 %v4582, %v4520
        %v4619 = vadd.f32 %v4583, %v4525
        %v4620 = vadd.f32 %v4584, %v4530
        %v4621 = vadd.f32 %v4585, %v4535
        %v4622 = vadd.f32 %v4586, %v4540
        %v4623 = vadd.f32 %v4587, %v4545
        %v4624 = vadd.f32 %v4588, %v4550
        %4625 = vst [vmem:[#allocation2] sm:$0xff] %v4589
        %4626 = vst [vmem:[#allocation2 + $0x8] sm:$0xff] %v4590
        %4627 = vst [vmem:[#allocation2 + $0x10] sm:$0xff] %v4591
        %4628 = vst [vmem:[#allocation2 + $0x18] sm:$0xff] %v4592
        %4629 = vst [vmem:[#allocation2 + $0x20] sm:$0xff] %v4593
        %4630 = vst [vmem:[#allocation2 + $0x28] sm:$0xff] %v4594
        %4631 = vst [vmem:[#allocation2 + $0x30] sm:$0xff] %v4595
        %4632 = vst [vmem:[#allocation2 + $0x38] sm:$0xff] %v4596
        %4633 = vst [vmem:[#allocation2 + $0x40] sm:$0xff] %v4597
        %4634 = vst [vmem:[#allocation2 + $0x48] sm:$0xff] %v4598
        %4635 = vst [vmem:[#allocation2 + $0x50] sm:$0xff] %v4599
        %4636 = vst [vmem:[#allocation2 + $0x58] sm:$0xff] %v4600
        %4637 = vst [vmem:[#allocation2 + $0x60] sm:$0xff] %v4601
        %4638 = vst [vmem:[#allocation2 + $0x68] sm:$0xff] %v4602
        %4639 = vst [vmem:[#allocation2 + $0x70] sm:$0xff] %v4603
        %4640 = vst [vmem:[#allocation2 + $0x78] sm:$0xff] %v4604
        %4641 = vst [vmem:[#allocation2 + $0x80] sm:$0xff] %v4605
        %4642 = vst [vmem:[#allocation2 + $0x88] sm:$0xff] %v4606
        %4643 = vst [vmem:[#allocation2 + $0x90] sm:$0xff] %v4607
        %4644 = vst [vmem:[#allocation2 + $0x98] sm:$0xff] %v4608
        %4645 = vst [vmem:[#allocation2 + $0xa0] sm:$0xff] %v4609
        %4646 = vst [vmem:[#allocation2 + $0xa8] sm:$0xff] %v4610
        %4647 = vst [vmem:[#allocation2 + $0xb0] sm:$0xff] %v4611
        %4648 = vst [vmem:[#allocation2 + $0xb8] sm:$0xff] %v4612
        %4649 = vst [vmem:[#allocation2 + $0xc0] sm:$0xff] %v4613
        %4650 = vst [vmem:[#allocation2 + $0xc8] sm:$0xff] %v4614
        %4651 = vst [vmem:[#allocation2 + $0xd0] sm:$0xff] %v4615
        %4652 = vst [vmem:[#allocation2 + $0xd8] sm:$0xff] %v4616
        %4653 = vst [vmem:[#allocation2 + $0xe0] sm:$0xff] %v4617
        %4654 = vst [vmem:[#allocation2 + $0xe8] sm:$0xff] %v4618
        %4655 = vst [vmem:[#allocation2 + $0xf0] sm:$0xff] %v4619
        %4656 = vst [vmem:[#allocation2 + $0xf8] sm:$0xff] %v4620
        %4657 = vst [vmem:[#allocation2 + $0x100] sm:$0xff] %v4621
        %4658 = vst [vmem:[#allocation2 + $0x108] sm:$0xff] %v4622
        %4659 = vst [vmem:[#allocation2 + $0x110] sm:$0xff] %v4623
        %4660 = vst [vmem:[#allocation2 + $0x118] sm:$0xff] %v4624
        %v4661 = vld [vmem:[#allocation2] sm:$0xff]
        %v4662 = vld [vmem:[#allocation2 + $0x8] sm:$0xff]
        %v4663 = vld [vmem:[#allocation2 + $0x10] sm:$0xff]
        %v4664 = vld [vmem:[#allocation2 + $0x18] sm:$0xff]
        %v4665 = vld [vmem:[#allocation2 + $0x20] sm:$0xff]
        %v4666 = vld [vmem:[#allocation2 + $0x28] sm:$0xff]
        %v4667 = vld [vmem:[#allocation2 + $0x30] sm:$0xff]
        %v4668 = vld [vmem:[#allocation2 + $0x38] sm:$0xff]
        %v4669 = vld [vmem:[#allocation2 + $0x40] sm:$0xff]
        %v4670 = vld [vmem:[#allocation2 + $0x48] sm:$0xff]
        %v4671 = vld [vmem:[#allocation2 + $0x50] sm:$0xff]
        %v4672 = vld [vmem:[#allocation2 + $0x58] sm:$0xff]
        %v4673 = vld [vmem:[#allocation2 + $0x60] sm:$0xff]
        %v4674 = vld [vmem:[#allocation2 + $0x68] sm:$0xff]
        %v4675 = vld [vmem:[#allocation2 + $0x70] sm:$0xff]
        %v4676 = vld [vmem:[#allocation2 + $0x78] sm:$0xff]
        %v4677 = vld [vmem:[#allocation2 + $0x80] sm:$0xff]
        %v4678 = vld [vmem:[#allocation2 + $0x88] sm:$0xff]
        %v4679 = vld [vmem:[#allocation2 + $0x90] sm:$0xff]
        %v4680 = vld [vmem:[#allocation2 + $0x98] sm:$0xff]
        %v4681 = vld [vmem:[#allocation2 + $0xa0] sm:$0xff]
        %v4682 = vld [vmem:[#allocation2 + $0xa8] sm:$0xff]
        %v4683 = vld [vmem:[#allocation2 + $0xb0] sm:$0xff]
        %v4684 = vld [vmem:[#allocation2 + $0xb8] sm:$0xff]
        %v4685 = vld [vmem:[#allocation2 + $0xc0] sm:$0xff]
        %v4686 = vld [vmem:[#allocation2 + $0xc8] sm:$0xff]
        %v4687 = vld [vmem:[#allocation2 + $0xd0] sm:$0xff]
        %v4688 = vld [vmem:[#allocation2 + $0xd8] sm:$0xff]
        %v4689 = vld [vmem:[#allocation2 + $0xe0] sm:$0xff]
        %v4690 = vld [vmem:[#allocation2 + $0xe8] sm:$0xff]
        %v4691 = vld [vmem:[#allocation2 + $0xf0] sm:$0xff]
        %v4692 = vld [vmem:[#allocation2 + $0xf8] sm:$0xff]
        %v4693 = vld [vmem:[#allocation2 + $0x100] sm:$0xff]
        %v4694 = vld [vmem:[#allocation2 + $0x108] sm:$0xff]
        %v4695 = vld [vmem:[#allocation2 + $0x110] sm:$0xff]
        %v4696 = vld [vmem:[#allocation2 + $0x118] sm:$0xff]
        %v4697 = vmul.f32 %v4661, 0.23570226
        %v4698 = vmul.f32 %v4662, 0.23570226
        %v4699 = vmul.f32 %v4663, 0.23570226
        %v4700 = vmul.f32 %v4664, 0.23570226
        %v4701 = vmul.f32 %v4665, 0.23570226
        %v4702 = vmul.f32 %v4666, 0.23570226
        %v4703 = vmul.f32 %v4667, 0.23570226
        %v4704 = vmul.f32 %v4668, 0.23570226
        %v4705 = vmul.f32 %v4669, 0.23570226
        %v4706 = vmul.f32 %v4670, 0.23570226
        %v4707 = vmul.f32 %v4671, 0.23570226
        %v4708 = vmul.f32 %v4672, 0.23570226
        %v4709 = vmul.f32 %v4673, 0.23570226
        %v4710 = vmul.f32 %v4674, 0.23570226
        %v4711 = vmul.f32 %v4675, 0.23570226
        %v4712 = vmul.f32 %v4676, 0.23570226
        %v4713 = vmul.f32 %v4677, 0.23570226
        %v4714 = vmul.f32 %v4678, 0.23570226
        %v4715 = vmul.f32 %v4679, 0.23570226
        %v4716 = vmul.f32 %v4680, 0.23570226
        %v4717 = vmul.f32 %v4681, 0.23570226
        %v4718 = vmul.f32 %v4682, 0.23570226
        %v4719 = vmul.f32 %v4683, 0.23570226
        %v4720 = vmul.f32 %v4684, 0.23570226
        %v4721 = vmul.f32 %v4685, 0.23570226
        %v4722 = vmul.f32 %v4686, 0.23570226
        %v4723 = vmul.f32 %v4687, 0.23570226
        %v4724 = vmul.f32 %v4688, 0.23570226
        %v4725 = vmul.f32 %v4689, 0.23570226
        %v4726 = vmul.f32 %v4690, 0.23570226
        %v4727 = vmul.f32 %v4691, 0.23570226
        %v4728 = vmul.f32 %v4692, 0.23570226
        %v4729 = vmul.f32 %v4693, 0.23570226
        %v4730 = vmul.f32 %v4694, 0.23570226
        %v4731 = vmul.f32 %v4695, 0.23570226
        %v4732 = vmul.f32 %v4696, 0.23570226
        %v4733 = vld [vmem:[%s213] sm:$0x1]
        %v4735 = vlaneseq
        %v4736 = vshrl.u32 %v4735, 7
        %v4737 = vsub.s32 0, %v4736
        %v4738 = vrot.slane %v4733, %v4737
        %v4740 = vadd.f32 %v4697, %v4738
        %v4741 = vadd.f32 %v4698, %v4738
        %v4742 = vadd.f32 %v4699, %v4738
        %v4743 = vadd.f32 %v4700, %v4738
        %v4744 = vadd.f32 %v4701, %v4738
        %v4745 = vadd.f32 %v4702, %v4738
        %v4746 = vadd.f32 %v4703, %v4738
        %v4747 = vadd.f32 %v4704, %v4738
        %v4748 = vadd.f32 %v4705, %v4738
        %v4749 = vadd.f32 %v4706, %v4738
        %v4750 = vadd.f32 %v4707, %v4738
        %v4751 = vadd.f32 %v4708, %v4738
        %v4752 = vadd.f32 %v4709, %v4738
        %v4753 = vadd.f32 %v4710, %v4738
        %v4754 = vadd.f32 %v4711, %v4738
        %v4755 = vadd.f32 %v4712, %v4738
        %v4756 = vadd.f32 %v4713, %v4738
        %v4757 = vadd.f32 %v4714, %v4738
        %v4758 = vadd.f32 %v4715, %v4738
        %v4759 = vadd.f32 %v4716, %v4738
        %v4760 = vadd.f32 %v4717, %v4738
        %v4761 = vadd.f32 %v4718, %v4738
        %v4762 = vadd.f32 %v4719, %v4738
        %v4763 = vadd.f32 %v4720, %v4738
        %v4764 = vadd.f32 %v4721, %v4738
        %v4765 = vadd.f32 %v4722, %v4738
        %v4766 = vadd.f32 %v4723, %v4738
        %v4767 = vadd.f32 %v4724, %v4738
        %v4768 = vadd.f32 %v4725, %v4738
        %v4769 = vadd.f32 %v4726, %v4738
        %v4770 = vadd.f32 %v4727, %v4738
        %v4771 = vadd.f32 %v4728, %v4738
        %v4772 = vadd.f32 %v4729, %v4738
        %v4773 = vadd.f32 %v4730, %v4738
        %v4774 = vadd.f32 %v4731, %v4738
        %v4775 = vadd.f32 %v4732, %v4738
        %4776 = vst [vmem:[%s201] sm:$0xff] %v4740
        %4777 = vst [vmem:[%s201 + $0x8] sm:$0xff] %v4741
        %4778 = vst [vmem:[%s201 + $0x10] sm:$0xff] %v4742
        %4779 = vst [vmem:[%s201 + $0x18] sm:$0xff] %v4743
        %4780 = vst [vmem:[%s201 + $0x20] sm:$0xff] %v4744
        %4781 = vst [vmem:[%s201 + $0x28] sm:$0xff] %v4745
        %4782 = vst [vmem:[%s201 + $0x30] sm:$0xff] %v4746
        %4783 = vst [vmem:[%s201 + $0x38] sm:$0xff] %v4747
        %4784 = vst [vmem:[%s201 + $0x40] sm:$0xff] %v4748
        %4785 = vst [vmem:[%s201 + $0x48] sm:$0xff] %v4749
        %4786 = vst [vmem:[%s201 + $0x50] sm:$0xff] %v4750
        %4787 = vst [vmem:[%s201 + $0x58] sm:$0xff] %v4751
        %4788 = vst [vmem:[%s201 + $0x60] sm:$0xff] %v4752
        %4789 = vst [vmem:[%s201 + $0x68] sm:$0xff] %v4753
        %4790 = vst [vmem:[%s201 + $0x70] sm:$0xff] %v4754
        %4791 = vst [vmem:[%s201 + $0x78] sm:$0xff] %v4755
        %4792 = vst [vmem:[%s201 + $0x80] sm:$0xff] %v4756
        %4793 = vst [vmem:[%s201 + $0x88] sm:$0xff] %v4757
        %4794 = vst [vmem:[%s201 + $0x90] sm:$0xff] %v4758
        %4795 = vst [vmem:[%s201 + $0x98] sm:$0xff] %v4759
        %4796 = vst [vmem:[%s201 + $0xa0] sm:$0xff] %v4760
        %4797 = vst [vmem:[%s201 + $0xa8] sm:$0xff] %v4761
        %4798 = vst [vmem:[%s201 + $0xb0] sm:$0xff] %v4762
        %4799 = vst [vmem:[%s201 + $0xb8] sm:$0xff] %v4763
        %4800 = vst [vmem:[%s201 + $0xc0] sm:$0xff] %v4764
        %4801 = vst [vmem:[%s201 + $0xc8] sm:$0xff] %v4765
        %4802 = vst [vmem:[%s201 + $0xd0] sm:$0xff] %v4766
        %4803 = vst [vmem:[%s201 + $0xd8] sm:$0xff] %v4767
        %4804 = vst [vmem:[%s201 + $0xe0] sm:$0xff] %v4768
        %4805 = vst [vmem:[%s201 + $0xe8] sm:$0xff] %v4769
        %4806 = vst [vmem:[%s201 + $0xf0] sm:$0xff] %v4770
        %4807 = vst [vmem:[%s201 + $0xf8] sm:$0xff] %v4771
        %4808 = vst [vmem:[%s201 + $0x100] sm:$0xff] %v4772
        %4809 = vst [vmem:[%s201 + $0x108] sm:$0xff] %v4773
        %4810 = vst [vmem:[%s201 + $0x110] sm:$0xff] %v4774
        %4811 = vst [vmem:[%s201 + $0x118] sm:$0xff] %v4775
        %s4812 = sand.u32 %s117, 1
        %s4813 = scalar_lea.sflag [#allocation4], %s4812
        %s4814 = sand.u32 %s117, 1
        %s4815 = smul.addr %s4814, 288
        %s4816 = scalar_lea.vmem [#allocation3], %s4815
        // Predicated region
        $region33: #{tpu_custom_call.1} parent=31 // pred_check
          %p4817 = pneg %p127
        $region34: #{tpu_custom_call.1} parent=31 // pred_check_branch
          %4819 = sbr.rel (%p4817) target = $region36
        $region35: #{tpu_custom_call.1} parent=31 // pred_region
          %s4821 = ssub.s32 4608, 4608
          %4822 = vsyncadd %s4813, %s4821
          %s4823 = smul.addr %s21, 36
          %s4824 = sadd.s32 %s22, %s4823
          %s4825 = smul.addr %s4824, 128
          %s4826 = scalar_lea.hbm %s3, %s4825
          %s4827 = sshll.u32 %s4816, 4
          %s4828 = int_to_ptr.vmem [resolvable:$true] %s4827
          %4833 = dma.vmem_to_hbm [thread:$0]  %s4828, 4608, %s4826, %s4813, 128, 128, 8
        $region36: #{tpu_custom_call.1} parent=31 // pred_fallthru
          _
      $region32: #{tpu_custom_call.1} parent=5 // pred_fallthru
        _
      %p4834 = scmp.le.s32.totalorder 2, %s12
      // Predicated region
      $region37: #{tpu_custom_call.1} parent=5 // pred_check
        %p4835 = pneg %p4834
      $region38: #{tpu_custom_call.1} parent=5 // pred_check_branch
        %4837 = sbr.rel (%p4835) target = $region40
      $region39: #{tpu_custom_call.1} parent=5 // pred_region
        %s4838 = ssub.s32 %s12, 2
        // Predicated region
        $region41: #{tpu_custom_call.1} parent=39 // pred_check
          %p4839 = pneg %p133
        $region42: #{tpu_custom_call.1} parent=39 // pred_check_branch
          %4841 = sbr.rel (%p4839) target = $region44
        $region43: #{tpu_custom_call.1} parent=39 // pred_region
          %s4842 = sand.u32 %s118, 1
          %s4843 = scalar_lea.sflag [#allocation4], %s4842
          %s4844 = sand.u32 %s118, 1
          %s4845 = smul.addr %s4844, 288
          %s4846 = scalar_lea.vmem [#allocation3], %s4845
          %4847 = dma.done %s4843, 4608
        $region44: #{tpu_custom_call.1} parent=39 // pred_fallthru
          _
      $region40: #{tpu_custom_call.1} parent=5 // pred_fallthru
        _
    $region6: #{tpu_custom_call.1} parent=1 // loop_footer
      %s16 = sadd.s32 1, %s12
    $region7: #{tpu_custom_call.1} parent=1 // loop_footer_branch
      %11 = sbr.rel target = $region3
    $region8: #{tpu_custom_call.1} parent=1 // loop_exit
      _
    %4848 = vsyncpa [#allocation4], 1
    %s4849 = scalar_lea.sflag [#allocation4], 1
    %4850 = vsyncpa %s4849, 1

</llo_original>
